<compile_context>
chip_gen: v7x
topology: tpu7x:2x2x1
jax: 0.10.0
libtpu: 0.0.40
codegen_flags: <defaults>
</compile_context>

<pallas_src>
import math
import numpy as np
import jax
import jax.numpy as jnp
from jax import lax
from jax.experimental import pallas as pl
from jax.experimental.pallas import tpu as pltpu

# ---------------- config (small synthetic AST) ----------------
NUM_CHUNKS = 2
T, F = 16, 16                  # spectrogram: time x mel bins
PATCH = 4                      # patch-embed conv kernel == stride (AST-style)
HIDDEN = 32
NUM_PATCHES = (T // PATCH) * (F // PATCH)     # 16
SEQ = NUM_PATCHES + 2                         # +cls +distillation token = 18
S_PAD = 24                                    # pad sequence to a multiple of 8
HEADS = 2
HEAD_DIM = HIDDEN // HEADS
MLP = 4 * HIDDEN                              # 128 (lane-dense)
LAYERS = 2
K_PATCH = PATCH * PATCH                       # 16 (single input channel)
LN_EPS = 1e-12                                # HF AST default
NEG_INF = -1e30


# ---------------- in-kernel helpers ----------------

def _layernorm(x, g, b):
    # NOTE: padded rows are all-zero -> mu=0, var=0; finite only because
    # (x - mu) == 0 exactly and LN_EPS > 0.
    mu = jnp.mean(x, axis=-1, keepdims=True)
    var = jnp.mean((x - mu) ** 2, axis=-1, keepdims=True)
    return (x - mu) * jax.lax.rsqrt(var + LN_EPS) * g + b


def _erf(x):
    # Abramowitz & Stegun 7.1.26 rational approximation (|err| < 1.5e-7),
    # built only from exp / mul / reciprocal which lower cleanly in Mosaic.
    a1, a2, a3, a4, a5 = (0.254829592, -0.284496736, 1.421413741,
                          -1.453152027, 1.061405429)
    p = 0.3275911
    sgn = jnp.where(x >= 0.0, 1.0, -1.0)
    ax = jnp.abs(x)
    t = pl.reciprocal(1.0 + p * ax, approx=True)          # EUP slot
    poly = ((((a5 * t + a4) * t + a3) * t + a2) * t + a1) * t
    return sgn * (1.0 - poly * jnp.exp(-ax * ax))


def _gelu_exact(x):
    # exact (erf) GELU for parity with PyTorch nn.GELU
    return 0.5 * x * (1.0 + _erf(x * (1.0 / math.sqrt(2.0))))


# ---------------- fused Pallas kernel (whole forward, all chunks) ----------

def _ast_forward_kernel(patches_ref, pw_ref, base_ref, key_bias_ref, pool_ref,
                        ln1g_ref, ln1b_ref,
                        wqkv_ref, bqkv_ref, wo_ref, bo_ref,
                        ln2g_ref, ln2b_ref,
                        w1_ref, b1_ref, w2_ref, b2_ref,
                        lnfg_ref, lnfb_ref,
                        out_ref):
    # ---- patch embedding: im2col'd patches @ flattened conv weight ----
    # base_ref already carries cls/dist tokens, positional embedding and the
    # conv bias on the real rows (tiled per chunk); padding rows are zero.
    x = jnp.dot(patches_ref[0], pw_ref[...],
                preferred_element_type=jnp.float32) + base_ref[...]

    key_bias = key_bias_ref[...]          # block-diag over chunks, real keys
    scale = 1.0 / math.sqrt(HEAD_DIM)
    qkt_dims = (((1,), (1,)), ((), ()))   # qh @ kh.T without a transpose

    for l in range(LAYERS):               # static unroll (LAYERS == 2)
        # --- multi-head self-attention (pre-LN), fused QKV projection ---
        h = _layernorm(x, ln1g_ref[l], ln1b_ref[l])
        qkv = jnp.dot(h, wqkv_ref[l],
                      preferred_element_type=jnp.float32) + bqkv_ref[l]
        ctx_heads = []
        for hd in range(HEADS):            # static 16-lane slices, one vreg
            o = hd * HEAD_DIM
            qh = qkv[:, o:o + HEAD_DIM]
            kh = qkv[:, HIDDEN + o:HIDDEN + o + HEAD_DIM]
            vh = qkv[:, 2 * HIDDEN + o:2 * HIDDEN + o + HEAD_DIM]
            s = lax.dot_general(qh, kh, qkt_dims,
                                preferred_element_type=jnp.float32)
            s = s * scale + key_bias       # mask padded keys / other chunks
            s = s - jnp.max(s, axis=-1, keepdims=True)
            p = jnp.exp(s)
            p = p * pl.reciprocal(jnp.sum(p, axis=-1, keepdims=True),
                                  approx=True)
            ctx_heads.append(jnp.dot(p, vh,
                                     preferred_element_type=jnp.float32))
        ctx = jnp.concatenate(ctx_heads, axis=-1)          # (M, HIDDEN)
        x = x + jnp.dot(ctx, wo_ref[l],
                        preferred_element_type=jnp.float32) + bo_ref[l]

        # --- MLP (pre-LN), exact (erf) GELU ---
        h2 = _layernorm(x, ln2g_ref[l], ln2b_ref[l])
        m = _gelu_exact(jnp.dot(h2, w1_ref[l],
                                preferred_element_type=jnp.float32) + b1_ref[l])
        x = x + jnp.dot(m, w2_ref[l],
                        preferred_element_type=jnp.float32) + b2_ref[l]

    # final encoder LayerNorm (ASTModel.layernorm -> last hidden state)
    x = _layernorm(x, lnfg_ref[...], lnfb_ref[...])

    # masked mean pool over the SEQ real tokens of each chunk: one tiny matmul
    out_ref[0] = jnp.dot(pool_ref[...], x, preferred_element_type=jnp.float32)


def _const_spec(arr):
    # full-array block, same block index every grid step -> VMEM-resident
    zeros = (0,) * arr.ndim
    return pl.BlockSpec(arr.shape, lambda i, _z=zeros: _z)


# ---------------- parameters + forward ----------------

def init_params(key):
    ks = jax.random.split(key, 8)
    std = 0.02
    conv_w = std * jax.random.normal(ks[0], (HIDDEN, 1, PATCH, PATCH),
                                     jnp.float32)
    patch_b = jnp.zeros((HIDDEN,), jnp.float32)
    cls = std * jax.random.normal(ks[1], (HIDDEN,), jnp.float32)
    dist = std * jax.random.normal(ks[2], (HIDDEN,), jnp.float32)
    pos = std * jax.random.normal(ks[3], (SEQ, HIDDEN), jnp.float32)

    # input-independent token/pos/conv-bias slab for one padded chunk,
    # precomputed once here (hoisted out of the per-call wrapper).
    base = jnp.zeros((S_PAD, HIDDEN), jnp.float32)
    base = base.at[0].set(cls)
    base = base.at[1].set(dist)
    base = base.at[2:SEQ].add(jnp.broadcast_to(patch_b, (NUM_PATCHES, HIDDEN)))
    base = base.at[:SEQ].add(pos)

    return {
        # conv weight flattened to (C*ph*pw, HIDDEN) for the im2col matmul
        "patch_w": conv_w.reshape(HIDDEN, -1).T,
        "base": base,
        # layer params stacked on a leading layer axis -> static indexing
        "ln1_g": jnp.ones((LAYERS, 1, HIDDEN), jnp.float32),
        "ln1_b": jnp.zeros((LAYERS, 1, HIDDEN), jnp.float32),
        # fused QKV: lanes = [q head0|q head1|k head0|k head1|v head0|v head1]
        "wqkv": std * jax.random.normal(ks[4], (LAYERS, HIDDEN, 3 * HIDDEN),
                                        jnp.float32),
        "bqkv": jnp.zeros((LAYERS, 1, 3 * HIDDEN), jnp.float32),
        # fused output projection (per layer, heads concatenated on input dim)
        "wo": std * jax.random.normal(ks[5], (LAYERS, HIDDEN, HIDDEN),
                                      jnp.float32),
        "bo": jnp.zeros((LAYERS, 1, HIDDEN), jnp.float32),
        "ln2_g": jnp.ones((LAYERS, 1, HIDDEN), jnp.float32),
        "ln2_b": jnp.zeros((LAYERS, 1, HIDDEN), jnp.float32),
        "w1": std * jax.random.normal(ks[6], (LAYERS, HIDDEN, MLP), jnp.float32),
        "b1": jnp.zeros((LAYERS, 1, MLP), jnp.float32),
        "w2": std * jax.random.normal(ks[7], (LAYERS, MLP, HIDDEN), jnp.float32),
        "b2": jnp.zeros((LAYERS, 1, HIDDEN), jnp.float32),
        "lnf_g": jnp.ones((1, HIDDEN), jnp.float32),
        "lnf_b": jnp.zeros((1, HIDDEN), jnp.float32),
    }


@jax.jit
def get_audio_features(audio_tensor, params):
    """Mirror of GetAudioFeatures.forward on a synthetic AST encoder."""
    nc = audio_tensor.shape[0]
    k = nc                         # chunks batched per (single) grid step
    m = k * S_PAD                  # fused sublane extent
    # TODO(synk): if nc grows large, split into multiple grid steps (a
    # multiple of the TensorCore count on v7x) instead of one giant M.

    # im2col the PATCHxPATCH (stride == kernel) conv patches, place them at
    # sequence rows [2, 2+NUM_PATCHES) of each chunk (rows 0/1 = cls/dist and
    # sublane padding rows stay zero), then stack all chunks along M.
    x = audio_tensor.reshape(nc, 1, T // PATCH, PATCH, F // PATCH, PATCH)
    x = x.transpose(0, 2, 4, 1, 3, 5).reshape(nc, NUM_PATCHES, K_PATCH)
    patches = jnp.pad(x, ((0, 0), (2, S_PAD - SEQ), (0, 0)))
    patches = patches.reshape(1, m, K_PATCH)

    # per-chunk base slab tiled along M (the heavy scatter construction of
    # `base` itself lives in init_params)
    base = jnp.tile(params["base"], (k, 1))

    # constant masks, baked into the executable at trace time (numpy):
    #   key_bias: block-diagonal across chunks, -inf on padded keys
    #   pool_w:   masked mean pool matrix (k, M)
    key_bias_np = np.full((m, m), NEG_INF, np.float32)
    pool_np = np.zeros((k, m), np.float32)
    for c in range(k):
        r0 = c * S_PAD
        key_bias_np[r0:r0 + S_PAD, r0:r0 + SEQ] = 0.0
        pool_np[c, r0:r0 + SEQ] = 1.0 / SEQ
    key_bias = jnp.asarray(key_bias_np)
    pool_w = jnp.asarray(pool_np)

    consts = (params["patch_w"], base, key_bias, pool_w,
              params["ln1_g"], params["ln1_b"],
              params["wqkv"], params["bqkv"],
              params["wo"], params["bo"],
              params["ln2_g"], params["ln2_b"],
              params["w1"], params["b1"], params["w2"], params["b2"],
              params["lnf_g"], params["lnf_b"])

    in_specs = ([pl.BlockSpec((1, m, K_PATCH), lambda i: (i, 0, 0))]
                + [_const_spec(a) for a in consts])

    pooled = pl.pallas_call(
        _ast_forward_kernel,
        out_shape=jax.ShapeDtypeStruct((1, k, HIDDEN), jnp.float32),
        grid=(1,),
        in_specs=in_specs,
        out_specs=pl.BlockSpec((1, k, HIDDEN), lambda i: (i, 0, 0)),
        compiler_params=pltpu.CompilerParams(
            dimension_semantics=("arbitrary",)),
    )(patches, *consts)

    # torch: stack/mean -> (nc, H); .squeeze(0) then unsqueeze-if-1D keeps the
    # output 2-D for nc == 1 as well.
    return pooled.reshape(-1, HIDDEN)


if __name__ == "__main__":
    key = jax.random.PRNGKey(0)
    pkey, xkey = jax.random.split(key)
    params = init_params(pkey)
    # audio_tensor: (num_chunks, 1, T, F)  (NCHW conv input per chunk)
    audio_tensor = jax.random.normal(xkey, (NUM_CHUNKS, 1, T, F), jnp.float32)

    out = get_audio_features(audio_tensor, params)
    out = jax.block_until_ready(out)
    assert out.shape == (NUM_CHUNKS, HIDDEN), out.shape
    assert bool(jnp.all(jnp.isfinite(out)))
    print("KERNEL_OK")
</pallas_src>

<mosaic_0001>
module attributes {stable_mosaic.version = 11 : i64} {
  func.func @_ast_forward_kernel(%arg0: i32, %arg1: memref<1x48x16xf32, #tpu.memory_space<vmem>>, %arg2: memref<16x32xf32, #tpu.memory_space<vmem>>, %arg3: memref<48x32xf32, #tpu.memory_space<vmem>>, %arg4: memref<48x48xf32, #tpu.memory_space<vmem>>, %arg5: memref<2x48xf32, #tpu.memory_space<vmem>>, %arg6: memref<2x1x32xf32, #tpu.memory_space<vmem>>, %arg7: memref<2x1x32xf32, #tpu.memory_space<vmem>>, %arg8: memref<2x32x96xf32, #tpu.memory_space<vmem>>, %arg9: memref<2x1x96xf32, #tpu.memory_space<vmem>>, %arg10: memref<2x32x32xf32, #tpu.memory_space<vmem>>, %arg11: memref<2x1x32xf32, #tpu.memory_space<vmem>>, %arg12: memref<2x1x32xf32, #tpu.memory_space<vmem>>, %arg13: memref<2x1x32xf32, #tpu.memory_space<vmem>>, %arg14: memref<2x32x128xf32, #tpu.memory_space<vmem>>, %arg15: memref<2x1x128xf32, #tpu.memory_space<vmem>>, %arg16: memref<2x128x32xf32, #tpu.memory_space<vmem>>, %arg17: memref<2x1x32xf32, #tpu.memory_space<vmem>>, %arg18: memref<1x32xf32, #tpu.memory_space<vmem>>, %arg19: memref<1x32xf32, #tpu.memory_space<vmem>>, %arg20: memref<1x2x32xf32, #tpu.memory_space<vmem>>) attributes {dimension_semantics = [#tpu.dimension_semantics<arbitrary>], iteration_bounds = array<i64: 1>, scalar_prefetch = 0 : i64, scratch_operands = 0 : i64, tpu.core_type = #tpu.core_type<tc>, window_params = [{transform_indices = @transform_0, window_bounds = array<i64: 1, 48, 16>}, {pipeline_mode = #tpu.pipeline_mode<synchronous>, transform_indices = @transform_1, window_bounds = array<i64: 16, 32>}, {pipeline_mode = #tpu.pipeline_mode<synchronous>, transform_indices = @transform_2, window_bounds = array<i64: 48, 32>}, {pipeline_mode = #tpu.pipeline_mode<synchronous>, transform_indices = @transform_3, window_bounds = array<i64: 48, 48>}, {pipeline_mode = #tpu.pipeline_mode<synchronous>, transform_indices = @transform_4, window_bounds = array<i64: 2, 48>}, {pipeline_mode = #tpu.pipeline_mode<synchronous>, transform_indices = @transform_5, window_bounds = array<i64: 2, 1, 32>}, {pipeline_mode = #tpu.pipeline_mode<synchronous>, transform_indices = @transform_6, window_bounds = array<i64: 2, 1, 32>}, {pipeline_mode = #tpu.pipeline_mode<synchronous>, transform_indices = @transform_7, window_bounds = array<i64: 2, 32, 96>}, {pipeline_mode = #tpu.pipeline_mode<synchronous>, transform_indices = @transform_8, window_bounds = array<i64: 2, 1, 96>}, {pipeline_mode = #tpu.pipeline_mode<synchronous>, transform_indices = @transform_9, window_bounds = array<i64: 2, 32, 32>}, {pipeline_mode = #tpu.pipeline_mode<synchronous>, transform_indices = @transform_10, window_bounds = array<i64: 2, 1, 32>}, {pipeline_mode = #tpu.pipeline_mode<synchronous>, transform_indices = @transform_11, window_bounds = array<i64: 2, 1, 32>}, {pipeline_mode = #tpu.pipeline_mode<synchronous>, transform_indices = @transform_12, window_bounds = array<i64: 2, 1, 32>}, {pipeline_mode = #tpu.pipeline_mode<synchronous>, transform_indices = @transform_13, window_bounds = array<i64: 2, 32, 128>}, {pipeline_mode = #tpu.pipeline_mode<synchronous>, transform_indices = @transform_14, window_bounds = array<i64: 2, 1, 128>}, {pipeline_mode = #tpu.pipeline_mode<synchronous>, transform_indices = @transform_15, window_bounds = array<i64: 2, 128, 32>}, {pipeline_mode = #tpu.pipeline_mode<synchronous>, transform_indices = @transform_16, window_bounds = array<i64: 2, 1, 32>}, {pipeline_mode = #tpu.pipeline_mode<synchronous>, transform_indices = @transform_17, window_bounds = array<i64: 1, 32>}, {pipeline_mode = #tpu.pipeline_mode<synchronous>, transform_indices = @transform_18, window_bounds = array<i64: 1, 32>}, {transform_indices = @transform_19, window_bounds = array<i64: 1, 2, 32>}]} {
    %c0 = arith.constant 0 : index
    %c0_0 = arith.constant 0 : index
    %c0_1 = arith.constant 0 : index
    %0 = vector.load %arg1[%c0, %c0_0, %c0_1] : memref<1x48x16xf32, #tpu.memory_space<vmem>>, vector<1x48x16xf32>
    %1 = vector.shape_cast %0 : vector<1x48x16xf32> to vector<48x16xf32>
    %c0_2 = arith.constant 0 : index
    %c0_3 = arith.constant 0 : index
    %2 = vector.load %arg2[%c0_2, %c0_3] : memref<16x32xf32, #tpu.memory_space<vmem>>, vector<16x32xf32>
    %cst = arith.constant dense<0.000000e+00> : vector<48x32xf32>
    %3 = tpu.matmul %1, %2, %cst {dimension_numbers = #tpu.dot_dimension_numbers<[1], [0], [0], [1], [0, 0, 1, 1], [], []>} : vector<48x16xf32>, vector<16x32xf32>, vector<48x32xf32> -> vector<48x32xf32>
    %c0_4 = arith.constant 0 : index
    %c0_5 = arith.constant 0 : index
    %4 = vector.load %arg3[%c0_4, %c0_5] : memref<48x32xf32, #tpu.memory_space<vmem>>, vector<48x32xf32>
    %5 = arith.addf %3, %4 : vector<48x32xf32>
    %c0_6 = arith.constant 0 : index
    %c0_7 = arith.constant 0 : index
    %6 = vector.load %arg4[%c0_6, %c0_7] : memref<48x48xf32, #tpu.memory_space<vmem>>, vector<48x48xf32>
    %c0_8 = arith.constant 0 : index
    %c0_9 = arith.constant 0 : index
    %c0_10 = arith.constant 0 : index
    %7 = vector.load %arg6[%c0_8, %c0_9, %c0_10] : memref<2x1x32xf32, #tpu.memory_space<vmem>>, vector<1x1x32xf32>
    %8 = vector.shape_cast %7 : vector<1x1x32xf32> to vector<1x32xf32>
    %c0_11 = arith.constant 0 : index
    %c0_12 = arith.constant 0 : index
    %c0_13 = arith.constant 0 : index
    %9 = vector.load %arg7[%c0_11, %c0_12, %c0_13] : memref<2x1x32xf32, #tpu.memory_space<vmem>>, vector<1x1x32xf32>
    %10 = vector.shape_cast %9 : vector<1x1x32xf32> to vector<1x32xf32>
    %cst_14 = arith.constant dense<0.000000e+00> : vector<48xf32>
    %11 = vector.multi_reduction <add>, %5, %cst_14 [1] : vector<48x32xf32> to vector<48xf32>
    %12 = vector.shape_cast %11 : vector<48xf32> to vector<48x1xf32>
    %cst_15 = arith.constant 3.200000e+01 : f32
    %13 = vector.broadcast %cst_15 : f32 to vector<48x1xf32>
    %14 = arith.divf %12, %13 : vector<48x1xf32>
    %15 = vector.broadcast %14 : vector<48x1xf32> to vector<48x32xf32>
    %16 = arith.subf %5, %15 : vector<48x32xf32>
    %17 = arith.mulf %16, %16 : vector<48x32xf32>
    %cst_16 = arith.constant dense<0.000000e+00> : vector<48xf32>
    %18 = vector.multi_reduction <add>, %17, %cst_16 [1] : vector<48x32xf32> to vector<48xf32>
    %19 = vector.shape_cast %18 : vector<48xf32> to vector<48x1xf32>
    %cst_17 = arith.constant 3.200000e+01 : f32
    %20 = vector.broadcast %cst_17 : f32 to vector<48x1xf32>
    %21 = arith.divf %19, %20 : vector<48x1xf32>
    %22 = vector.broadcast %14 : vector<48x1xf32> to vector<48x32xf32>
    %23 = arith.subf %5, %22 : vector<48x32xf32>
    %cst_18 = arith.constant 9.99999996E-13 : f32
    %24 = vector.broadcast %cst_18 : f32 to vector<48x1xf32>
    %25 = arith.addf %21, %24 : vector<48x1xf32>
    %26 = math.rsqrt %25 : vector<48x1xf32>
    %27 = vector.broadcast %26 : vector<48x1xf32> to vector<48x32xf32>
    %28 = arith.mulf %23, %27 : vector<48x32xf32>
    %29 = vector.broadcast %8 : vector<1x32xf32> to vector<48x32xf32>
    %30 = arith.mulf %28, %29 : vector<48x32xf32>
    %31 = vector.broadcast %10 : vector<1x32xf32> to vector<48x32xf32>
    %32 = arith.addf %30, %31 : vector<48x32xf32>
    %c0_19 = arith.constant 0 : index
    %c0_20 = arith.constant 0 : index
    %c0_21 = arith.constant 0 : index
    %33 = vector.load %arg8[%c0_19, %c0_20, %c0_21] : memref<2x32x96xf32, #tpu.memory_space<vmem>>, vector<1x32x96xf32>
    %34 = vector.shape_cast %33 : vector<1x32x96xf32> to vector<32x96xf32>
    %cst_22 = arith.constant dense<0.000000e+00> : vector<48x96xf32>
    %35 = tpu.matmul %32, %34, %cst_22 {dimension_numbers = #tpu.dot_dimension_numbers<[1], [0], [0], [1], [0, 0, 1, 1], [], []>} : vector<48x32xf32>, vector<32x96xf32>, vector<48x96xf32> -> vector<48x96xf32>
    %c0_23 = arith.constant 0 : index
    %c0_24 = arith.constant 0 : index
    %c0_25 = arith.constant 0 : index
    %36 = vector.load %arg9[%c0_23, %c0_24, %c0_25] : memref<2x1x96xf32, #tpu.memory_space<vmem>>, vector<1x1x96xf32>
    %37 = vector.shape_cast %36 : vector<1x1x96xf32> to vector<1x96xf32>
    %38 = vector.broadcast %37 : vector<1x96xf32> to vector<48x96xf32>
    %39 = arith.addf %35, %38 : vector<48x96xf32>
    %40 = vector.extract_strided_slice %39 {offsets = [0, 0], sizes = [48, 16], strides = [1, 1]} : vector<48x96xf32> to vector<48x16xf32>
    %41 = vector.extract_strided_slice %39 {offsets = [0, 32], sizes = [48, 16], strides = [1, 1]} : vector<48x96xf32> to vector<48x16xf32>
    %42 = vector.extract_strided_slice %39 {offsets = [0, 64], sizes = [48, 16], strides = [1, 1]} : vector<48x96xf32> to vector<48x16xf32>
    %cst_26 = arith.constant dense<0.000000e+00> : vector<48x48xf32>
    %43 = tpu.matmul %40, %41, %cst_26 {dimension_numbers = #tpu.dot_dimension_numbers<[1], [1], [0], [0], [0, 0, 1, 0], [], []>} : vector<48x16xf32>, vector<48x16xf32>, vector<48x48xf32> -> vector<48x48xf32>
    %cst_27 = arith.constant 2.500000e-01 : f32
    %44 = vector.broadcast %cst_27 : f32 to vector<48x48xf32>
    %45 = arith.mulf %43, %44 : vector<48x48xf32>
    %46 = arith.addf %45, %6 : vector<48x48xf32>
    %cst_28 = arith.constant dense<0xFF800000> : vector<48xf32>
    %47 = vector.multi_reduction <maximumf>, %46, %cst_28 [1] : vector<48x48xf32> to vector<48xf32>
    %48 = vector.shape_cast %47 : vector<48xf32> to vector<48x1xf32>
    %49 = vector.broadcast %48 : vector<48x1xf32> to vector<48x48xf32>
    %50 = arith.subf %46, %49 : vector<48x48xf32>
    %51 = math.exp %50 : vector<48x48xf32>
    %cst_29 = arith.constant dense<0.000000e+00> : vector<48xf32>
    %52 = vector.multi_reduction <add>, %51, %cst_29 [1] : vector<48x48xf32> to vector<48xf32>
    %53 = vector.shape_cast %52 : vector<48xf32> to vector<48x1xf32>
    %54 = tpu.reciprocal %53 {approx = true} : vector<48x1xf32> -> vector<48x1xf32>
    %55 = vector.broadcast %54 : vector<48x1xf32> to vector<48x48xf32>
    %56 = arith.mulf %51, %55 : vector<48x48xf32>
    %cst_30 = arith.constant dense<0.000000e+00> : vector<48x16xf32>
    %57 = tpu.matmul %56, %42, %cst_30 {dimension_numbers = #tpu.dot_dimension_numbers<[1], [0], [0], [1], [0, 0, 1, 1], [], []>} : vector<48x48xf32>, vector<48x16xf32>, vector<48x16xf32> -> vector<48x16xf32>
    %58 = vector.extract_strided_slice %39 {offsets = [0, 16], sizes = [48, 16], strides = [1, 1]} : vector<48x96xf32> to vector<48x16xf32>
    %59 = vector.extract_strided_slice %39 {offsets = [0, 48], sizes = [48, 16], strides = [1, 1]} : vector<48x96xf32> to vector<48x16xf32>
    %60 = vector.extract_strided_slice %39 {offsets = [0, 80], sizes = [48, 16], strides = [1, 1]} : vector<48x96xf32> to vector<48x16xf32>
    %cst_31 = arith.constant dense<0.000000e+00> : vector<48x48xf32>
    %61 = tpu.matmul %58, %59, %cst_31 {dimension_numbers = #tpu.dot_dimension_numbers<[1], [1], [0], [0], [0, 0, 1, 0], [], []>} : vector<48x16xf32>, vector<48x16xf32>, vector<48x48xf32> -> vector<48x48xf32>
    %cst_32 = arith.constant 2.500000e-01 : f32
    %62 = vector.broadcast %cst_32 : f32 to vector<48x48xf32>
    %63 = arith.mulf %61, %62 : vector<48x48xf32>
    %64 = arith.addf %63, %6 : vector<48x48xf32>
    %cst_33 = arith.constant dense<0xFF800000> : vector<48xf32>
    %65 = vector.multi_reduction <maximumf>, %64, %cst_33 [1] : vector<48x48xf32> to vector<48xf32>
    %66 = vector.shape_cast %65 : vector<48xf32> to vector<48x1xf32>
    %67 = vector.broadcast %66 : vector<48x1xf32> to vector<48x48xf32>
    %68 = arith.subf %64, %67 : vector<48x48xf32>
    %69 = math.exp %68 : vector<48x48xf32>
    %cst_34 = arith.constant dense<0.000000e+00> : vector<48xf32>
    %70 = vector.multi_reduction <add>, %69, %cst_34 [1] : vector<48x48xf32> to vector<48xf32>
    %71 = vector.shape_cast %70 : vector<48xf32> to vector<48x1xf32>
    %72 = tpu.reciprocal %71 {approx = true} : vector<48x1xf32> -> vector<48x1xf32>
    %73 = vector.broadcast %72 : vector<48x1xf32> to vector<48x48xf32>
    %74 = arith.mulf %69, %73 : vector<48x48xf32>
    %cst_35 = arith.constant dense<0.000000e+00> : vector<48x16xf32>
    %75 = tpu.matmul %74, %60, %cst_35 {dimension_numbers = #tpu.dot_dimension_numbers<[1], [0], [0], [1], [0, 0, 1, 1], [], []>} : vector<48x48xf32>, vector<48x16xf32>, vector<48x16xf32> -> vector<48x16xf32>
    %76 = tpu.concatenate %57, %75 in 1 : vector<48x16xf32>, vector<48x16xf32> -> vector<48x32xf32>
    %c0_36 = arith.constant 0 : index
    %c0_37 = arith.constant 0 : index
    %c0_38 = arith.constant 0 : index
    %77 = vector.load %arg10[%c0_36, %c0_37, %c0_38] : memref<2x32x32xf32, #tpu.memory_space<vmem>>, vector<1x32x32xf32>
    %78 = vector.shape_cast %77 : vector<1x32x32xf32> to vector<32x32xf32>
    %cst_39 = arith.constant dense<0.000000e+00> : vector<48x32xf32>
    %79 = tpu.matmul %76, %78, %cst_39 {dimension_numbers = #tpu.dot_dimension_numbers<[1], [0], [0], [1], [0, 0, 1, 1], [], []>} : vector<48x32xf32>, vector<32x32xf32>, vector<48x32xf32> -> vector<48x32xf32>
    %80 = arith.addf %5, %79 : vector<48x32xf32>
    %c0_40 = arith.constant 0 : index
    %c0_41 = arith.constant 0 : index
    %c0_42 = arith.constant 0 : index
    %81 = vector.load %arg11[%c0_40, %c0_41, %c0_42] : memref<2x1x32xf32, #tpu.memory_space<vmem>>, vector<1x1x32xf32>
    %82 = vector.shape_cast %81 : vector<1x1x32xf32> to vector<1x32xf32>
    %83 = vector.broadcast %82 : vector<1x32xf32> to vector<48x32xf32>
    %84 = arith.addf %80, %83 : vector<48x32xf32>
    %c0_43 = arith.constant 0 : index
    %c0_44 = arith.constant 0 : index
    %c0_45 = arith.constant 0 : index
    %85 = vector.load %arg12[%c0_43, %c0_44, %c0_45] : memref<2x1x32xf32, #tpu.memory_space<vmem>>, vector<1x1x32xf32>
    %86 = vector.shape_cast %85 : vector<1x1x32xf32> to vector<1x32xf32>
    %c0_46 = arith.constant 0 : index
    %c0_47 = arith.constant 0 : index
    %c0_48 = arith.constant 0 : index
    %87 = vector.load %arg13[%c0_46, %c0_47, %c0_48] : memref<2x1x32xf32, #tpu.memory_space<vmem>>, vector<1x1x32xf32>
    %88 = vector.shape_cast %87 : vector<1x1x32xf32> to vector<1x32xf32>
    %cst_49 = arith.constant dense<0.000000e+00> : vector<48xf32>
    %89 = vector.multi_reduction <add>, %84, %cst_49 [1] : vector<48x32xf32> to vector<48xf32>
    %90 = vector.shape_cast %89 : vector<48xf32> to vector<48x1xf32>
    %cst_50 = arith.constant 3.200000e+01 : f32
    %91 = vector.broadcast %cst_50 : f32 to vector<48x1xf32>
    %92 = arith.divf %90, %91 : vector<48x1xf32>
    %93 = vector.broadcast %92 : vector<48x1xf32> to vector<48x32xf32>
    %94 = arith.subf %84, %93 : vector<48x32xf32>
    %95 = arith.mulf %94, %94 : vector<48x32xf32>
    %cst_51 = arith.constant dense<0.000000e+00> : vector<48xf32>
    %96 = vector.multi_reduction <add>, %95, %cst_51 [1] : vector<48x32xf32> to vector<48xf32>
    %97 = vector.shape_cast %96 : vector<48xf32> to vector<48x1xf32>
    %cst_52 = arith.constant 3.200000e+01 : f32
    %98 = vector.broadcast %cst_52 : f32 to vector<48x1xf32>
    %99 = arith.divf %97, %98 : vector<48x1xf32>
    %100 = vector.broadcast %92 : vector<48x1xf32> to vector<48x32xf32>
    %101 = arith.subf %84, %100 : vector<48x32xf32>
    %cst_53 = arith.constant 9.99999996E-13 : f32
    %102 = vector.broadcast %cst_53 : f32 to vector<48x1xf32>
    %103 = arith.addf %99, %102 : vector<48x1xf32>
    %104 = math.rsqrt %103 : vector<48x1xf32>
    %105 = vector.broadcast %104 : vector<48x1xf32> to vector<48x32xf32>
    %106 = arith.mulf %101, %105 : vector<48x32xf32>
    %107 = vector.broadcast %86 : vector<1x32xf32> to vector<48x32xf32>
    %108 = arith.mulf %106, %107 : vector<48x32xf32>
    %109 = vector.broadcast %88 : vector<1x32xf32> to vector<48x32xf32>
    %110 = arith.addf %108, %109 : vector<48x32xf32>
    %c0_54 = arith.constant 0 : index
    %c0_55 = arith.constant 0 : index
    %c0_56 = arith.constant 0 : index
    %111 = vector.load %arg14[%c0_54, %c0_55, %c0_56] : memref<2x32x128xf32, #tpu.memory_space<vmem>>, vector<1x32x128xf32>
    %112 = vector.shape_cast %111 : vector<1x32x128xf32> to vector<32x128xf32>
    %cst_57 = arith.constant dense<0.000000e+00> : vector<48x128xf32>
    %113 = tpu.matmul %110, %112, %cst_57 {dimension_numbers = #tpu.dot_dimension_numbers<[1], [0], [0], [1], [0, 0, 1, 1], [], []>} : vector<48x32xf32>, vector<32x128xf32>, vector<48x128xf32> -> vector<48x128xf32>
    %c0_58 = arith.constant 0 : index
    %c0_59 = arith.constant 0 : index
    %c0_60 = arith.constant 0 : index
    %114 = vector.load %arg15[%c0_58, %c0_59, %c0_60] : memref<2x1x128xf32, #tpu.memory_space<vmem>>, vector<1x1x128xf32>
    %115 = vector.shape_cast %114 : vector<1x1x128xf32> to vector<1x128xf32>
    %116 = vector.broadcast %115 : vector<1x128xf32> to vector<48x128xf32>
    %117 = arith.addf %113, %116 : vector<48x128xf32>
    %cst_61 = arith.constant 5.000000e-01 : f32
    %118 = vector.broadcast %cst_61 : f32 to vector<48x128xf32>
    %119 = arith.mulf %118, %117 : vector<48x128xf32>
    %cst_62 = arith.constant 0.707106769 : f32
    %120 = vector.broadcast %cst_62 : f32 to vector<48x128xf32>
    %121 = arith.mulf %117, %120 : vector<48x128xf32>
    %cst_63 = arith.constant 0.000000e+00 : f32
    %122 = vector.broadcast %cst_63 : f32 to vector<48x128xf32>
    %123 = arith.cmpf oge, %121, %122 : vector<48x128xf32>
    %cst_64 = arith.constant 1.000000e+00 : f32
    %cst_65 = arith.constant -1.000000e+00 : f32
    %124 = vector.broadcast %cst_64 : f32 to vector<48x128xf32>
    %125 = vector.broadcast %cst_65 : f32 to vector<48x128xf32>
    %126 = arith.select %123, %124, %125 : vector<48x128xi1>, vector<48x128xf32>
    %127 = math.absf %121 : vector<48x128xf32>
    %cst_66 = arith.constant 0.327591091 : f32
    %128 = vector.broadcast %cst_66 : f32 to vector<48x128xf32>
    %129 = arith.mulf %128, %127 : vector<48x128xf32>
    %cst_67 = arith.constant 1.000000e+00 : f32
    %130 = vector.broadcast %cst_67 : f32 to vector<48x128xf32>
    %131 = arith.addf %130, %129 : vector<48x128xf32>
    %132 = tpu.reciprocal %131 {approx = true} : vector<48x128xf32> -> vector<48x128xf32>
    %cst_68 = arith.constant 1.06140542 : f32
    %133 = vector.broadcast %cst_68 : f32 to vector<48x128xf32>
    %134 = arith.mulf %133, %132 : vector<48x128xf32>
    %cst_69 = arith.constant -1.45315206 : f32
    %135 = vector.broadcast %cst_69 : f32 to vector<48x128xf32>
    %136 = arith.addf %134, %135 : vector<48x128xf32>
    %137 = arith.mulf %136, %132 : vector<48x128xf32>
    %cst_70 = arith.constant 1.42141378 : f32
    %138 = vector.broadcast %cst_70 : f32 to vector<48x128xf32>
    %139 = arith.addf %137, %138 : vector<48x128xf32>
    %140 = arith.mulf %139, %132 : vector<48x128xf32>
    %cst_71 = arith.constant -0.284496725 : f32
    %141 = vector.broadcast %cst_71 : f32 to vector<48x128xf32>
    %142 = arith.addf %140, %141 : vector<48x128xf32>
    %143 = arith.mulf %142, %132 : vector<48x128xf32>
    %cst_72 = arith.constant 0.254829586 : f32
    %144 = vector.broadcast %cst_72 : f32 to vector<48x128xf32>
    %145 = arith.addf %143, %144 : vector<48x128xf32>
    %146 = arith.mulf %145, %132 : vector<48x128xf32>
    %cst_73 = arith.constant 0.000000e+00 : f32
    %147 = vector.broadcast %cst_73 : f32 to vector<48x128xf32>
    %148 = arith.subf %147, %127 : vector<48x128xf32>
    %149 = arith.mulf %148, %127 : vector<48x128xf32>
    %150 = math.exp %149 : vector<48x128xf32>
    %151 = arith.mulf %146, %150 : vector<48x128xf32>
    %cst_74 = arith.constant 1.000000e+00 : f32
    %152 = vector.broadcast %cst_74 : f32 to vector<48x128xf32>
    %153 = arith.subf %152, %151 : vector<48x128xf32>
    %154 = arith.mulf %126, %153 : vector<48x128xf32>
    %cst_75 = arith.constant 1.000000e+00 : f32
    %155 = vector.broadcast %cst_75 : f32 to vector<48x128xf32>
    %156 = arith.addf %155, %154 : vector<48x128xf32>
    %157 = arith.mulf %119, %156 : vector<48x128xf32>
    %c0_76 = arith.constant 0 : index
    %c0_77 = arith.constant 0 : index
    %c0_78 = arith.constant 0 : index
    %158 = vector.load %arg16[%c0_76, %c0_77, %c0_78] : memref<2x128x32xf32, #tpu.memory_space<vmem>>, vector<1x128x32xf32>
    %159 = vector.shape_cast %158 : vector<1x128x32xf32> to vector<128x32xf32>
    %cst_79 = arith.constant dense<0.000000e+00> : vector<48x32xf32>
    %160 = tpu.matmul %157, %159, %cst_79 {dimension_numbers = #tpu.dot_dimension_numbers<[1], [0], [0], [1], [0, 0, 1, 1], [], []>} : vector<48x128xf32>, vector<128x32xf32>, vector<48x32xf32> -> vector<48x32xf32>
    %161 = arith.addf %84, %160 : vector<48x32xf32>
    %c0_80 = arith.constant 0 : index
    %c0_81 = arith.constant 0 : index
    %c0_82 = arith.constant 0 : index
    %162 = vector.load %arg17[%c0_80, %c0_81, %c0_82] : memref<2x1x32xf32, #tpu.memory_space<vmem>>, vector<1x1x32xf32>
    %163 = vector.shape_cast %162 : vector<1x1x32xf32> to vector<1x32xf32>
    %164 = vector.broadcast %163 : vector<1x32xf32> to vector<48x32xf32>
    %165 = arith.addf %161, %164 : vector<48x32xf32>
    %c1 = arith.constant 1 : index
    %c0_83 = arith.constant 0 : index
    %c0_84 = arith.constant 0 : index
    %166 = vector.load %arg6[%c1, %c0_83, %c0_84] : memref<2x1x32xf32, #tpu.memory_space<vmem>>, vector<1x1x32xf32>
    %167 = vector.shape_cast %166 : vector<1x1x32xf32> to vector<1x32xf32>
    %c1_85 = arith.constant 1 : index
    %c0_86 = arith.constant 0 : index
    %c0_87 = arith.constant 0 : index
    %168 = vector.load %arg7[%c1_85, %c0_86, %c0_87] : memref<2x1x32xf32, #tpu.memory_space<vmem>>, vector<1x1x32xf32>
    %169 = vector.shape_cast %168 : vector<1x1x32xf32> to vector<1x32xf32>
    %cst_88 = arith.constant dense<0.000000e+00> : vector<48xf32>
    %170 = vector.multi_reduction <add>, %165, %cst_88 [1] : vector<48x32xf32> to vector<48xf32>
    %171 = vector.shape_cast %170 : vector<48xf32> to vector<48x1xf32>
    %cst_89 = arith.constant 3.200000e+01 : f32
    %172 = vector.broadcast %cst_89 : f32 to vector<48x1xf32>
    %173 = arith.divf %171, %172 : vector<48x1xf32>
    %174 = vector.broadcast %173 : vector<48x1xf32> to vector<48x32xf32>
    %175 = arith.subf %165, %174 : vector<48x32xf32>
    %176 = arith.mulf %175, %175 : vector<48x32xf32>
    %cst_90 = arith.constant dense<0.000000e+00> : vector<48xf32>
    %177 = vector.multi_reduction <add>, %176, %cst_90 [1] : vector<48x32xf32> to vector<48xf32>
    %178 = vector.shape_cast %177 : vector<48xf32> to vector<48x1xf32>
    %cst_91 = arith.constant 3.200000e+01 : f32
    %179 = vector.broadcast %cst_91 : f32 to vector<48x1xf32>
    %180 = arith.divf %178, %179 : vector<48x1xf32>
    %181 = vector.broadcast %173 : vector<48x1xf32> to vector<48x32xf32>
    %182 = arith.subf %165, %181 : vector<48x32xf32>
    %cst_92 = arith.constant 9.99999996E-13 : f32
    %183 = vector.broadcast %cst_92 : f32 to vector<48x1xf32>
    %184 = arith.addf %180, %183 : vector<48x1xf32>
    %185 = math.rsqrt %184 : vector<48x1xf32>
    %186 = vector.broadcast %185 : vector<48x1xf32> to vector<48x32xf32>
    %187 = arith.mulf %182, %186 : vector<48x32xf32>
    %188 = vector.broadcast %167 : vector<1x32xf32> to vector<48x32xf32>
    %189 = arith.mulf %187, %188 : vector<48x32xf32>
    %190 = vector.broadcast %169 : vector<1x32xf32> to vector<48x32xf32>
    %191 = arith.addf %189, %190 : vector<48x32xf32>
    %c1_93 = arith.constant 1 : index
    %c0_94 = arith.constant 0 : index
    %c0_95 = arith.constant 0 : index
    %192 = vector.load %arg8[%c1_93, %c0_94, %c0_95] : memref<2x32x96xf32, #tpu.memory_space<vmem>>, vector<1x32x96xf32>
    %193 = vector.shape_cast %192 : vector<1x32x96xf32> to vector<32x96xf32>
    %cst_96 = arith.constant dense<0.000000e+00> : vector<48x96xf32>
    %194 = tpu.matmul %191, %193, %cst_96 {dimension_numbers = #tpu.dot_dimension_numbers<[1], [0], [0], [1], [0, 0, 1, 1], [], []>} : vector<48x32xf32>, vector<32x96xf32>, vector<48x96xf32> -> vector<48x96xf32>
    %c1_97 = arith.constant 1 : index
    %c0_98 = arith.constant 0 : index
    %c0_99 = arith.constant 0 : index
    %195 = vector.load %arg9[%c1_97, %c0_98, %c0_99] : memref<2x1x96xf32, #tpu.memory_space<vmem>>, vector<1x1x96xf32>
    %196 = vector.shape_cast %195 : vector<1x1x96xf32> to vector<1x96xf32>
    %197 = vector.broadcast %196 : vector<1x96xf32> to vector<48x96xf32>
    %198 = arith.addf %194, %197 : vector<48x96xf32>
    %199 = vector.extract_strided_slice %198 {offsets = [0, 0], sizes = [48, 16], strides = [1, 1]} : vector<48x96xf32> to vector<48x16xf32>
    %200 = vector.extract_strided_slice %198 {offsets = [0, 32], sizes = [48, 16], strides = [1, 1]} : vector<48x96xf32> to vector<48x16xf32>
    %201 = vector.extract_strided_slice %198 {offsets = [0, 64], sizes = [48, 16], strides = [1, 1]} : vector<48x96xf32> to vector<48x16xf32>
    %cst_100 = arith.constant dense<0.000000e+00> : vector<48x48xf32>
    %202 = tpu.matmul %199, %200, %cst_100 {dimension_numbers = #tpu.dot_dimension_numbers<[1], [1], [0], [0], [0, 0, 1, 0], [], []>} : vector<48x16xf32>, vector<48x16xf32>, vector<48x48xf32> -> vector<48x48xf32>
    %cst_101 = arith.constant 2.500000e-01 : f32
    %203 = vector.broadcast %cst_101 : f32 to vector<48x48xf32>
    %204 = arith.mulf %202, %203 : vector<48x48xf32>
    %205 = arith.addf %204, %6 : vector<48x48xf32>
    %cst_102 = arith.constant dense<0xFF800000> : vector<48xf32>
    %206 = vector.multi_reduction <maximumf>, %205, %cst_102 [1] : vector<48x48xf32> to vector<48xf32>
    %207 = vector.shape_cast %206 : vector<48xf32> to vector<48x1xf32>
    %208 = vector.broadcast %207 : vector<48x1xf32> to vector<48x48xf32>
    %209 = arith.subf %205, %208 : vector<48x48xf32>
    %210 = math.exp %209 : vector<48x48xf32>
    %cst_103 = arith.constant dense<0.000000e+00> : vector<48xf32>
    %211 = vector.multi_reduction <add>, %210, %cst_103 [1] : vector<48x48xf32> to vector<48xf32>
    %212 = vector.shape_cast %211 : vector<48xf32> to vector<48x1xf32>
    %213 = tpu.reciprocal %212 {approx = true} : vector<48x1xf32> -> vector<48x1xf32>
    %214 = vector.broadcast %213 : vector<48x1xf32> to vector<48x48xf32>
    %215 = arith.mulf %210, %214 : vector<48x48xf32>
    %cst_104 = arith.constant dense<0.000000e+00> : vector<48x16xf32>
    %216 = tpu.matmul %215, %201, %cst_104 {dimension_numbers = #tpu.dot_dimension_numbers<[1], [0], [0], [1], [0, 0, 1, 1], [], []>} : vector<48x48xf32>, vector<48x16xf32>, vector<48x16xf32> -> vector<48x16xf32>
    %217 = vector.extract_strided_slice %198 {offsets = [0, 16], sizes = [48, 16], strides = [1, 1]} : vector<48x96xf32> to vector<48x16xf32>
    %218 = vector.extract_strided_slice %198 {offsets = [0, 48], sizes = [48, 16], strides = [1, 1]} : vector<48x96xf32> to vector<48x16xf32>
    %219 = vector.extract_strided_slice %198 {offsets = [0, 80], sizes = [48, 16], strides = [1, 1]} : vector<48x96xf32> to vector<48x16xf32>
    %cst_105 = arith.constant dense<0.000000e+00> : vector<48x48xf32>
    %220 = tpu.matmul %217, %218, %cst_105 {dimension_numbers = #tpu.dot_dimension_numbers<[1], [1], [0], [0], [0, 0, 1, 0], [], []>} : vector<48x16xf32>, vector<48x16xf32>, vector<48x48xf32> -> vector<48x48xf32>
    %cst_106 = arith.constant 2.500000e-01 : f32
    %221 = vector.broadcast %cst_106 : f32 to vector<48x48xf32>
    %222 = arith.mulf %220, %221 : vector<48x48xf32>
    %223 = arith.addf %222, %6 : vector<48x48xf32>
    %cst_107 = arith.constant dense<0xFF800000> : vector<48xf32>
    %224 = vector.multi_reduction <maximumf>, %223, %cst_107 [1] : vector<48x48xf32> to vector<48xf32>
    %225 = vector.shape_cast %224 : vector<48xf32> to vector<48x1xf32>
    %226 = vector.broadcast %225 : vector<48x1xf32> to vector<48x48xf32>
    %227 = arith.subf %223, %226 : vector<48x48xf32>
    %228 = math.exp %227 : vector<48x48xf32>
    %cst_108 = arith.constant dense<0.000000e+00> : vector<48xf32>
    %229 = vector.multi_reduction <add>, %228, %cst_108 [1] : vector<48x48xf32> to vector<48xf32>
    %230 = vector.shape_cast %229 : vector<48xf32> to vector<48x1xf32>
    %231 = tpu.reciprocal %230 {approx = true} : vector<48x1xf32> -> vector<48x1xf32>
    %232 = vector.broadcast %231 : vector<48x1xf32> to vector<48x48xf32>
    %233 = arith.mulf %228, %232 : vector<48x48xf32>
    %cst_109 = arith.constant dense<0.000000e+00> : vector<48x16xf32>
    %234 = tpu.matmul %233, %219, %cst_109 {dimension_numbers = #tpu.dot_dimension_numbers<[1], [0], [0], [1], [0, 0, 1, 1], [], []>} : vector<48x48xf32>, vector<48x16xf32>, vector<48x16xf32> -> vector<48x16xf32>
    %235 = tpu.concatenate %216, %234 in 1 : vector<48x16xf32>, vector<48x16xf32> -> vector<48x32xf32>
    %c1_110 = arith.constant 1 : index
    %c0_111 = arith.constant 0 : index
    %c0_112 = arith.constant 0 : index
    %236 = vector.load %arg10[%c1_110, %c0_111, %c0_112] : memref<2x32x32xf32, #tpu.memory_space<vmem>>, vector<1x32x32xf32>
    %237 = vector.shape_cast %236 : vector<1x32x32xf32> to vector<32x32xf32>
    %cst_113 = arith.constant dense<0.000000e+00> : vector<48x32xf32>
    %238 = tpu.matmul %235, %237, %cst_113 {dimension_numbers = #tpu.dot_dimension_numbers<[1], [0], [0], [1], [0, 0, 1, 1], [], []>} : vector<48x32xf32>, vector<32x32xf32>, vector<48x32xf32> -> vector<48x32xf32>
    %239 = arith.addf %165, %238 : vector<48x32xf32>
    %c1_114 = arith.constant 1 : index
    %c0_115 = arith.constant 0 : index
    %c0_116 = arith.constant 0 : index
    %240 = vector.load %arg11[%c1_114, %c0_115, %c0_116] : memref<2x1x32xf32, #tpu.memory_space<vmem>>, vector<1x1x32xf32>
    %241 = vector.shape_cast %240 : vector<1x1x32xf32> to vector<1x32xf32>
    %242 = vector.broadcast %241 : vector<1x32xf32> to vector<48x32xf32>
    %243 = arith.addf %239, %242 : vector<48x32xf32>
    %c1_117 = arith.constant 1 : index
    %c0_118 = arith.constant 0 : index
    %c0_119 = arith.constant 0 : index
    %244 = vector.load %arg12[%c1_117, %c0_118, %c0_119] : memref<2x1x32xf32, #tpu.memory_space<vmem>>, vector<1x1x32xf32>
    %245 = vector.shape_cast %244 : vector<1x1x32xf32> to vector<1x32xf32>
    %c1_120 = arith.constant 1 : index
    %c0_121 = arith.constant 0 : index
    %c0_122 = arith.constant 0 : index
    %246 = vector.load %arg13[%c1_120, %c0_121, %c0_122] : memref<2x1x32xf32, #tpu.memory_space<vmem>>, vector<1x1x32xf32>
    %247 = vector.shape_cast %246 : vector<1x1x32xf32> to vector<1x32xf32>
    %cst_123 = arith.constant dense<0.000000e+00> : vector<48xf32>
    %248 = vector.multi_reduction <add>, %243, %cst_123 [1] : vector<48x32xf32> to vector<48xf32>
    %249 = vector.shape_cast %248 : vector<48xf32> to vector<48x1xf32>
    %cst_124 = arith.constant 3.200000e+01 : f32
    %250 = vector.broadcast %cst_124 : f32 to vector<48x1xf32>
    %251 = arith.divf %249, %250 : vector<48x1xf32>
    %252 = vector.broadcast %251 : vector<48x1xf32> to vector<48x32xf32>
    %253 = arith.subf %243, %252 : vector<48x32xf32>
    %254 = arith.mulf %253, %253 : vector<48x32xf32>
    %cst_125 = arith.constant dense<0.000000e+00> : vector<48xf32>
    %255 = vector.multi_reduction <add>, %254, %cst_125 [1] : vector<48x32xf32> to vector<48xf32>
    %256 = vector.shape_cast %255 : vector<48xf32> to vector<48x1xf32>
    %cst_126 = arith.constant 3.200000e+01 : f32
    %257 = vector.broadcast %cst_126 : f32 to vector<48x1xf32>
    %258 = arith.divf %256, %257 : vector<48x1xf32>
    %259 = vector.broadcast %251 : vector<48x1xf32> to vector<48x32xf32>
    %260 = arith.subf %243, %259 : vector<48x32xf32>
    %cst_127 = arith.constant 9.99999996E-13 : f32
    %261 = vector.broadcast %cst_127 : f32 to vector<48x1xf32>
    %262 = arith.addf %258, %261 : vector<48x1xf32>
    %263 = math.rsqrt %262 : vector<48x1xf32>
    %264 = vector.broadcast %263 : vector<48x1xf32> to vector<48x32xf32>
    %265 = arith.mulf %260, %264 : vector<48x32xf32>
    %266 = vector.broadcast %245 : vector<1x32xf32> to vector<48x32xf32>
    %267 = arith.mulf %265, %266 : vector<48x32xf32>
    %268 = vector.broadcast %247 : vector<1x32xf32> to vector<48x32xf32>
    %269 = arith.addf %267, %268 : vector<48x32xf32>
    %c1_128 = arith.constant 1 : index
    %c0_129 = arith.constant 0 : index
    %c0_130 = arith.constant 0 : index
    %270 = vector.load %arg14[%c1_128, %c0_129, %c0_130] : memref<2x32x128xf32, #tpu.memory_space<vmem>>, vector<1x32x128xf32>
    %271 = vector.shape_cast %270 : vector<1x32x128xf32> to vector<32x128xf32>
    %cst_131 = arith.constant dense<0.000000e+00> : vector<48x128xf32>
    %272 = tpu.matmul %269, %271, %cst_131 {dimension_numbers = #tpu.dot_dimension_numbers<[1], [0], [0], [1], [0, 0, 1, 1], [], []>} : vector<48x32xf32>, vector<32x128xf32>, vector<48x128xf32> -> vector<48x128xf32>
    %c1_132 = arith.constant 1 : index
    %c0_133 = arith.constant 0 : index
    %c0_134 = arith.constant 0 : index
    %273 = vector.load %arg15[%c1_132, %c0_133, %c0_134] : memref<2x1x128xf32, #tpu.memory_space<vmem>>, vector<1x1x128xf32>
    %274 = vector.shape_cast %273 : vector<1x1x128xf32> to vector<1x128xf32>
    %275 = vector.broadcast %274 : vector<1x128xf32> to vector<48x128xf32>
    %276 = arith.addf %272, %275 : vector<48x128xf32>
    %cst_135 = arith.constant 5.000000e-01 : f32
    %277 = vector.broadcast %cst_135 : f32 to vector<48x128xf32>
    %278 = arith.mulf %277, %276 : vector<48x128xf32>
    %cst_136 = arith.constant 0.707106769 : f32
    %279 = vector.broadcast %cst_136 : f32 to vector<48x128xf32>
    %280 = arith.mulf %276, %279 : vector<48x128xf32>
    %cst_137 = arith.constant 0.000000e+00 : f32
    %281 = vector.broadcast %cst_137 : f32 to vector<48x128xf32>
    %282 = arith.cmpf oge, %280, %281 : vector<48x128xf32>
    %cst_138 = arith.constant 1.000000e+00 : f32
    %cst_139 = arith.constant -1.000000e+00 : f32
    %283 = vector.broadcast %cst_138 : f32 to vector<48x128xf32>
    %284 = vector.broadcast %cst_139 : f32 to vector<48x128xf32>
    %285 = arith.select %282, %283, %284 : vector<48x128xi1>, vector<48x128xf32>
    %286 = math.absf %280 : vector<48x128xf32>
    %cst_140 = arith.constant 0.327591091 : f32
    %287 = vector.broadcast %cst_140 : f32 to vector<48x128xf32>
    %288 = arith.mulf %287, %286 : vector<48x128xf32>
    %cst_141 = arith.constant 1.000000e+00 : f32
    %289 = vector.broadcast %cst_141 : f32 to vector<48x128xf32>
    %290 = arith.addf %289, %288 : vector<48x128xf32>
    %291 = tpu.reciprocal %290 {approx = true} : vector<48x128xf32> -> vector<48x128xf32>
    %cst_142 = arith.constant 1.06140542 : f32
    %292 = vector.broadcast %cst_142 : f32 to vector<48x128xf32>
    %293 = arith.mulf %292, %291 : vector<48x128xf32>
    %cst_143 = arith.constant -1.45315206 : f32
    %294 = vector.broadcast %cst_143 : f32 to vector<48x128xf32>
    %295 = arith.addf %293, %294 : vector<48x128xf32>
    %296 = arith.mulf %295, %291 : vector<48x128xf32>
    %cst_144 = arith.constant 1.42141378 : f32
    %297 = vector.broadcast %cst_144 : f32 to vector<48x128xf32>
    %298 = arith.addf %296, %297 : vector<48x128xf32>
    %299 = arith.mulf %298, %291 : vector<48x128xf32>
    %cst_145 = arith.constant -0.284496725 : f32
    %300 = vector.broadcast %cst_145 : f32 to vector<48x128xf32>
    %301 = arith.addf %299, %300 : vector<48x128xf32>
    %302 = arith.mulf %301, %291 : vector<48x128xf32>
    %cst_146 = arith.constant 0.254829586 : f32
    %303 = vector.broadcast %cst_146 : f32 to vector<48x128xf32>
    %304 = arith.addf %302, %303 : vector<48x128xf32>
    %305 = arith.mulf %304, %291 : vector<48x128xf32>
    %cst_147 = arith.constant 0.000000e+00 : f32
    %306 = vector.broadcast %cst_147 : f32 to vector<48x128xf32>
    %307 = arith.subf %306, %286 : vector<48x128xf32>
    %308 = arith.mulf %307, %286 : vector<48x128xf32>
    %309 = math.exp %308 : vector<48x128xf32>
    %310 = arith.mulf %305, %309 : vector<48x128xf32>
    %cst_148 = arith.constant 1.000000e+00 : f32
    %311 = vector.broadcast %cst_148 : f32 to vector<48x128xf32>
    %312 = arith.subf %311, %310 : vector<48x128xf32>
    %313 = arith.mulf %285, %312 : vector<48x128xf32>
    %cst_149 = arith.constant 1.000000e+00 : f32
    %314 = vector.broadcast %cst_149 : f32 to vector<48x128xf32>
    %315 = arith.addf %314, %313 : vector<48x128xf32>
    %316 = arith.mulf %278, %315 : vector<48x128xf32>
    %c1_150 = arith.constant 1 : index
    %c0_151 = arith.constant 0 : index
    %c0_152 = arith.constant 0 : index
    %317 = vector.load %arg16[%c1_150, %c0_151, %c0_152] : memref<2x128x32xf32, #tpu.memory_space<vmem>>, vector<1x128x32xf32>
    %318 = vector.shape_cast %317 : vector<1x128x32xf32> to vector<128x32xf32>
    %cst_153 = arith.constant dense<0.000000e+00> : vector<48x32xf32>
    %319 = tpu.matmul %316, %318, %cst_153 {dimension_numbers = #tpu.dot_dimension_numbers<[1], [0], [0], [1], [0, 0, 1, 1], [], []>} : vector<48x128xf32>, vector<128x32xf32>, vector<48x32xf32> -> vector<48x32xf32>
    %320 = arith.addf %243, %319 : vector<48x32xf32>
    %c1_154 = arith.constant 1 : index
    %c0_155 = arith.constant 0 : index
    %c0_156 = arith.constant 0 : index
    %321 = vector.load %arg17[%c1_154, %c0_155, %c0_156] : memref<2x1x32xf32, #tpu.memory_space<vmem>>, vector<1x1x32xf32>
    %322 = vector.shape_cast %321 : vector<1x1x32xf32> to vector<1x32xf32>
    %323 = vector.broadcast %322 : vector<1x32xf32> to vector<48x32xf32>
    %324 = arith.addf %320, %323 : vector<48x32xf32>
    %c0_157 = arith.constant 0 : index
    %c0_158 = arith.constant 0 : index
    %325 = vector.load %arg18[%c0_157, %c0_158] : memref<1x32xf32, #tpu.memory_space<vmem>>, vector<1x32xf32>
    %c0_159 = arith.constant 0 : index
    %c0_160 = arith.constant 0 : index
    %326 = vector.load %arg19[%c0_159, %c0_160] : memref<1x32xf32, #tpu.memory_space<vmem>>, vector<1x32xf32>
    %cst_161 = arith.constant dense<0.000000e+00> : vector<48xf32>
    %327 = vector.multi_reduction <add>, %324, %cst_161 [1] : vector<48x32xf32> to vector<48xf32>
    %328 = vector.shape_cast %327 : vector<48xf32> to vector<48x1xf32>
    %cst_162 = arith.constant 3.200000e+01 : f32
    %329 = vector.broadcast %cst_162 : f32 to vector<48x1xf32>
    %330 = arith.divf %328, %329 : vector<48x1xf32>
    %331 = vector.broadcast %330 : vector<48x1xf32> to vector<48x32xf32>
    %332 = arith.subf %324, %331 : vector<48x32xf32>
    %333 = arith.mulf %332, %332 : vector<48x32xf32>
    %cst_163 = arith.constant dense<0.000000e+00> : vector<48xf32>
    %334 = vector.multi_reduction <add>, %333, %cst_163 [1] : vector<48x32xf32> to vector<48xf32>
    %335 = vector.shape_cast %334 : vector<48xf32> to vector<48x1xf32>
    %cst_164 = arith.constant 3.200000e+01 : f32
    %336 = vector.broadcast %cst_164 : f32 to vector<48x1xf32>
    %337 = arith.divf %335, %336 : vector<48x1xf32>
    %338 = vector.broadcast %330 : vector<48x1xf32> to vector<48x32xf32>
    %339 = arith.subf %324, %338 : vector<48x32xf32>
    %cst_165 = arith.constant 9.99999996E-13 : f32
    %340 = vector.broadcast %cst_165 : f32 to vector<48x1xf32>
    %341 = arith.addf %337, %340 : vector<48x1xf32>
    %342 = math.rsqrt %341 : vector<48x1xf32>
    %343 = vector.broadcast %342 : vector<48x1xf32> to vector<48x32xf32>
    %344 = arith.mulf %339, %343 : vector<48x32xf32>
    %345 = vector.broadcast %325 : vector<1x32xf32> to vector<48x32xf32>
    %346 = arith.mulf %344, %345 : vector<48x32xf32>
    %347 = vector.broadcast %326 : vector<1x32xf32> to vector<48x32xf32>
    %348 = arith.addf %346, %347 : vector<48x32xf32>
    %c0_166 = arith.constant 0 : index
    %c0_167 = arith.constant 0 : index
    %349 = vector.load %arg5[%c0_166, %c0_167] : memref<2x48xf32, #tpu.memory_space<vmem>>, vector<2x48xf32>
    %cst_168 = arith.constant dense<0.000000e+00> : vector<2x32xf32>
    %350 = tpu.matmul %349, %348, %cst_168 {dimension_numbers = #tpu.dot_dimension_numbers<[1], [0], [0], [1], [0, 0, 1, 1], [], []>} : vector<2x48xf32>, vector<48x32xf32>, vector<2x32xf32> -> vector<2x32xf32>
    %c0_169 = arith.constant 0 : index
    %c0_170 = arith.constant 0 : index
    %c0_171 = arith.constant 0 : index
    %351 = vector.load %arg20[%c0_169, %c0_170, %c0_171] : memref<1x2x32xf32, #tpu.memory_space<vmem>>, vector<1x2x32xf32>
    %352 = vector.shape_cast %351 : vector<1x2x32xf32> to vector<2x32xf32>
    %353 = vector.shape_cast %350 : vector<2x32xf32> to vector<1x2x32xf32>
    tpu.vector_store %arg20[%c0_169, %c0_170, %c0_171], %353 {strides = array<i32>} : memref<1x2x32xf32, #tpu.memory_space<vmem>>, vector<1x2x32xf32>,
    return
  }
  func.func @transform_0(%arg0: i32) -> (i32, i32, i32) {
    %c0_i32 = arith.constant 0 : i32
    %c0_i32_0 = arith.constant 0 : i32
    %c0_i32_1 = arith.constant 0 : i32
    return %arg0, %c0_i32, %c0_i32_0 : i32, i32, i32
  }
  func.func @transform_1(%arg0: i32) -> (i32, i32) {
    %c0_i32 = arith.constant 0 : i32
    %c0_i32_0 = arith.constant 0 : i32
    %c0_i32_1 = arith.constant 0 : i32
    return %c0_i32, %c0_i32_0 : i32, i32
  }
  func.func @transform_2(%arg0: i32) -> (i32, i32) {
    %c0_i32 = arith.constant 0 : i32
    %c0_i32_0 = arith.constant 0 : i32
    %c0_i32_1 = arith.constant 0 : i32
    return %c0_i32, %c0_i32_0 : i32, i32
  }
  func.func @transform_3(%arg0: i32) -> (i32, i32) {
    %c0_i32 = arith.constant 0 : i32
    %c0_i32_0 = arith.constant 0 : i32
    %c0_i32_1 = arith.constant 0 : i32
    return %c0_i32, %c0_i32_0 : i32, i32
  }
  func.func @transform_4(%arg0: i32) -> (i32, i32) {
    %c0_i32 = arith.constant 0 : i32
    %c0_i32_0 = arith.constant 0 : i32
    %c0_i32_1 = arith.constant 0 : i32
    return %c0_i32, %c0_i32_0 : i32, i32
  }
  func.func @transform_5(%arg0: i32) -> (i32, i32, i32) {
    %c0_i32 = arith.constant 0 : i32
    %c0_i32_0 = arith.constant 0 : i32
    %c0_i32_1 = arith.constant 0 : i32
    %c0_i32_2 = arith.constant 0 : i32
    return %c0_i32, %c0_i32_0, %c0_i32_1 : i32, i32, i32
  }
  func.func @transform_6(%arg0: i32) -> (i32, i32, i32) {
    %c0_i32 = arith.constant 0 : i32
    %c0_i32_0 = arith.constant 0 : i32
    %c0_i32_1 = arith.constant 0 : i32
    %c0_i32_2 = arith.constant 0 : i32
    return %c0_i32, %c0_i32_0, %c0_i32_1 : i32, i32, i32
  }
  func.func @transform_7(%arg0: i32) -> (i32, i32, i32) {
    %c0_i32 = arith.constant 0 : i32
    %c0_i32_0 = arith.constant 0 : i32
    %c0_i32_1 = arith.constant 0 : i32
    %c0_i32_2 = arith.constant 0 : i32
    return %c0_i32, %c0_i32_0, %c0_i32_1 : i32, i32, i32
  }
  func.func @transform_8(%arg0: i32) -> (i32, i32, i32) {
    %c0_i32 = arith.constant 0 : i32
    %c0_i32_0 = arith.constant 0 : i32
    %c0_i32_1 = arith.constant 0 : i32
    %c0_i32_2 = arith.constant 0 : i32
    return %c0_i32, %c0_i32_0, %c0_i32_1 : i32, i32, i32
  }
  func.func @transform_9(%arg0: i32) -> (i32, i32, i32) {
    %c0_i32 = arith.constant 0 : i32
    %c0_i32_0 = arith.constant 0 : i32
    %c0_i32_1 = arith.constant 0 : i32
    %c0_i32_2 = arith.constant 0 : i32
    return %c0_i32, %c0_i32_0, %c0_i32_1 : i32, i32, i32
  }
  func.func @transform_10(%arg0: i32) -> (i32, i32, i32) {
    %c0_i32 = arith.constant 0 : i32
    %c0_i32_0 = arith.constant 0 : i32
    %c0_i32_1 = arith.constant 0 : i32
    %c0_i32_2 = arith.constant 0 : i32
    return %c0_i32, %c0_i32_0, %c0_i32_1 : i32, i32, i32
  }
  func.func @transform_11(%arg0: i32) -> (i32, i32, i32) {
    %c0_i32 = arith.constant 0 : i32
    %c0_i32_0 = arith.constant 0 : i32
    %c0_i32_1 = arith.constant 0 : i32
    %c0_i32_2 = arith.constant 0 : i32
    return %c0_i32, %c0_i32_0, %c0_i32_1 : i32, i32, i32
  }
  func.func @transform_12(%arg0: i32) -> (i32, i32, i32) {
    %c0_i32 = arith.constant 0 : i32
    %c0_i32_0 = arith.constant 0 : i32
    %c0_i32_1 = arith.constant 0 : i32
    %c0_i32_2 = arith.constant 0 : i32
    return %c0_i32, %c0_i32_0, %c0_i32_1 : i32, i32, i32
  }
  func.func @transform_13(%arg0: i32) -> (i32, i32, i32) {
    %c0_i32 = arith.constant 0 : i32
    %c0_i32_0 = arith.constant 0 : i32
    %c0_i32_1 = arith.constant 0 : i32
    %c0_i32_2 = arith.constant 0 : i32
    return %c0_i32, %c0_i32_0, %c0_i32_1 : i32, i32, i32
  }
  func.func @transform_14(%arg0: i32) -> (i32, i32, i32) {
    %c0_i32 = arith.constant 0 : i32
    %c0_i32_0 = arith.constant 0 : i32
    %c0_i32_1 = arith.constant 0 : i32
    %c0_i32_2 = arith.constant 0 : i32
    return %c0_i32, %c0_i32_0, %c0_i32_1 : i32, i32, i32
  }
  func.func @transform_15(%arg0: i32) -> (i32, i32, i32) {
    %c0_i32 = arith.constant 0 : i32
    %c0_i32_0 = arith.constant 0 : i32
    %c0_i32_1 = arith.constant 0 : i32
    %c0_i32_2 = arith.constant 0 : i32
    return %c0_i32, %c0_i32_0, %c0_i32_1 : i32, i32, i32
  }
  func.func @transform_16(%arg0: i32) -> (i32, i32, i32) {
    %c0_i32 = arith.constant 0 : i32
    %c0_i32_0 = arith.constant 0 : i32
    %c0_i32_1 = arith.constant 0 : i32
    %c0_i32_2 = arith.constant 0 : i32
    return %c0_i32, %c0_i32_0, %c0_i32_1 : i32, i32, i32
  }
  func.func @transform_17(%arg0: i32) -> (i32, i32) {
    %c0_i32 = arith.constant 0 : i32
    %c0_i32_0 = arith.constant 0 : i32
    %c0_i32_1 = arith.constant 0 : i32
    return %c0_i32, %c0_i32_0 : i32, i32
  }
  func.func @transform_18(%arg0: i32) -> (i32, i32) {
    %c0_i32 = arith.constant 0 : i32
    %c0_i32_0 = arith.constant 0 : i32
    %c0_i32_1 = arith.constant 0 : i32
    return %c0_i32, %c0_i32_0 : i32, i32
  }
  func.func @transform_19(%arg0: i32) -> (i32, i32, i32) {
    %c0_i32 = arith.constant 0 : i32
    %c0_i32_0 = arith.constant 0 : i32
    %c0_i32_1 = arith.constant 0 : i32
    return %arg0, %c0_i32, %c0_i32_0 : i32, i32, i32
  }
}

</mosaic_0001>

<llo_original>
// kernel: get_audio_features.1
$region0: #{get_audio_features.1}
  #allocation0 [shape = 'u32[]', space=smem, size = 0x4, offset = 0x4, fixed_abs, tag = 'smem constant byte address 0x4 - core index']
  #allocation1 [shape = 'u32[144,128]{1,0:T(1,128)}', space=vmem, size = 0x12000, scoped, tag = 'internal scratch']
  %s0 = inlined_call_operand.vmem [shape: f32[1,48,16], index: 0, kind: input, shape index: {}]
  %s1 = inlined_call_operand.vmem [shape: f32[16,32], index: 1, kind: input, shape index: {}]
  %s2 = inlined_call_operand.vmem [shape: f32[48,32], index: 2, kind: input, shape index: {}]
  %s3 = inlined_call_operand.vmem [shape: f32[48,48], index: 3, kind: input, shape index: {}]
  %s4 = inlined_call_operand.vmem [shape: f32[2,48], index: 4, kind: input, shape index: {}]
  %s5 = inlined_call_operand.vmem [shape: f32[2,1,32], index: 5, kind: input, shape index: {}]
  %s6 = inlined_call_operand.vmem [shape: f32[2,1,32], index: 6, kind: input, shape index: {}]
  %s7 = inlined_call_operand.vmem [shape: f32[2,32,96], index: 7, kind: input, shape index: {}]
  %s8 = inlined_call_operand.vmem [shape: f32[2,1,96], index: 8, kind: input, shape index: {}]
  %s9 = inlined_call_operand.vmem [shape: f32[2,32,32], index: 9, kind: input, shape index: {}]
  %s10 = inlined_call_operand.vmem [shape: f32[2,1,32], index: 10, kind: input, shape index: {}]
  %s11 = inlined_call_operand.vmem [shape: f32[2,1,32], index: 11, kind: input, shape index: {}]
  %s12 = inlined_call_operand.vmem [shape: f32[2,1,32], index: 12, kind: input, shape index: {}]
  %s13 = inlined_call_operand.vmem [shape: f32[2,32,128], index: 13, kind: input, shape index: {}]
  %s14 = inlined_call_operand.vmem [shape: f32[2,1,128], index: 14, kind: input, shape index: {}]
  %s15 = inlined_call_operand.vmem [shape: f32[2,128,32], index: 15, kind: input, shape index: {}]
  %s16 = inlined_call_operand.vmem [shape: f32[2,1,32], index: 16, kind: input, shape index: {}]
  %s17 = inlined_call_operand.vmem [shape: f32[1,32], index: 17, kind: input, shape index: {}]
  %s18 = inlined_call_operand.vmem [shape: f32[1,32], index: 18, kind: input, shape index: {}]
  %s19 = inlined_call_operand.hbm [shape: f32[1,2,32], index: 19, kind: output, shape index: {}]
  %s20 = sld [smem:[#allocation0]]
  $region86: #{get_audio_features.1} parent=0
    _
  %s22 = ssub.s32 1, %s20
  %s23 = scalar_select 0, %s22, %s20
  $region1: #{get_audio_features.1} parent=0
    #allocation2 [shape = 'u8[1024]{0}', space=vmem, size = 0x400, scoped, tag = 'output window, operand 0, single buffered']
    #allocation3 [shape = 's32[1]{0}', space=sflag, size = 0x4, scoped, tag = 'scoped memory for get_audio_features.1']
    %24 = vsyncpa [#allocation3], 0
    // Predicated region
    $region2: #{get_audio_features.1} parent=1 // pred_check
      _
    $region3: #{get_audio_features.1} parent=1 // pred_check_branch
      %26 = sbr.rel (0) target = $region5
    $region4: #{get_audio_features.1} parent=1 // pred_region
      _
    $region5: #{get_audio_features.1} parent=1 // pred_fallthru
      _
    // Predicated region
    $region6: #{get_audio_features.1} parent=1 // pred_check
      _
    $region7: #{get_audio_features.1} parent=1 // pred_check_branch
      %28 = sbr.rel (0) target = $region9
    $region8: #{get_audio_features.1} parent=1 // pred_region
      _
    $region9: #{get_audio_features.1} parent=1 // pred_fallthru
      _
    // Predicated region
    $region10: #{get_audio_features.1} parent=1 // pred_check
      _
    $region11: #{get_audio_features.1} parent=1 // pred_check_branch
      %30 = sbr.rel (0) target = $region13
    $region12: #{get_audio_features.1} parent=1 // pred_region
      _
    $region13: #{get_audio_features.1} parent=1 // pred_fallthru
      _
    // Predicated region
    $region14: #{get_audio_features.1} parent=1 // pred_check
      _
    $region15: #{get_audio_features.1} parent=1 // pred_check_branch
      %32 = sbr.rel (0) target = $region17
    $region16: #{get_audio_features.1} parent=1 // pred_region
      _
    $region17: #{get_audio_features.1} parent=1 // pred_fallthru
      _
    // Predicated region
    $region18: #{get_audio_features.1} parent=1 // pred_check
      _
    $region19: #{get_audio_features.1} parent=1 // pred_check_branch
      %34 = sbr.rel (0) target = $region21
    $region20: #{get_audio_features.1} parent=1 // pred_region
      _
    $region21: #{get_audio_features.1} parent=1 // pred_fallthru
      _
    // Predicated region
    $region22: #{get_audio_features.1} parent=1 // pred_check
      _
    $region23: #{get_audio_features.1} parent=1 // pred_check_branch
      %36 = sbr.rel (0) target = $region25
    $region24: #{get_audio_features.1} parent=1 // pred_region
      _
    $region25: #{get_audio_features.1} parent=1 // pred_fallthru
      _
    // Predicated region
    $region26: #{get_audio_features.1} parent=1 // pred_check
      _
    $region27: #{get_audio_features.1} parent=1 // pred_check_branch
      %38 = sbr.rel (0) target = $region29
    $region28: #{get_audio_features.1} parent=1 // pred_region
      _
    $region29: #{get_audio_features.1} parent=1 // pred_fallthru
      _
    // Predicated region
    $region30: #{get_audio_features.1} parent=1 // pred_check
      _
    $region31: #{get_audio_features.1} parent=1 // pred_check_branch
      %40 = sbr.rel (0) target = $region33
    $region32: #{get_audio_features.1} parent=1 // pred_region
      _
    $region33: #{get_audio_features.1} parent=1 // pred_fallthru
      _
    // Predicated region
    $region34: #{get_audio_features.1} parent=1 // pred_check
      _
    $region35: #{get_audio_features.1} parent=1 // pred_check_branch
      %42 = sbr.rel (0) target = $region37
    $region36: #{get_audio_features.1} parent=1 // pred_region
      _
    $region37: #{get_audio_features.1} parent=1 // pred_fallthru
      _
    // Predicated region
    $region38: #{get_audio_features.1} parent=1 // pred_check
      _
    $region39: #{get_audio_features.1} parent=1 // pred_check_branch
      %44 = sbr.rel (0) target = $region41
    $region40: #{get_audio_features.1} parent=1 // pred_region
      _
    $region41: #{get_audio_features.1} parent=1 // pred_fallthru
      _
    // Predicated region
    $region42: #{get_audio_features.1} parent=1 // pred_check
      _
    $region43: #{get_audio_features.1} parent=1 // pred_check_branch
      %46 = sbr.rel (0) target = $region45
    $region44: #{get_audio_features.1} parent=1 // pred_region
      _
    $region45: #{get_audio_features.1} parent=1 // pred_fallthru
      _
    // Predicated region
    $region46: #{get_audio_features.1} parent=1 // pred_check
      _
    $region47: #{get_audio_features.1} parent=1 // pred_check_branch
      %48 = sbr.rel (0) target = $region49
    $region48: #{get_audio_features.1} parent=1 // pred_region
      _
    $region49: #{get_audio_features.1} parent=1 // pred_fallthru
      _
    // Predicated region
    $region50: #{get_audio_features.1} parent=1 // pred_check
      _
    $region51: #{get_audio_features.1} parent=1 // pred_check_branch
      %50 = sbr.rel (0) target = $region53
    $region52: #{get_audio_features.1} parent=1 // pred_region
      _
    $region53: #{get_audio_features.1} parent=1 // pred_fallthru
      _
    // Predicated region
    $region54: #{get_audio_features.1} parent=1 // pred_check
      _
    $region55: #{get_audio_features.1} parent=1 // pred_check_branch
      %52 = sbr.rel (0) target = $region57
    $region56: #{get_audio_features.1} parent=1 // pred_region
      _
    $region57: #{get_audio_features.1} parent=1 // pred_fallthru
      _
    // Predicated region
    $region58: #{get_audio_features.1} parent=1 // pred_check
      _
    $region59: #{get_audio_features.1} parent=1 // pred_check_branch
      %54 = sbr.rel (0) target = $region61
    $region60: #{get_audio_features.1} parent=1 // pred_region
      _
    $region61: #{get_audio_features.1} parent=1 // pred_fallthru
      _
    // Predicated region
    $region62: #{get_audio_features.1} parent=1 // pred_check
      _
    $region63: #{get_audio_features.1} parent=1 // pred_check_branch
      %56 = sbr.rel (0) target = $region65
    $region64: #{get_audio_features.1} parent=1 // pred_region
      _
    $region65: #{get_audio_features.1} parent=1 // pred_fallthru
      _
    // Predicated region
    $region66: #{get_audio_features.1} parent=1 // pred_check
      _
    $region67: #{get_audio_features.1} parent=1 // pred_check_branch
      %58 = sbr.rel (0) target = $region69
    $region68: #{get_audio_features.1} parent=1 // pred_region
      _
    $region69: #{get_audio_features.1} parent=1 // pred_fallthru
      _
    // Predicated region
    $region70: #{get_audio_features.1} parent=1 // pred_check
      _
    $region71: #{get_audio_features.1} parent=1 // pred_check_branch
      %60 = sbr.rel (0) target = $region73
    $region72: #{get_audio_features.1} parent=1 // pred_region
      _
    $region73: #{get_audio_features.1} parent=1 // pred_fallthru
      _
    // Predicated region
    $region74: #{get_audio_features.1} parent=1 // pred_check
      _
    $region75: #{get_audio_features.1} parent=1 // pred_check_branch
      %62 = sbr.rel (0) target = $region77
    $region76: #{get_audio_features.1} parent=1 // pred_region
      _
    $region77: #{get_audio_features.1} parent=1 // pred_fallthru
      _
    %v63 = vld [vmem:[%s0] sm:$0xff]
    %v64 = vld [vmem:[%s0 + $0x8] sm:$0xff]
    %v65 = vld [vmem:[%s0 + $0x10] sm:$0xff]
    %v66 = vld [vmem:[%s0 + $0x18] sm:$0xff]
    %v67 = vld [vmem:[%s0 + $0x20] sm:$0xff]
    %v68 = vld [vmem:[%s0 + $0x28] sm:$0xff]
    %v69 = vld [vmem:[%s1] sm:$0xff]
    %v70 = vld [vmem:[%s1 + $0x8] sm:$0xff]
    %v71 = vld [vmem:[%s2] sm:$0xff]
    %v72 = vld [vmem:[%s2 + $0x8] sm:$0xff]
    %v73 = vld [vmem:[%s2 + $0x10] sm:$0xff]
    %v74 = vld [vmem:[%s2 + $0x18] sm:$0xff]
    %v75 = vld [vmem:[%s2 + $0x20] sm:$0xff]
    %v76 = vld [vmem:[%s2 + $0x28] sm:$0xff]
    %vm77 = vcmask 130048
    %v79 = vsel %vm77, %v63, 0
    %v82 = vsel %vm77, %v64, 0
    %v85 = vsel %vm77, %v65, 0
    %v88 = vsel %vm77, %v66, 0
    %v91 = vsel %vm77, %v67, 0
    %v94 = vsel %vm77, %v68, 0
    %96 = vmatprep.subr.mxu0 0.0
    %97 = vmatpush1.msra.mxu0 %v69
    %98 = vmatprep.subr.mxu0 0.0
    %99 = vmatpush1.msra.mxu0 %v70
    %100 = vmatprep.subr.mxu0 0.0
    %101 = vmatpush1.msra.mxu0 0.0
    %102 = vmatprep.subr.mxu0 0.0
    %103 = vmatpush1.msra.mxu0 0.0
    %104 = vmatprep.subr.mxu0 0.0
    %105 = vmatpush1.msra.mxu0 0.0
    %106 = vmatprep.subr.mxu0 0.0
    %107 = vmatpush1.msra.mxu0 0.0
    %108 = vmatprep.subr.mxu0 0.0
    %109 = vmatpush1.msra.mxu0 0.0
    %110 = vmatprep.subr.mxu0 0.0
    %111 = vmatpush1.msra.mxu0 0.0
    %112 = vmatprep.subr.mxu0 0.0
    %113 = vmatpush1.msra.mxu0 0.0
    %114 = vmatprep.subr.mxu0 0.0
    %115 = vmatpush1.msra.mxu0 0.0
    %116 = vmatprep.subr.mxu0 0.0
    %117 = vmatpush1.msra.mxu0 0.0
    %118 = vmatprep.subr.mxu0 0.0
    %119 = vmatpush1.msra.mxu0 0.0
    %120 = vmatprep.subr.mxu0 0.0
    %121 = vmatpush1.msra.mxu0 0.0
    %122 = vmatprep.subr.mxu0 0.0
    %123 = vmatpush1.msra.mxu0 0.0
    %124 = vmatprep.subr.mxu0 0.0
    %125 = vmatpush1.msra.mxu0 0.0
    %126 = vmatprep.subr.mxu0 0.0
    %127 = vmatpush1.msra.mxu0 0.0
    %128 = vmatprep.subr.mxu0 0.0
    %129 = vmatpush1.msra.mxu0 0.0
    %130 = vmatprep.subr.mxu0 0.0
    %131 = vmatpush1.msra.mxu0 0.0
    %132 = vmatprep.subr.mxu0 0.0
    %133 = vmatpush1.msra.mxu0 0.0
    %134 = vmatprep.subr.mxu0 0.0
    %135 = vmatpush1.msra.mxu0 0.0
    %136 = vmatprep.subr.mxu0 0.0
    %137 = vmatpush1.msra.mxu0 0.0
    %138 = vmatprep.subr.mxu0 0.0
    %139 = vmatpush1.msra.mxu0 0.0
    %140 = vmatprep.subr.mxu0 0.0
    %141 = vmatpush1.msra.mxu0 0.0
    %142 = vmatprep.subr.mxu0 0.0
    %143 = vmatpush1.msra.mxu0 0.0
    %144 = vmatprep.subr.mxu0 0.0
    %145 = vmatpush1.msra.mxu0 0.0
    %146 = vmatprep.subr.mxu0 0.0
    %147 = vmatpush1.msra.mxu0 0.0
    %148 = vmatprep.subr.mxu0 0.0
    %149 = vmatpush1.msra.mxu0 0.0
    %150 = vmatprep.subr.mxu0 0.0
    %151 = vmatpush1.msra.mxu0 0.0
    %152 = vmatprep.subr.mxu0 0.0
    %153 = vmatpush1.msra.mxu0 0.0
    %154 = vmatprep.subr.mxu0 0.0
    %155 = vmatpush1.msra.mxu0 0.0
    %156 = vmatprep.subr.mxu0 0.0
    %157 = vmatpush1.msra.mxu0 0.0
    %158 = vmatprep.subr.mxu0 0.0
    %159 = vmatpush1.msra.mxu0 0.0
    %160 = vmatprep.mubr.f32.mxu0 0.0
    %161 = vmatmul.mubr.f32.gmra.mrb[0].mxu0 %v79
    %v162 = vpop.f32.mrb[0].mxu0
    %v163 = vadd.f32 %v71, %v162
    %v164 = vpop.f32.mrb[0].mxu0
    %165 = vmatprep.mubr.f32.mxu0 0.0
    %166 = vmatmul.mubr.f32.gmra.mrb[0].mxu0 %v82
    %v167 = vpop.f32.mrb[0].mxu0
    %v168 = vadd.f32 %v72, %v167
    %v169 = vpop.f32.mrb[0].mxu0
    %170 = vmatprep.mubr.f32.mxu0 0.0
    %171 = vmatmul.mubr.f32.gmra.mrb[0].mxu0 %v85
    %v172 = vpop.f32.mrb[0].mxu0
    %v173 = vadd.f32 %v73, %v172
    %v174 = vpop.f32.mrb[0].mxu0
    %175 = vmatprep.mubr.f32.mxu0 0.0
    %176 = vmatmul.mubr.f32.gmra.mrb[0].mxu0 %v88
    %v177 = vpop.f32.mrb[0].mxu0
    %v178 = vadd.f32 %v74, %v177
    %v179 = vpop.f32.mrb[0].mxu0
    %180 = vmatprep.mubr.f32.mxu0 0.0
    %181 = vmatmul.mubr.f32.gmra.mrb[0].mxu0 %v91
    %v182 = vpop.f32.mrb[0].mxu0
    %v183 = vadd.f32 %v75, %v182
    %v184 = vpop.f32.mrb[0].mxu0
    %185 = vmatprep.mubr.f32.mxu0 0.0
    %186 = vmatmul.mubr.f32.gmra.mrb[0].mxu0 %v94
    %v187 = vpop.f32.mrb[0].mxu0
    %v188 = vadd.f32 %v76, %v187
    %v189 = vpop.f32.mrb[0].mxu0
    %190 = vdwg.mxu0
    %v191 = vld [vmem:[%s3] sm:$0xff]
    %v192 = vld [vmem:[%s3 + $0x8] sm:$0xff]
    %v193 = vld [vmem:[%s3 + $0x10] sm:$0xff]
    %v194 = vld [vmem:[%s3 + $0x18] sm:$0xff]
    %v195 = vld [vmem:[%s3 + $0x20] sm:$0xff]
    %v196 = vld [vmem:[%s3 + $0x28] sm:$0xff]
    %v197 = vld [vmem:[%s5] sm:$0x1]
    %v198 = vld [vmem:[%s6] sm:$0x1]
    %vm199 = vcmask 261120
    %v200 = vsel %vm199, %v163, 0.0
    %201 = vadd.xlane.f32.xlu0 %v200
    %v202 = vpop.xlane.xlu0 %201
    %v203 = vsel %vm199, %v168, 0.0
    %204 = vadd.xlane.f32.xlu0 %v203
    %v205 = vpop.xlane.xlu0 %204
    %v206 = vsel %vm199, %v173, 0.0
    %207 = vadd.xlane.f32.xlu0 %v206
    %v208 = vpop.xlane.xlu0 %207
    %v209 = vsel %vm199, %v178, 0.0
    %210 = vadd.xlane.f32.xlu0 %v209
    %v211 = vpop.xlane.xlu0 %210
    %v212 = vsel %vm199, %v183, 0.0
    %213 = vadd.xlane.f32.xlu0 %v212
    %v214 = vpop.xlane.xlu0 %213
    %v215 = vsel %vm199, %v188, 0.0
    %216 = vadd.xlane.f32.xlu0 %v215
    %v217 = vpop.xlane.xlu0 %216
    %v218 = vrcp.pop 32.0
    %v219 = vmul.f32 %v202, %v218
    %v220 = vmul.f32 %v205, %v218
    %v221 = vmul.f32 %v208, %v218
    %v222 = vmul.f32 %v211, %v218
    %v223 = vmul.f32 %v214, %v218
    %v224 = vmul.f32 %v217, %v218
    %v225 = vsub.f32 %v163, %v219
    %v226 = vsub.f32 %v168, %v220
    %v227 = vsub.f32 %v173, %v221
    %v228 = vsub.f32 %v178, %v222
    %v229 = vsub.f32 %v183, %v223
    %v230 = vsub.f32 %v188, %v224
    %v231 = vmul.f32 %v225, %v225
    %v232 = vmul.f32 %v226, %v226
    %v233 = vmul.f32 %v227, %v227
    %v234 = vmul.f32 %v228, %v228
    %v235 = vmul.f32 %v229, %v229
    %v236 = vmul.f32 %v230, %v230
    %v237 = vsel %vm199, %v231, 0.0
    %238 = vadd.xlane.f32.xlu0 %v237
    %v239 = vpop.xlane.xlu0 %238
    %v240 = vsel %vm199, %v232, 0.0
    %241 = vadd.xlane.f32.xlu0 %v240
    %v242 = vpop.xlane.xlu0 %241
    %v243 = vsel %vm199, %v233, 0.0
    %244 = vadd.xlane.f32.xlu0 %v243
    %v245 = vpop.xlane.xlu0 %244
    %v246 = vsel %vm199, %v234, 0.0
    %247 = vadd.xlane.f32.xlu0 %v246
    %v248 = vpop.xlane.xlu0 %247
    %v249 = vsel %vm199, %v235, 0.0
    %250 = vadd.xlane.f32.xlu0 %v249
    %v251 = vpop.xlane.xlu0 %250
    %v252 = vsel %vm199, %v236, 0.0
    %253 = vadd.xlane.f32.xlu0 %v252
    %v254 = vpop.xlane.xlu0 %253
    %v255 = vmul.f32 %v239, %v218
    %v256 = vmul.f32 %v242, %v218
    %v257 = vmul.f32 %v245, %v218
    %v258 = vmul.f32 %v248, %v218
    %v259 = vmul.f32 %v251, %v218
    %v260 = vmul.f32 %v254, %v218
    %v261 = vadd.f32 %v255, 1e-12
    %v262 = vadd.f32 %v256, 1e-12
    %v263 = vadd.f32 %v257, 1e-12
    %v264 = vadd.f32 %v258, 1e-12
    %v265 = vadd.f32 %v259, 1e-12
    %v266 = vadd.f32 %v260, 1e-12
    %v267 = vrsqrt.pop %v261
    %v268 = vrsqrt.pop %v262
    %v269 = vrsqrt.pop %v263
    %v270 = vrsqrt.pop %v264
    %v271 = vrsqrt.pop %v265
    %v272 = vrsqrt.pop %v266
    %v273 = vmul.f32 %v225, %v267
    %v274 = vmul.f32 %v226, %v268
    %v275 = vmul.f32 %v227, %v269
    %v276 = vmul.f32 %v228, %v270
    %v277 = vmul.f32 %v229, %v271
    %v278 = vmul.f32 %v230, %v272
    %v280 = vlaneseq
    %v281 = vshrl.u32 %v280, 7
    %v282 = vsub.s32 0, %v281
    %v283 = vrot.slane %v197, %v282
    %v285 = vmul.f32 %v273, %v283
    %v286 = vmul.f32 %v274, %v283
    %v287 = vmul.f32 %v275, %v283
    %v288 = vmul.f32 %v276, %v283
    %v289 = vmul.f32 %v277, %v283
    %v290 = vmul.f32 %v278, %v283
    %v292 = vlaneseq
    %v293 = vshrl.u32 %v292, 7
    %v294 = vsub.s32 0, %v293
    %v295 = vrot.slane %v198, %v294
    %v297 = vadd.f32 %v285, %v295
    %v298 = vadd.f32 %v286, %v295
    %v299 = vadd.f32 %v287, %v295
    %v300 = vadd.f32 %v288, %v295
    %v301 = vadd.f32 %v289, %v295
    %v302 = vadd.f32 %v290, %v295
    %v303 = vld [vmem:[%s7] sm:$0xff]
    %v304 = vld [vmem:[%s7 + $0x8] sm:$0xff]
    %v305 = vld [vmem:[%s7 + $0x10] sm:$0xff]
    %v306 = vld [vmem:[%s7 + $0x18] sm:$0xff]
    %v307 = vld [vmem:[%s8] sm:$0x1]
    %v309 = vlaneseq
    %v310 = vshrl.u32 %v309, 7
    %v311 = vsub.s32 0, %v310
    %v312 = vrot.slane %v307, %v311
    %v315 = vsel %vm199, %v297, 0
    %v318 = vsel %vm199, %v298, 0
    %v321 = vsel %vm199, %v299, 0
    %v324 = vsel %vm199, %v300, 0
    %v327 = vsel %vm199, %v301, 0
    %v330 = vsel %vm199, %v302, 0
    %332 = vmatprep.subr.mxu0 0.0
    %333 = vmatpush1.msra.mxu0 %v303
    %334 = vmatprep.subr.mxu0 0.0
    %335 = vmatpush1.msra.mxu0 %v304
    %336 = vmatprep.subr.mxu0 0.0
    %337 = vmatpush1.msra.mxu0 %v305
    %338 = vmatprep.subr.mxu0 0.0
    %339 = vmatpush1.msra.mxu0 %v306
    %340 = vmatprep.subr.mxu0 0.0
    %341 = vmatpush1.msra.mxu0 0.0
    %342 = vmatprep.subr.mxu0 0.0
    %343 = vmatpush1.msra.mxu0 0.0
    %344 = vmatprep.subr.mxu0 0.0
    %345 = vmatpush1.msra.mxu0 0.0
    %346 = vmatprep.subr.mxu0 0.0
    %347 = vmatpush1.msra.mxu0 0.0
    %348 = vmatprep.subr.mxu0 0.0
    %349 = vmatpush1.msra.mxu0 0.0
    %350 = vmatprep.subr.mxu0 0.0
    %351 = vmatpush1.msra.mxu0 0.0
    %352 = vmatprep.subr.mxu0 0.0
    %353 = vmatpush1.msra.mxu0 0.0
    %354 = vmatprep.subr.mxu0 0.0
    %355 = vmatpush1.msra.mxu0 0.0
    %356 = vmatprep.subr.mxu0 0.0
    %357 = vmatpush1.msra.mxu0 0.0
    %358 = vmatprep.subr.mxu0 0.0
    %359 = vmatpush1.msra.mxu0 0.0
    %360 = vmatprep.subr.mxu0 0.0
    %361 = vmatpush1.msra.mxu0 0.0
    %362 = vmatprep.subr.mxu0 0.0
    %363 = vmatpush1.msra.mxu0 0.0
    %364 = vmatprep.subr.mxu0 0.0
    %365 = vmatpush1.msra.mxu0 0.0
    %366 = vmatprep.subr.mxu0 0.0
    %367 = vmatpush1.msra.mxu0 0.0
    %368 = vmatprep.subr.mxu0 0.0
    %369 = vmatpush1.msra.mxu0 0.0
    %370 = vmatprep.subr.mxu0 0.0
    %371 = vmatpush1.msra.mxu0 0.0
    %372 = vmatprep.subr.mxu0 0.0
    %373 = vmatpush1.msra.mxu0 0.0
    %374 = vmatprep.subr.mxu0 0.0
    %375 = vmatpush1.msra.mxu0 0.0
    %376 = vmatprep.subr.mxu0 0.0
    %377 = vmatpush1.msra.mxu0 0.0
    %378 = vmatprep.subr.mxu0 0.0
    %379 = vmatpush1.msra.mxu0 0.0
    %380 = vmatprep.subr.mxu0 0.0
    %381 = vmatpush1.msra.mxu0 0.0
    %382 = vmatprep.subr.mxu0 0.0
    %383 = vmatpush1.msra.mxu0 0.0
    %384 = vmatprep.subr.mxu0 0.0
    %385 = vmatpush1.msra.mxu0 0.0
    %386 = vmatprep.subr.mxu0 0.0
    %387 = vmatpush1.msra.mxu0 0.0
    %388 = vmatprep.subr.mxu0 0.0
    %389 = vmatpush1.msra.mxu0 0.0
    %390 = vmatprep.subr.mxu0 0.0
    %391 = vmatpush1.msra.mxu0 0.0
    %392 = vmatprep.subr.mxu0 0.0
    %393 = vmatpush1.msra.mxu0 0.0
    %394 = vmatprep.subr.mxu0 0.0
    %395 = vmatpush1.msra.mxu0 0.0
    %396 = vmatprep.mubr.f32.mxu0 0.0
    %397 = vmatmul.mubr.f32.gmra.mrb[0].mxu0 %v315
    %v398 = vpop.f32.mrb[0].mxu0
    %v399 = vadd.f32 %v312, %v398
    %v400 = vpop.f32.mrb[0].mxu0
    %401 = vmatprep.mubr.f32.mxu0 0.0
    %402 = vmatmul.mubr.f32.gmra.mrb[0].mxu0 %v318
    %v403 = vpop.f32.mrb[0].mxu0
    %v404 = vadd.f32 %v312, %v403
    %v405 = vpop.f32.mrb[0].mxu0
    %406 = vmatprep.mubr.f32.mxu0 0.0
    %407 = vmatmul.mubr.f32.gmra.mrb[0].mxu0 %v321
    %v408 = vpop.f32.mrb[0].mxu0
    %v409 = vadd.f32 %v312, %v408
    %v410 = vpop.f32.mrb[0].mxu0
    %411 = vmatprep.mubr.f32.mxu0 0.0
    %412 = vmatmul.mubr.f32.gmra.mrb[0].mxu0 %v324
    %v413 = vpop.f32.mrb[0].mxu0
    %v414 = vadd.f32 %v312, %v413
    %v415 = vpop.f32.mrb[0].mxu0
    %416 = vmatprep.mubr.f32.mxu0 0.0
    %417 = vmatmul.mubr.f32.gmra.mrb[0].mxu0 %v327
    %v418 = vpop.f32.mrb[0].mxu0
    %v419 = vadd.f32 %v312, %v418
    %v420 = vpop.f32.mrb[0].mxu0
    %421 = vmatprep.mubr.f32.mxu0 0.0
    %422 = vmatmul.mubr.f32.gmra.mrb[0].mxu0 %v330
    %v423 = vpop.f32.mrb[0].mxu0
    %v424 = vadd.f32 %v312, %v423
    %v425 = vpop.f32.mrb[0].mxu0
    %426 = vdwg.mxu0
    %433 = vrot.lane.b32.xlu0 %v399, 96
    %v434 = vpop.permute.xlu0 %433
    %435 = vrot.lane.b32.xlu0 %v404, 96
    %v436 = vpop.permute.xlu0 %435
    %437 = vrot.lane.b32.xlu0 %v409, 96
    %v438 = vpop.permute.xlu0 %437
    %439 = vrot.lane.b32.xlu0 %v414, 96
    %v440 = vpop.permute.xlu0 %439
    %441 = vrot.lane.b32.xlu0 %v419, 96
    %v442 = vpop.permute.xlu0 %441
    %443 = vrot.lane.b32.xlu0 %v424, 96
    %v444 = vpop.permute.xlu0 %443
    %v445 = vsel %vm77, %v399, 0
    %v447 = vsel %vm77, %v404, 0
    %v449 = vsel %vm77, %v409, 0
    %v451 = vsel %vm77, %v414, 0
    %v453 = vsel %vm77, %v419, 0
    %v455 = vsel %vm77, %v424, 0
    %v457 = vsel %vm77, %v434, 0
    %v459 = vsel %vm77, %v436, 0
    %v461 = vsel %vm77, %v438, 0
    %v463 = vsel %vm77, %v440, 0
    %v465 = vsel %vm77, %v442, 0
    %v467 = vsel %vm77, %v444, 0
    %469 = vmatprep.subr.mxu0 0.0
    %470 = vmatpush1.xpose.msra.mxu0 %v457
    %471 = vmatprep.subr.mxu0 0.0
    %472 = vmatpush1.xpose.msra.mxu0 %v459
    %473 = vmatprep.subr.mxu0 0.0
    %474 = vmatpush1.xpose.msra.mxu0 %v461
    %475 = vmatprep.subr.mxu0 0.0
    %476 = vmatpush1.xpose.msra.mxu0 %v463
    %477 = vmatprep.subr.mxu0 0.0
    %478 = vmatpush1.xpose.msra.mxu0 %v465
    %479 = vmatprep.subr.mxu0 0.0
    %480 = vmatpush1.xpose.msra.mxu0 %v467
    %481 = vmatprep.subr.mxu0 0.0
    %482 = vmatpush1.xpose.msra.mxu0 0.0
    %483 = vmatprep.subr.mxu0 0.0
    %484 = vmatpush1.xpose.msra.mxu0 0.0
    %485 = vmatprep.subr.mxu0 0.0
    %486 = vmatpush1.xpose.msra.mxu0 0.0
    %487 = vmatprep.subr.mxu0 0.0
    %488 = vmatpush1.xpose.msra.mxu0 0.0
    %489 = vmatprep.subr.mxu0 0.0
    %490 = vmatpush1.xpose.msra.mxu0 0.0
    %491 = vmatprep.subr.mxu0 0.0
    %492 = vmatpush1.xpose.msra.mxu0 0.0
    %493 = vmatprep.subr.mxu0 0.0
    %494 = vmatpush1.xpose.msra.mxu0 0.0
    %495 = vmatprep.subr.mxu0 0.0
    %496 = vmatpush1.xpose.msra.mxu0 0.0
    %497 = vmatprep.subr.mxu0 0.0
    %498 = vmatpush1.xpose.msra.mxu0 0.0
    %499 = vmatprep.subr.mxu0 0.0
    %500 = vmatpush1.xpose.msra.mxu0 0.0
    %501 = vmatprep.subr.mxu0 0.0
    %502 = vmatpush1.xpose.msra.mxu0 0.0
    %503 = vmatprep.subr.mxu0 0.0
    %504 = vmatpush1.xpose.msra.mxu0 0.0
    %505 = vmatprep.subr.mxu0 0.0
    %506 = vmatpush1.xpose.msra.mxu0 0.0
    %507 = vmatprep.subr.mxu0 0.0
    %508 = vmatpush1.xpose.msra.mxu0 0.0
    %509 = vmatprep.subr.mxu0 0.0
    %510 = vmatpush1.xpose.msra.mxu0 0.0
    %511 = vmatprep.subr.mxu0 0.0
    %512 = vmatpush1.xpose.msra.mxu0 0.0
    %513 = vmatprep.subr.mxu0 0.0
    %514 = vmatpush1.xpose.msra.mxu0 0.0
    %515 = vmatprep.subr.mxu0 0.0
    %516 = vmatpush1.xpose.msra.mxu0 0.0
    %517 = vmatprep.subr.mxu0 0.0
    %518 = vmatpush1.xpose.msra.mxu0 0.0
    %519 = vmatprep.subr.mxu0 0.0
    %520 = vmatpush1.xpose.msra.mxu0 0.0
    %521 = vmatprep.subr.mxu0 0.0
    %522 = vmatpush1.xpose.msra.mxu0 0.0
    %523 = vmatprep.subr.mxu0 0.0
    %524 = vmatpush1.xpose.msra.mxu0 0.0
    %525 = vmatprep.subr.mxu0 0.0
    %526 = vmatpush1.xpose.msra.mxu0 0.0
    %527 = vmatprep.subr.mxu0 0.0
    %528 = vmatpush1.xpose.msra.mxu0 0.0
    %529 = vmatprep.subr.mxu0 0.0
    %530 = vmatpush1.xpose.msra.mxu0 0.0
    %531 = vmatprep.subr.mxu0 0.0
    %532 = vmatpush1.xpose.msra.mxu0 0.0
    %533 = vmatprep.mubr.f32.mxu0 0.0
    %534 = vmatmul.mubr.f32.gmra.mrb[0].mxu0 %v445
    %v535 = vpop.f32.mrb[0].mxu0
    %v536 = vadd.f32 0.0, %v535
    %v537 = vpop.f32.mrb[0].mxu0
    %538 = vmatprep.mubr.f32.mxu0 0.0
    %539 = vmatmul.mubr.f32.gmra.mrb[0].mxu0 %v447
    %v540 = vpop.f32.mrb[0].mxu0
    %v541 = vadd.f32 0.0, %v540
    %v542 = vpop.f32.mrb[0].mxu0
    %543 = vmatprep.mubr.f32.mxu0 0.0
    %544 = vmatmul.mubr.f32.gmra.mrb[0].mxu0 %v449
    %v545 = vpop.f32.mrb[0].mxu0
    %v546 = vadd.f32 0.0, %v545
    %v547 = vpop.f32.mrb[0].mxu0
    %548 = vmatprep.mubr.f32.mxu0 0.0
    %549 = vmatmul.mubr.f32.gmra.mrb[0].mxu0 %v451
    %v550 = vpop.f32.mrb[0].mxu0
    %v551 = vadd.f32 0.0, %v550
    %v552 = vpop.f32.mrb[0].mxu0
    %553 = vmatprep.mubr.f32.mxu0 0.0
    %554 = vmatmul.mubr.f32.gmra.mrb[0].mxu0 %v453
    %v555 = vpop.f32.mrb[0].mxu0
    %v556 = vadd.f32 0.0, %v555
    %v557 = vpop.f32.mrb[0].mxu0
    %558 = vmatprep.mubr.f32.mxu0 0.0
    %559 = vmatmul.mubr.f32.gmra.mrb[0].mxu0 %v455
    %v560 = vpop.f32.mrb[0].mxu0
    %v561 = vadd.f32 0.0, %v560
    %v562 = vpop.f32.mrb[0].mxu0
    %563 = vdwg.mxu0
    %v564 = vmul.f32 %v536, 0.25
    %v565 = vmul.f32 %v541, 0.25
    %v566 = vmul.f32 %v546, 0.25
    %v567 = vmul.f32 %v551, 0.25
    %v568 = vmul.f32 %v556, 0.25
    %v569 = vmul.f32 %v561, 0.25
    %v570 = vadd.f32 %v564, %v191
    %v571 = vadd.f32 %v565, %v192
    %v572 = vadd.f32 %v566, %v193
    %v573 = vadd.f32 %v567, %v194
    %v574 = vadd.f32 %v568, %v195
    %v575 = vadd.f32 %v569, %v196
    %vm576 = vcmask 392192
    %v577 = vsel %vm576, %v570, -inf
    %578 = vmax.xlane.f32.xlu0 %v577
    %v579 = vpop.xlane.xlu0 %578
    %v580 = vsel %vm576, %v571, -inf
    %581 = vmax.xlane.f32.xlu0 %v580
    %v582 = vpop.xlane.xlu0 %581
    %v583 = vsel %vm576, %v572, -inf
    %584 = vmax.xlane.f32.xlu0 %v583
    %v585 = vpop.xlane.xlu0 %584
    %v586 = vsel %vm576, %v573, -inf
    %587 = vmax.xlane.f32.xlu0 %v586
    %v588 = vpop.xlane.xlu0 %587
    %v589 = vsel %vm576, %v574, -inf
    %590 = vmax.xlane.f32.xlu0 %v589
    %v591 = vpop.xlane.xlu0 %590
    %v592 = vsel %vm576, %v575, -inf
    %593 = vmax.xlane.f32.xlu0 %v592
    %v594 = vpop.xlane.xlu0 %593
    %v595 = vsub.f32 %v570, %v579
    %v596 = vsub.f32 %v571, %v582
    %v597 = vsub.f32 %v572, %v585
    %v598 = vsub.f32 %v573, %v588
    %v599 = vsub.f32 %v574, %v591
    %v600 = vsub.f32 %v575, %v594
    %v601 = vmul.f32 %v595, 1.442695
    %v602 = vpow.pop %v601
    %v603 = vmul.f32 %v596, 1.442695
    %v604 = vpow.pop %v603
    %v605 = vmul.f32 %v597, 1.442695
    %v606 = vpow.pop %v605
    %v607 = vmul.f32 %v598, 1.442695
    %v608 = vpow.pop %v607
    %v609 = vmul.f32 %v599, 1.442695
    %v610 = vpow.pop %v609
    %v611 = vmul.f32 %v600, 1.442695
    %v612 = vpow.pop %v611
    %v613 = vsel %vm576, %v602, 0.0
    %614 = vadd.xlane.f32.xlu0 %v613
    %v615 = vpop.xlane.xlu0 %614
    %v616 = vsel %vm576, %v604, 0.0
    %617 = vadd.xlane.f32.xlu0 %v616
    %v618 = vpop.xlane.xlu0 %617
    %v619 = vsel %vm576, %v606, 0.0
    %620 = vadd.xlane.f32.xlu0 %v619
    %v621 = vpop.xlane.xlu0 %620
    %v622 = vsel %vm576, %v608, 0.0
    %623 = vadd.xlane.f32.xlu0 %v622
    %v624 = vpop.xlane.xlu0 %623
    %v625 = vsel %vm576, %v610, 0.0
    %626 = vadd.xlane.f32.xlu0 %v625
    %v627 = vpop.xlane.xlu0 %626
    %v628 = vsel %vm576, %v612, 0.0
    %629 = vadd.xlane.f32.xlu0 %v628
    %v630 = vpop.xlane.xlu0 %629
    %v631 = vrcp.pop %v615
    %v632 = vrcp.pop %v618
    %v633 = vrcp.pop %v621
    %v634 = vrcp.pop %v624
    %v635 = vrcp.pop %v627
    %v636 = vrcp.pop %v630
    %v637 = vmul.f32 %v602, %v631
    %v638 = vmul.f32 %v604, %v632
    %v639 = vmul.f32 %v606, %v633
    %v640 = vmul.f32 %v608, %v634
    %v641 = vmul.f32 %v610, %v635
    %v642 = vmul.f32 %v612, %v636
    %643 = vrot.lane.b32.xlu0 %v399, 64
    %v644 = vpop.permute.xlu0 %643
    %645 = vrot.lane.b32.xlu0 %v404, 64
    %v646 = vpop.permute.xlu0 %645
    %647 = vrot.lane.b32.xlu0 %v409, 64
    %v648 = vpop.permute.xlu0 %647
    %649 = vrot.lane.b32.xlu0 %v414, 64
    %v650 = vpop.permute.xlu0 %649
    %651 = vrot.lane.b32.xlu0 %v419, 64
    %v652 = vpop.permute.xlu0 %651
    %653 = vrot.lane.b32.xlu0 %v424, 64
    %v654 = vpop.permute.xlu0 %653
    %v662 = vsel %vm576, %v637, 0
    %v665 = vsel %vm576, %v638, 0
    %v668 = vsel %vm576, %v639, 0
    %v671 = vsel %vm576, %v640, 0
    %v674 = vsel %vm576, %v641, 0
    %v677 = vsel %vm576, %v642, 0
    %679 = vmatprep.subr.mxu0 0.0
    %680 = vmatpush1.msra.mxu0 %v644
    %681 = vmatprep.subr.mxu0 0.0
    %682 = vmatpush1.msra.mxu0 %v646
    %683 = vmatprep.subr.mxu0 0.0
    %684 = vmatpush1.msra.mxu0 %v648
    %685 = vmatprep.subr.mxu0 0.0
    %686 = vmatpush1.msra.mxu0 %v650
    %687 = vmatprep.subr.mxu0 0.0
    %688 = vmatpush1.msra.mxu0 %v652
    %689 = vmatprep.subr.mxu0 0.0
    %690 = vmatpush1.msra.mxu0 %v654
    %691 = vmatprep.subr.mxu0 0.0
    %692 = vmatpush1.msra.mxu0 0.0
    %693 = vmatprep.subr.mxu0 0.0
    %694 = vmatpush1.msra.mxu0 0.0
    %695 = vmatprep.subr.mxu0 0.0
    %696 = vmatpush1.msra.mxu0 0.0
    %697 = vmatprep.subr.mxu0 0.0
    %698 = vmatpush1.msra.mxu0 0.0
    %699 = vmatprep.subr.mxu0 0.0
    %700 = vmatpush1.msra.mxu0 0.0
    %701 = vmatprep.subr.mxu0 0.0
    %702 = vmatpush1.msra.mxu0 0.0
    %703 = vmatprep.subr.mxu0 0.0
    %704 = vmatpush1.msra.mxu0 0.0
    %705 = vmatprep.subr.mxu0 0.0
    %706 = vmatpush1.msra.mxu0 0.0
    %707 = vmatprep.subr.mxu0 0.0
    %708 = vmatpush1.msra.mxu0 0.0
    %709 = vmatprep.subr.mxu0 0.0
    %710 = vmatpush1.msra.mxu0 0.0
    %711 = vmatprep.subr.mxu0 0.0
    %712 = vmatpush1.msra.mxu0 0.0
    %713 = vmatprep.subr.mxu0 0.0
    %714 = vmatpush1.msra.mxu0 0.0
    %715 = vmatprep.subr.mxu0 0.0
    %716 = vmatpush1.msra.mxu0 0.0
    %717 = vmatprep.subr.mxu0 0.0
    %718 = vmatpush1.msra.mxu0 0.0
    %719 = vmatprep.subr.mxu0 0.0
    %720 = vmatpush1.msra.mxu0 0.0
    %721 = vmatprep.subr.mxu0 0.0
    %722 = vmatpush1.msra.mxu0 0.0
    %723 = vmatprep.subr.mxu0 0.0
    %724 = vmatpush1.msra.mxu0 0.0
    %725 = vmatprep.subr.mxu0 0.0
    %726 = vmatpush1.msra.mxu0 0.0
    %727 = vmatprep.subr.mxu0 0.0
    %728 = vmatpush1.msra.mxu0 0.0
    %729 = vmatprep.subr.mxu0 0.0
    %730 = vmatpush1.msra.mxu0 0.0
    %731 = vmatprep.subr.mxu0 0.0
    %732 = vmatpush1.msra.mxu0 0.0
    %733 = vmatprep.subr.mxu0 0.0
    %734 = vmatpush1.msra.mxu0 0.0
    %735 = vmatprep.subr.mxu0 0.0
    %736 = vmatpush1.msra.mxu0 0.0
    %737 = vmatprep.subr.mxu0 0.0
    %738 = vmatpush1.msra.mxu0 0.0
    %739 = vmatprep.subr.mxu0 0.0
    %740 = vmatpush1.msra.mxu0 0.0
    %741 = vmatprep.subr.mxu0 0.0
    %742 = vmatpush1.msra.mxu0 0.0
    %743 = vmatprep.mubr.f32.mxu0 0.0
    %744 = vmatmul.mubr.f32.gmra.mrb[0].mxu0 %v662
    %v745 = vpop.f32.mrb[0].mxu0
    %v746 = vadd.f32 0.0, %v745
    %v747 = vpop.f32.mrb[0].mxu0
    %748 = vmatprep.mubr.f32.mxu0 0.0
    %749 = vmatmul.mubr.f32.gmra.mrb[0].mxu0 %v665
    %v750 = vpop.f32.mrb[0].mxu0
    %v751 = vadd.f32 0.0, %v750
    %v752 = vpop.f32.mrb[0].mxu0
    %753 = vmatprep.mubr.f32.mxu0 0.0
    %754 = vmatmul.mubr.f32.gmra.mrb[0].mxu0 %v668
    %v755 = vpop.f32.mrb[0].mxu0
    %v756 = vadd.f32 0.0, %v755
    %v757 = vpop.f32.mrb[0].mxu0
    %758 = vmatprep.mubr.f32.mxu0 0.0
    %759 = vmatmul.mubr.f32.gmra.mrb[0].mxu0 %v671
    %v760 = vpop.f32.mrb[0].mxu0
    %v761 = vadd.f32 0.0, %v760
    %v762 = vpop.f32.mrb[0].mxu0
    %763 = vmatprep.mubr.f32.mxu0 0.0
    %764 = vmatmul.mubr.f32.gmra.mrb[0].mxu0 %v674
    %v765 = vpop.f32.mrb[0].mxu0
    %v766 = vadd.f32 0.0, %v765
    %v767 = vpop.f32.mrb[0].mxu0
    %768 = vmatprep.mubr.f32.mxu0 0.0
    %769 = vmatmul.mubr.f32.gmra.mrb[0].mxu0 %v677
    %v770 = vpop.f32.mrb[0].mxu0
    %v771 = vadd.f32 0.0, %v770
    %v772 = vpop.f32.mrb[0].mxu0
    %773 = vdwg.mxu0
    %774 = vrot.lane.b32.xlu0 %v399, 112
    %v775 = vpop.permute.xlu0 %774
    %776 = vrot.lane.b32.xlu0 %v404, 112
    %v777 = vpop.permute.xlu0 %776
    %778 = vrot.lane.b32.xlu0 %v409, 112
    %v779 = vpop.permute.xlu0 %778
    %780 = vrot.lane.b32.xlu0 %v414, 112
    %v781 = vpop.permute.xlu0 %780
    %782 = vrot.lane.b32.xlu0 %v419, 112
    %v783 = vpop.permute.xlu0 %782
    %784 = vrot.lane.b32.xlu0 %v424, 112
    %v785 = vpop.permute.xlu0 %784
    %786 = vrot.lane.b32.xlu0 %v399, 80
    %v787 = vpop.permute.xlu0 %786
    %788 = vrot.lane.b32.xlu0 %v404, 80
    %v789 = vpop.permute.xlu0 %788
    %790 = vrot.lane.b32.xlu0 %v409, 80
    %v791 = vpop.permute.xlu0 %790
    %792 = vrot.lane.b32.xlu0 %v414, 80
    %v793 = vpop.permute.xlu0 %792
    %794 = vrot.lane.b32.xlu0 %v419, 80
    %v795 = vpop.permute.xlu0 %794
    %796 = vrot.lane.b32.xlu0 %v424, 80
    %v797 = vpop.permute.xlu0 %796
    %v798 = vsel %vm77, %v775, 0
    %v800 = vsel %vm77, %v777, 0
    %v802 = vsel %vm77, %v779, 0
    %v804 = vsel %vm77, %v781, 0
    %v806 = vsel %vm77, %v783, 0
    %v808 = vsel %vm77, %v785, 0
    %v810 = vsel %vm77, %v787, 0
    %v812 = vsel %vm77, %v789, 0
    %v814 = vsel %vm77, %v791, 0
    %v816 = vsel %vm77, %v793, 0
    %v818 = vsel %vm77, %v795, 0
    %v820 = vsel %vm77, %v797, 0
    %822 = vmatprep.subr.mxu0 0.0
    %823 = vmatpush1.xpose.msra.mxu0 %v810
    %824 = vmatprep.subr.mxu0 0.0
    %825 = vmatpush1.xpose.msra.mxu0 %v812
    %826 = vmatprep.subr.mxu0 0.0
    %827 = vmatpush1.xpose.msra.mxu0 %v814
    %828 = vmatprep.subr.mxu0 0.0
    %829 = vmatpush1.xpose.msra.mxu0 %v816
    %830 = vmatprep.subr.mxu0 0.0
    %831 = vmatpush1.xpose.msra.mxu0 %v818
    %832 = vmatprep.subr.mxu0 0.0
    %833 = vmatpush1.xpose.msra.mxu0 %v820
    %834 = vmatprep.subr.mxu0 0.0
    %835 = vmatpush1.xpose.msra.mxu0 0.0
    %836 = vmatprep.subr.mxu0 0.0
    %837 = vmatpush1.xpose.msra.mxu0 0.0
    %838 = vmatprep.subr.mxu0 0.0
    %839 = vmatpush1.xpose.msra.mxu0 0.0
    %840 = vmatprep.subr.mxu0 0.0
    %841 = vmatpush1.xpose.msra.mxu0 0.0
    %842 = vmatprep.subr.mxu0 0.0
    %843 = vmatpush1.xpose.msra.mxu0 0.0
    %844 = vmatprep.subr.mxu0 0.0
    %845 = vmatpush1.xpose.msra.mxu0 0.0
    %846 = vmatprep.subr.mxu0 0.0
    %847 = vmatpush1.xpose.msra.mxu0 0.0
    %848 = vmatprep.subr.mxu0 0.0
    %849 = vmatpush1.xpose.msra.mxu0 0.0
    %850 = vmatprep.subr.mxu0 0.0
    %851 = vmatpush1.xpose.msra.mxu0 0.0
    %852 = vmatprep.subr.mxu0 0.0
    %853 = vmatpush1.xpose.msra.mxu0 0.0
    %854 = vmatprep.subr.mxu0 0.0
    %855 = vmatpush1.xpose.msra.mxu0 0.0
    %856 = vmatprep.subr.mxu0 0.0
    %857 = vmatpush1.xpose.msra.mxu0 0.0
    %858 = vmatprep.subr.mxu0 0.0
    %859 = vmatpush1.xpose.msra.mxu0 0.0
    %860 = vmatprep.subr.mxu0 0.0
    %861 = vmatpush1.xpose.msra.mxu0 0.0
    %862 = vmatprep.subr.mxu0 0.0
    %863 = vmatpush1.xpose.msra.mxu0 0.0
    %864 = vmatprep.subr.mxu0 0.0
    %865 = vmatpush1.xpose.msra.mxu0 0.0
    %866 = vmatprep.subr.mxu0 0.0
    %867 = vmatpush1.xpose.msra.mxu0 0.0
    %868 = vmatprep.subr.mxu0 0.0
    %869 = vmatpush1.xpose.msra.mxu0 0.0
    %870 = vmatprep.subr.mxu0 0.0
    %871 = vmatpush1.xpose.msra.mxu0 0.0
    %872 = vmatprep.subr.mxu0 0.0
    %873 = vmatpush1.xpose.msra.mxu0 0.0
    %874 = vmatprep.subr.mxu0 0.0
    %875 = vmatpush1.xpose.msra.mxu0 0.0
    %876 = vmatprep.subr.mxu0 0.0
    %877 = vmatpush1.xpose.msra.mxu0 0.0
    %878 = vmatprep.subr.mxu0 0.0
    %879 = vmatpush1.xpose.msra.mxu0 0.0
    %880 = vmatprep.subr.mxu0 0.0
    %881 = vmatpush1.xpose.msra.mxu0 0.0
    %882 = vmatprep.subr.mxu0 0.0
    %883 = vmatpush1.xpose.msra.mxu0 0.0
    %884 = vmatprep.subr.mxu0 0.0
    %885 = vmatpush1.xpose.msra.mxu0 0.0
    %886 = vmatprep.mubr.f32.mxu0 0.0
    %887 = vmatmul.mubr.f32.gmra.mrb[0].mxu0 %v798
    %v888 = vpop.f32.mrb[0].mxu0
    %v889 = vadd.f32 0.0, %v888
    %v890 = vpop.f32.mrb[0].mxu0
    %891 = vmatprep.mubr.f32.mxu0 0.0
    %892 = vmatmul.mubr.f32.gmra.mrb[0].mxu0 %v800
    %v893 = vpop.f32.mrb[0].mxu0
    %v894 = vadd.f32 0.0, %v893
    %v895 = vpop.f32.mrb[0].mxu0
    %896 = vmatprep.mubr.f32.mxu0 0.0
    %897 = vmatmul.mubr.f32.gmra.mrb[0].mxu0 %v802
    %v898 = vpop.f32.mrb[0].mxu0
    %v899 = vadd.f32 0.0, %v898
    %v900 = vpop.f32.mrb[0].mxu0
    %901 = vmatprep.mubr.f32.mxu0 0.0
    %902 = vmatmul.mubr.f32.gmra.mrb[0].mxu0 %v804
    %v903 = vpop.f32.mrb[0].mxu0
    %v904 = vadd.f32 0.0, %v903
    %v905 = vpop.f32.mrb[0].mxu0
    %906 = vmatprep.mubr.f32.mxu0 0.0
    %907 = vmatmul.mubr.f32.gmra.mrb[0].mxu0 %v806
    %v908 = vpop.f32.mrb[0].mxu0
    %v909 = vadd.f32 0.0, %v908
    %v910 = vpop.f32.mrb[0].mxu0
    %911 = vmatprep.mubr.f32.mxu0 0.0
    %912 = vmatmul.mubr.f32.gmra.mrb[0].mxu0 %v808
    %v913 = vpop.f32.mrb[0].mxu0
    %v914 = vadd.f32 0.0, %v913
    %v915 = vpop.f32.mrb[0].mxu0
    %916 = vdwg.mxu0
    %v917 = vmul.f32 %v889, 0.25
    %v918 = vmul.f32 %v894, 0.25
    %v919 = vmul.f32 %v899, 0.25
    %v920 = vmul.f32 %v904, 0.25
    %v921 = vmul.f32 %v909, 0.25
    %v922 = vmul.f32 %v914, 0.25
    %v923 = vadd.f32 %v917, %v191
    %v924 = vadd.f32 %v918, %v192
    %v925 = vadd.f32 %v919, %v193
    %v926 = vadd.f32 %v920, %v194
    %v927 = vadd.f32 %v921, %v195
    %v928 = vadd.f32 %v922, %v196
    %v929 = vsel %vm576, %v923, -inf
    %930 = vmax.xlane.f32.xlu0 %v929
    %v931 = vpop.xlane.xlu0 %930
    %v932 = vsel %vm576, %v924, -inf
    %933 = vmax.xlane.f32.xlu0 %v932
    %v934 = vpop.xlane.xlu0 %933
    %v935 = vsel %vm576, %v925, -inf
    %936 = vmax.xlane.f32.xlu0 %v935
    %v937 = vpop.xlane.xlu0 %936
    %v938 = vsel %vm576, %v926, -inf
    %939 = vmax.xlane.f32.xlu0 %v938
    %v940 = vpop.xlane.xlu0 %939
    %v941 = vsel %vm576, %v927, -inf
    %942 = vmax.xlane.f32.xlu0 %v941
    %v943 = vpop.xlane.xlu0 %942
    %v944 = vsel %vm576, %v928, -inf
    %945 = vmax.xlane.f32.xlu0 %v944
    %v946 = vpop.xlane.xlu0 %945
    %v947 = vsub.f32 %v923, %v931
    %v948 = vsub.f32 %v924, %v934
    %v949 = vsub.f32 %v925, %v937
    %v950 = vsub.f32 %v926, %v940
    %v951 = vsub.f32 %v927, %v943
    %v952 = vsub.f32 %v928, %v946
    %v953 = vmul.f32 %v947, 1.442695
    %v954 = vpow.pop %v953
    %v955 = vmul.f32 %v948, 1.442695
    %v956 = vpow.pop %v955
    %v957 = vmul.f32 %v949, 1.442695
    %v958 = vpow.pop %v957
    %v959 = vmul.f32 %v950, 1.442695
    %v960 = vpow.pop %v959
    %v961 = vmul.f32 %v951, 1.442695
    %v962 = vpow.pop %v961
    %v963 = vmul.f32 %v952, 1.442695
    %v964 = vpow.pop %v963
    %v965 = vsel %vm576, %v954, 0.0
    %966 = vadd.xlane.f32.xlu0 %v965
    %v967 = vpop.xlane.xlu0 %966
    %v968 = vsel %vm576, %v956, 0.0
    %969 = vadd.xlane.f32.xlu0 %v968
    %v970 = vpop.xlane.xlu0 %969
    %v971 = vsel %vm576, %v958, 0.0
    %972 = vadd.xlane.f32.xlu0 %v971
    %v973 = vpop.xlane.xlu0 %972
    %v974 = vsel %vm576, %v960, 0.0
    %975 = vadd.xlane.f32.xlu0 %v974
    %v976 = vpop.xlane.xlu0 %975
    %v977 = vsel %vm576, %v962, 0.0
    %978 = vadd.xlane.f32.xlu0 %v977
    %v979 = vpop.xlane.xlu0 %978
    %v980 = vsel %vm576, %v964, 0.0
    %981 = vadd.xlane.f32.xlu0 %v980
    %v982 = vpop.xlane.xlu0 %981
    %v983 = vrcp.pop %v967
    %v984 = vrcp.pop %v970
    %v985 = vrcp.pop %v973
    %v986 = vrcp.pop %v976
    %v987 = vrcp.pop %v979
    %v988 = vrcp.pop %v982
    %v989 = vmul.f32 %v954, %v983
    %v990 = vmul.f32 %v956, %v984
    %v991 = vmul.f32 %v958, %v985
    %v992 = vmul.f32 %v960, %v986
    %v993 = vmul.f32 %v962, %v987
    %v994 = vmul.f32 %v964, %v988
    %995 = vrot.lane.b32.xlu0 %v399, 48
    %v996 = vpop.permute.xlu0 %995
    %997 = vrot.lane.b32.xlu0 %v404, 48
    %v998 = vpop.permute.xlu0 %997
    %999 = vrot.lane.b32.xlu0 %v409, 48
    %v1000 = vpop.permute.xlu0 %999
    %1001 = vrot.lane.b32.xlu0 %v414, 48
    %v1002 = vpop.permute.xlu0 %1001
    %1003 = vrot.lane.b32.xlu0 %v419, 48
    %v1004 = vpop.permute.xlu0 %1003
    %1005 = vrot.lane.b32.xlu0 %v424, 48
    %v1006 = vpop.permute.xlu0 %1005
    %v1014 = vsel %vm576, %v989, 0
    %v1017 = vsel %vm576, %v990, 0
    %v1020 = vsel %vm576, %v991, 0
    %v1023 = vsel %vm576, %v992, 0
    %v1026 = vsel %vm576, %v993, 0
    %v1029 = vsel %vm576, %v994, 0
    %1031 = vmatprep.subr.mxu0 0.0
    %1032 = vmatpush1.msra.mxu0 %v996
    %1033 = vmatprep.subr.mxu0 0.0
    %1034 = vmatpush1.msra.mxu0 %v998
    %1035 = vmatprep.subr.mxu0 0.0
    %1036 = vmatpush1.msra.mxu0 %v1000
    %1037 = vmatprep.subr.mxu0 0.0
    %1038 = vmatpush1.msra.mxu0 %v1002
    %1039 = vmatprep.subr.mxu0 0.0
    %1040 = vmatpush1.msra.mxu0 %v1004
    %1041 = vmatprep.subr.mxu0 0.0
    %1042 = vmatpush1.msra.mxu0 %v1006
    %1043 = vmatprep.subr.mxu0 0.0
    %1044 = vmatpush1.msra.mxu0 0.0
    %1045 = vmatprep.subr.mxu0 0.0
    %1046 = vmatpush1.msra.mxu0 0.0
    %1047 = vmatprep.subr.mxu0 0.0
    %1048 = vmatpush1.msra.mxu0 0.0
    %1049 = vmatprep.subr.mxu0 0.0
    %1050 = vmatpush1.msra.mxu0 0.0
    %1051 = vmatprep.subr.mxu0 0.0
    %1052 = vmatpush1.msra.mxu0 0.0
    %1053 = vmatprep.subr.mxu0 0.0
    %1054 = vmatpush1.msra.mxu0 0.0
    %1055 = vmatprep.subr.mxu0 0.0
    %1056 = vmatpush1.msra.mxu0 0.0
    %1057 = vmatprep.subr.mxu0 0.0
    %1058 = vmatpush1.msra.mxu0 0.0
    %1059 = vmatprep.subr.mxu0 0.0
    %1060 = vmatpush1.msra.mxu0 0.0
    %1061 = vmatprep.subr.mxu0 0.0
    %1062 = vmatpush1.msra.mxu0 0.0
    %1063 = vmatprep.subr.mxu0 0.0
    %1064 = vmatpush1.msra.mxu0 0.0
    %1065 = vmatprep.subr.mxu0 0.0
    %1066 = vmatpush1.msra.mxu0 0.0
    %1067 = vmatprep.subr.mxu0 0.0
    %1068 = vmatpush1.msra.mxu0 0.0
    %1069 = vmatprep.subr.mxu0 0.0
    %1070 = vmatpush1.msra.mxu0 0.0
    %1071 = vmatprep.subr.mxu0 0.0
    %1072 = vmatpush1.msra.mxu0 0.0
    %1073 = vmatprep.subr.mxu0 0.0
    %1074 = vmatpush1.msra.mxu0 0.0
    %1075 = vmatprep.subr.mxu0 0.0
    %1076 = vmatpush1.msra.mxu0 0.0
    %1077 = vmatprep.subr.mxu0 0.0
    %1078 = vmatpush1.msra.mxu0 0.0
    %1079 = vmatprep.subr.mxu0 0.0
    %1080 = vmatpush1.msra.mxu0 0.0
    %1081 = vmatprep.subr.mxu0 0.0
    %1082 = vmatpush1.msra.mxu0 0.0
    %1083 = vmatprep.subr.mxu0 0.0
    %1084 = vmatpush1.msra.mxu0 0.0
    %1085 = vmatprep.subr.mxu0 0.0
    %1086 = vmatpush1.msra.mxu0 0.0
    %1087 = vmatprep.subr.mxu0 0.0
    %1088 = vmatpush1.msra.mxu0 0.0
    %1089 = vmatprep.subr.mxu0 0.0
    %1090 = vmatpush1.msra.mxu0 0.0
    %1091 = vmatprep.subr.mxu0 0.0
    %1092 = vmatpush1.msra.mxu0 0.0
    %1093 = vmatprep.subr.mxu0 0.0
    %1094 = vmatpush1.msra.mxu0 0.0
    %1095 = vmatprep.mubr.f32.mxu0 0.0
    %1096 = vmatmul.mubr.f32.gmra.mrb[0].mxu0 %v1014
    %v1097 = vpop.f32.mrb[0].mxu0
    %v1098 = vadd.f32 0.0, %v1097
    %v1099 = vpop.f32.mrb[0].mxu0
    %1100 = vmatprep.mubr.f32.mxu0 0.0
    %1101 = vmatmul.mubr.f32.gmra.mrb[0].mxu0 %v1017
    %v1102 = vpop.f32.mrb[0].mxu0
    %v1103 = vadd.f32 0.0, %v1102
    %v1104 = vpop.f32.mrb[0].mxu0
    %1105 = vmatprep.mubr.f32.mxu0 0.0
    %1106 = vmatmul.mubr.f32.gmra.mrb[0].mxu0 %v1020
    %v1107 = vpop.f32.mrb[0].mxu0
    %v1108 = vadd.f32 0.0, %v1107
    %v1109 = vpop.f32.mrb[0].mxu0
    %1110 = vmatprep.mubr.f32.mxu0 0.0
    %1111 = vmatmul.mubr.f32.gmra.mrb[0].mxu0 %v1023
    %v1112 = vpop.f32.mrb[0].mxu0
    %v1113 = vadd.f32 0.0, %v1112
    %v1114 = vpop.f32.mrb[0].mxu0
    %1115 = vmatprep.mubr.f32.mxu0 0.0
    %1116 = vmatmul.mubr.f32.gmra.mrb[0].mxu0 %v1026
    %v1117 = vpop.f32.mrb[0].mxu0
    %v1118 = vadd.f32 0.0, %v1117
    %v1119 = vpop.f32.mrb[0].mxu0
    %1120 = vmatprep.mubr.f32.mxu0 0.0
    %1121 = vmatmul.mubr.f32.gmra.mrb[0].mxu0 %v1029
    %v1122 = vpop.f32.mrb[0].mxu0
    %v1123 = vadd.f32 0.0, %v1122
    %v1124 = vpop.f32.mrb[0].mxu0
    %1125 = vdwg.mxu0
    %1132 = vrot.lane.b32.xlu0 %v1098, 16
    %v1133 = vpop.permute.xlu0 %1132
    %1134 = vrot.lane.b32.xlu0 %v1103, 16
    %v1135 = vpop.permute.xlu0 %1134
    %1136 = vrot.lane.b32.xlu0 %v1108, 16
    %v1137 = vpop.permute.xlu0 %1136
    %1138 = vrot.lane.b32.xlu0 %v1113, 16
    %v1139 = vpop.permute.xlu0 %1138
    %1140 = vrot.lane.b32.xlu0 %v1118, 16
    %v1141 = vpop.permute.xlu0 %1140
    %1142 = vrot.lane.b32.xlu0 %v1123, 16
    %v1143 = vpop.permute.xlu0 %1142
    %v1150 = vsel %vm77, %v746, %v1133
    %v1151 = vsel %vm77, %v751, %v1135
    %v1152 = vsel %vm77, %v756, %v1137
    %v1153 = vsel %vm77, %v761, %v1139
    %v1154 = vsel %vm77, %v766, %v1141
    %v1155 = vsel %vm77, %v771, %v1143
    %v1156 = vld [vmem:[%s9] sm:$0xff]
    %v1157 = vld [vmem:[%s9 + $0x8] sm:$0xff]
    %v1158 = vld [vmem:[%s9 + $0x10] sm:$0xff]
    %v1159 = vld [vmem:[%s9 + $0x18] sm:$0xff]
    %v1161 = vsel %vm199, %v1150, 0
    %v1164 = vsel %vm199, %v1151, 0
    %v1167 = vsel %vm199, %v1152, 0
    %v1170 = vsel %vm199, %v1153, 0
    %v1173 = vsel %vm199, %v1154, 0
    %v1176 = vsel %vm199, %v1155, 0
    %1178 = vmatprep.subr.mxu0 0.0
    %1179 = vmatpush1.msra.mxu0 %v1156
    %1180 = vmatprep.subr.mxu0 0.0
    %1181 = vmatpush1.msra.mxu0 %v1157
    %1182 = vmatprep.subr.mxu0 0.0
    %1183 = vmatpush1.msra.mxu0 %v1158
    %1184 = vmatprep.subr.mxu0 0.0
    %1185 = vmatpush1.msra.mxu0 %v1159
    %1186 = vmatprep.subr.mxu0 0.0
    %1187 = vmatpush1.msra.mxu0 0.0
    %1188 = vmatprep.subr.mxu0 0.0
    %1189 = vmatpush1.msra.mxu0 0.0
    %1190 = vmatprep.subr.mxu0 0.0
    %1191 = vmatpush1.msra.mxu0 0.0
    %1192 = vmatprep.subr.mxu0 0.0
    %1193 = vmatpush1.msra.mxu0 0.0
    %1194 = vmatprep.subr.mxu0 0.0
    %1195 = vmatpush1.msra.mxu0 0.0
    %1196 = vmatprep.subr.mxu0 0.0
    %1197 = vmatpush1.msra.mxu0 0.0
    %1198 = vmatprep.subr.mxu0 0.0
    %1199 = vmatpush1.msra.mxu0 0.0
    %1200 = vmatprep.subr.mxu0 0.0
    %1201 = vmatpush1.msra.mxu0 0.0
    %1202 = vmatprep.subr.mxu0 0.0
    %1203 = vmatpush1.msra.mxu0 0.0
    %1204 = vmatprep.subr.mxu0 0.0
    %1205 = vmatpush1.msra.mxu0 0.0
    %1206 = vmatprep.subr.mxu0 0.0
    %1207 = vmatpush1.msra.mxu0 0.0
    %1208 = vmatprep.subr.mxu0 0.0
    %1209 = vmatpush1.msra.mxu0 0.0
    %1210 = vmatprep.subr.mxu0 0.0
    %1211 = vmatpush1.msra.mxu0 0.0
    %1212 = vmatprep.subr.mxu0 0.0
    %1213 = vmatpush1.msra.mxu0 0.0
    %1214 = vmatprep.subr.mxu0 0.0
    %1215 = vmatpush1.msra.mxu0 0.0
    %1216 = vmatprep.subr.mxu0 0.0
    %1217 = vmatpush1.msra.mxu0 0.0
    %1218 = vmatprep.subr.mxu0 0.0
    %1219 = vmatpush1.msra.mxu0 0.0
    %1220 = vmatprep.subr.mxu0 0.0
    %1221 = vmatpush1.msra.mxu0 0.0
    %1222 = vmatprep.subr.mxu0 0.0
    %1223 = vmatpush1.msra.mxu0 0.0
    %1224 = vmatprep.subr.mxu0 0.0
    %1225 = vmatpush1.msra.mxu0 0.0
    %1226 = vmatprep.subr.mxu0 0.0
    %1227 = vmatpush1.msra.mxu0 0.0
    %1228 = vmatprep.subr.mxu0 0.0
    %1229 = vmatpush1.msra.mxu0 0.0
    %1230 = vmatprep.subr.mxu0 0.0
    %1231 = vmatpush1.msra.mxu0 0.0
    %1232 = vmatprep.subr.mxu0 0.0
    %1233 = vmatpush1.msra.mxu0 0.0
    %1234 = vmatprep.subr.mxu0 0.0
    %1235 = vmatpush1.msra.mxu0 0.0
    %1236 = vmatprep.subr.mxu0 0.0
    %1237 = vmatpush1.msra.mxu0 0.0
    %1238 = vmatprep.subr.mxu0 0.0
    %1239 = vmatpush1.msra.mxu0 0.0
    %1240 = vmatprep.subr.mxu0 0.0
    %1241 = vmatpush1.msra.mxu0 0.0
    %1242 = vmatprep.mubr.f32.mxu0 0.0
    %1243 = vmatmul.mubr.f32.gmra.mrb[0].mxu0 %v1161
    %v1244 = vpop.f32.mrb[0].mxu0
    %v1245 = vadd.f32 0.0, %v1244
    %v1246 = vpop.f32.mrb[0].mxu0
    %1247 = vmatprep.mubr.f32.mxu0 0.0
    %1248 = vmatmul.mubr.f32.gmra.mrb[0].mxu0 %v1164
    %v1249 = vpop.f32.mrb[0].mxu0
    %v1250 = vadd.f32 0.0, %v1249
    %v1251 = vpop.f32.mrb[0].mxu0
    %1252 = vmatprep.mubr.f32.mxu0 0.0
    %1253 = vmatmul.mubr.f32.gmra.mrb[0].mxu0 %v1167
    %v1254 = vpop.f32.mrb[0].mxu0
    %v1255 = vadd.f32 0.0, %v1254
    %v1256 = vpop.f32.mrb[0].mxu0
    %1257 = vmatprep.mubr.f32.mxu0 0.0
    %1258 = vmatmul.mubr.f32.gmra.mrb[0].mxu0 %v1170
    %v1259 = vpop.f32.mrb[0].mxu0
    %v1260 = vadd.f32 0.0, %v1259
    %v1261 = vpop.f32.mrb[0].mxu0
    %1262 = vmatprep.mubr.f32.mxu0 0.0
    %1263 = vmatmul.mubr.f32.gmra.mrb[0].mxu0 %v1173
    %v1264 = vpop.f32.mrb[0].mxu0
    %v1265 = vadd.f32 0.0, %v1264
    %v1266 = vpop.f32.mrb[0].mxu0
    %1267 = vmatprep.mubr.f32.mxu0 0.0
    %1268 = vmatmul.mubr.f32.gmra.mrb[0].mxu0 %v1176
    %v1269 = vpop.f32.mrb[0].mxu0
    %v1270 = vadd.f32 0.0, %v1269
    %v1271 = vpop.f32.mrb[0].mxu0
    %1272 = vdwg.mxu0
    %v1273 = vadd.f32 %v163, %v1245
    %v1274 = vadd.f32 %v168, %v1250
    %v1275 = vadd.f32 %v173, %v1255
    %v1276 = vadd.f32 %v178, %v1260
    %v1277 = vadd.f32 %v183, %v1265
    %v1278 = vadd.f32 %v188, %v1270
    %v1279 = vld [vmem:[%s10] sm:$0x1]
    %v1281 = vlaneseq
    %v1282 = vshrl.u32 %v1281, 7
    %v1283 = vsub.s32 0, %v1282
    %v1284 = vrot.slane %v1279, %v1283
    %v1286 = vadd.f32 %v1273, %v1284
    %v1287 = vadd.f32 %v1274, %v1284
    %v1288 = vadd.f32 %v1275, %v1284
    %v1289 = vadd.f32 %v1276, %v1284
    %v1290 = vadd.f32 %v1277, %v1284
    %v1291 = vadd.f32 %v1278, %v1284
    %v1292 = vld [vmem:[%s11] sm:$0x1]
    %v1293 = vld [vmem:[%s12] sm:$0x1]
    %v1294 = vsel %vm199, %v1286, 0.0
    %1295 = vadd.xlane.f32.xlu0 %v1294
    %v1296 = vpop.xlane.xlu0 %1295
    %v1297 = vsel %vm199, %v1287, 0.0
    %1298 = vadd.xlane.f32.xlu0 %v1297
    %v1299 = vpop.xlane.xlu0 %1298
    %v1300 = vsel %vm199, %v1288, 0.0
    %1301 = vadd.xlane.f32.xlu0 %v1300
    %v1302 = vpop.xlane.xlu0 %1301
    %v1303 = vsel %vm199, %v1289, 0.0
    %1304 = vadd.xlane.f32.xlu0 %v1303
    %v1305 = vpop.xlane.xlu0 %1304
    %v1306 = vsel %vm199, %v1290, 0.0
    %1307 = vadd.xlane.f32.xlu0 %v1306
    %v1308 = vpop.xlane.xlu0 %1307
    %v1309 = vsel %vm199, %v1291, 0.0
    %1310 = vadd.xlane.f32.xlu0 %v1309
    %v1311 = vpop.xlane.xlu0 %1310
    %v1312 = vmul.f32 %v1296, %v218
    %v1313 = vmul.f32 %v1299, %v218
    %v1314 = vmul.f32 %v1302, %v218
    %v1315 = vmul.f32 %v1305, %v218
    %v1316 = vmul.f32 %v1308, %v218
    %v1317 = vmul.f32 %v1311, %v218
    %v1318 = vsub.f32 %v1286, %v1312
    %v1319 = vsub.f32 %v1287, %v1313
    %v1320 = vsub.f32 %v1288, %v1314
    %v1321 = vsub.f32 %v1289, %v1315
    %v1322 = vsub.f32 %v1290, %v1316
    %v1323 = vsub.f32 %v1291, %v1317
    %v1324 = vmul.f32 %v1318, %v1318
    %v1325 = vmul.f32 %v1319, %v1319
    %v1326 = vmul.f32 %v1320, %v1320
    %v1327 = vmul.f32 %v1321, %v1321
    %v1328 = vmul.f32 %v1322, %v1322
    %v1329 = vmul.f32 %v1323, %v1323
    %v1330 = vsel %vm199, %v1324, 0.0
    %1331 = vadd.xlane.f32.xlu0 %v1330
    %v1332 = vpop.xlane.xlu0 %1331
    %v1333 = vsel %vm199, %v1325, 0.0
    %1334 = vadd.xlane.f32.xlu0 %v1333
    %v1335 = vpop.xlane.xlu0 %1334
    %v1336 = vsel %vm199, %v1326, 0.0
    %1337 = vadd.xlane.f32.xlu0 %v1336
    %v1338 = vpop.xlane.xlu0 %1337
    %v1339 = vsel %vm199, %v1327, 0.0
    %1340 = vadd.xlane.f32.xlu0 %v1339
    %v1341 = vpop.xlane.xlu0 %1340
    %v1342 = vsel %vm199, %v1328, 0.0
    %1343 = vadd.xlane.f32.xlu0 %v1342
    %v1344 = vpop.xlane.xlu0 %1343
    %v1345 = vsel %vm199, %v1329, 0.0
    %1346 = vadd.xlane.f32.xlu0 %v1345
    %v1347 = vpop.xlane.xlu0 %1346
    %v1348 = vmul.f32 %v1332, %v218
    %v1349 = vmul.f32 %v1335, %v218
    %v1350 = vmul.f32 %v1338, %v218
    %v1351 = vmul.f32 %v1341, %v218
    %v1352 = vmul.f32 %v1344, %v218
    %v1353 = vmul.f32 %v1347, %v218
    %v1354 = vadd.f32 %v1348, 1e-12
    %v1355 = vadd.f32 %v1349, 1e-12
    %v1356 = vadd.f32 %v1350, 1e-12
    %v1357 = vadd.f32 %v1351, 1e-12
    %v1358 = vadd.f32 %v1352, 1e-12
    %v1359 = vadd.f32 %v1353, 1e-12
    %v1360 = vrsqrt.pop %v1354
    %v1361 = vrsqrt.pop %v1355
    %v1362 = vrsqrt.pop %v1356
    %v1363 = vrsqrt.pop %v1357
    %v1364 = vrsqrt.pop %v1358
    %v1365 = vrsqrt.pop %v1359
    %v1366 = vmul.f32 %v1318, %v1360
    %v1367 = vmul.f32 %v1319, %v1361
    %v1368 = vmul.f32 %v1320, %v1362
    %v1369 = vmul.f32 %v1321, %v1363
    %v1370 = vmul.f32 %v1322, %v1364
    %v1371 = vmul.f32 %v1323, %v1365
    %v1373 = vlaneseq
    %v1374 = vshrl.u32 %v1373, 7
    %v1375 = vsub.s32 0, %v1374
    %v1376 = vrot.slane %v1292, %v1375
    %v1378 = vmul.f32 %v1366, %v1376
    %v1379 = vmul.f32 %v1367, %v1376
    %v1380 = vmul.f32 %v1368, %v1376
    %v1381 = vmul.f32 %v1369, %v1376
    %v1382 = vmul.f32 %v1370, %v1376
    %v1383 = vmul.f32 %v1371, %v1376
    %v1385 = vlaneseq
    %v1386 = vshrl.u32 %v1385, 7
    %v1387 = vsub.s32 0, %v1386
    %v1388 = vrot.slane %v1293, %v1387
    %v1390 = vadd.f32 %v1378, %v1388
    %v1391 = vadd.f32 %v1379, %v1388
    %v1392 = vadd.f32 %v1380, %v1388
    %v1393 = vadd.f32 %v1381, %v1388
    %v1394 = vadd.f32 %v1382, %v1388
    %v1395 = vadd.f32 %v1383, %v1388
    %v1396 = vld [vmem:[%s13] sm:$0xff]
    %v1397 = vld [vmem:[%s13 + $0x8] sm:$0xff]
    %v1398 = vld [vmem:[%s13 + $0x10] sm:$0xff]
    %v1399 = vld [vmem:[%s13 + $0x18] sm:$0xff]
    %v1400 = vld [vmem:[%s14] sm:$0x1]
    %v1402 = vlaneseq
    %v1403 = vshrl.u32 %v1402, 7
    %v1404 = vsub.s32 0, %v1403
    %v1405 = vrot.slane %v1400, %v1404
    %v1408 = vsel %vm199, %v1390, 0
    %v1411 = vsel %vm199, %v1391, 0
    %v1414 = vsel %vm199, %v1392, 0
    %v1417 = vsel %vm199, %v1393, 0
    %v1420 = vsel %vm199, %v1394, 0
    %v1423 = vsel %vm199, %v1395, 0
    %1425 = vmatprep.subr.mxu0 0.0
    %1426 = vmatpush1.msra.mxu0 %v1396
    %1427 = vmatprep.subr.mxu0 0.0
    %1428 = vmatpush1.msra.mxu0 %v1397
    %1429 = vmatprep.subr.mxu0 0.0
    %1430 = vmatpush1.msra.mxu0 %v1398
    %1431 = vmatprep.subr.mxu0 0.0
    %1432 = vmatpush1.msra.mxu0 %v1399
    %1433 = vmatprep.subr.mxu0 0.0
    %1434 = vmatpush1.msra.mxu0 0.0
    %1435 = vmatprep.subr.mxu0 0.0
    %1436 = vmatpush1.msra.mxu0 0.0
    %1437 = vmatprep.subr.mxu0 0.0
    %1438 = vmatpush1.msra.mxu0 0.0
    %1439 = vmatprep.subr.mxu0 0.0
    %1440 = vmatpush1.msra.mxu0 0.0
    %1441 = vmatprep.subr.mxu0 0.0
    %1442 = vmatpush1.msra.mxu0 0.0
    %1443 = vmatprep.subr.mxu0 0.0
    %1444 = vmatpush1.msra.mxu0 0.0
    %1445 = vmatprep.subr.mxu0 0.0
    %1446 = vmatpush1.msra.mxu0 0.0
    %1447 = vmatprep.subr.mxu0 0.0
    %1448 = vmatpush1.msra.mxu0 0.0
    %1449 = vmatprep.subr.mxu0 0.0
    %1450 = vmatpush1.msra.mxu0 0.0
    %1451 = vmatprep.subr.mxu0 0.0
    %1452 = vmatpush1.msra.mxu0 0.0
    %1453 = vmatprep.subr.mxu0 0.0
    %1454 = vmatpush1.msra.mxu0 0.0
    %1455 = vmatprep.subr.mxu0 0.0
    %1456 = vmatpush1.msra.mxu0 0.0
    %1457 = vmatprep.subr.mxu0 0.0
    %1458 = vmatpush1.msra.mxu0 0.0
    %1459 = vmatprep.subr.mxu0 0.0
    %1460 = vmatpush1.msra.mxu0 0.0
    %1461 = vmatprep.subr.mxu0 0.0
    %1462 = vmatpush1.msra.mxu0 0.0
    %1463 = vmatprep.subr.mxu0 0.0
    %1464 = vmatpush1.msra.mxu0 0.0
    %1465 = vmatprep.subr.mxu0 0.0
    %1466 = vmatpush1.msra.mxu0 0.0
    %1467 = vmatprep.subr.mxu0 0.0
    %1468 = vmatpush1.msra.mxu0 0.0
    %1469 = vmatprep.subr.mxu0 0.0
    %1470 = vmatpush1.msra.mxu0 0.0
    %1471 = vmatprep.subr.mxu0 0.0
    %1472 = vmatpush1.msra.mxu0 0.0
    %1473 = vmatprep.subr.mxu0 0.0
    %1474 = vmatpush1.msra.mxu0 0.0
    %1475 = vmatprep.subr.mxu0 0.0
    %1476 = vmatpush1.msra.mxu0 0.0
    %1477 = vmatprep.subr.mxu0 0.0
    %1478 = vmatpush1.msra.mxu0 0.0
    %1479 = vmatprep.subr.mxu0 0.0
    %1480 = vmatpush1.msra.mxu0 0.0
    %1481 = vmatprep.subr.mxu0 0.0
    %1482 = vmatpush1.msra.mxu0 0.0
    %1483 = vmatprep.subr.mxu0 0.0
    %1484 = vmatpush1.msra.mxu0 0.0
    %1485 = vmatprep.subr.mxu0 0.0
    %1486 = vmatpush1.msra.mxu0 0.0
    %1487 = vmatprep.subr.mxu0 0.0
    %1488 = vmatpush1.msra.mxu0 0.0
    %1489 = vmatprep.mubr.f32.mxu0 0.0
    %1490 = vmatmul.mubr.f32.gmra.mrb[0].mxu0 %v1408
    %v1491 = vpop.f32.mrb[0].mxu0
    %v1492 = vadd.f32 %v1405, %v1491
    %v1493 = vpop.f32.mrb[0].mxu0
    %1494 = vmatprep.mubr.f32.mxu0 0.0
    %1495 = vmatmul.mubr.f32.gmra.mrb[0].mxu0 %v1411
    %v1496 = vpop.f32.mrb[0].mxu0
    %v1497 = vadd.f32 %v1405, %v1496
    %v1498 = vpop.f32.mrb[0].mxu0
    %1499 = vmatprep.mubr.f32.mxu0 0.0
    %1500 = vmatmul.mubr.f32.gmra.mrb[0].mxu0 %v1414
    %v1501 = vpop.f32.mrb[0].mxu0
    %v1502 = vadd.f32 %v1405, %v1501
    %v1503 = vpop.f32.mrb[0].mxu0
    %1504 = vmatprep.mubr.f32.mxu0 0.0
    %1505 = vmatmul.mubr.f32.gmra.mrb[0].mxu0 %v1417
    %v1506 = vpop.f32.mrb[0].mxu0
    %v1507 = vadd.f32 %v1405, %v1506
    %v1508 = vpop.f32.mrb[0].mxu0
    %1509 = vmatprep.mubr.f32.mxu0 0.0
    %1510 = vmatmul.mubr.f32.gmra.mrb[0].mxu0 %v1420
    %v1511 = vpop.f32.mrb[0].mxu0
    %v1512 = vadd.f32 %v1405, %v1511
    %v1513 = vpop.f32.mrb[0].mxu0
    %1514 = vmatprep.mubr.f32.mxu0 0.0
    %1515 = vmatmul.mubr.f32.gmra.mrb[0].mxu0 %v1423
    %v1516 = vpop.f32.mrb[0].mxu0
    %v1517 = vadd.f32 %v1405, %v1516
    %v1518 = vpop.f32.mrb[0].mxu0
    %1519 = vdwg.mxu0
    %v1520 = vmul.f32 %v1492, 0.5
    %v1521 = vmul.f32 %v1497, 0.5
    %v1522 = vmul.f32 %v1502, 0.5
    %v1523 = vmul.f32 %v1507, 0.5
    %v1524 = vmul.f32 %v1512, 0.5
    %v1525 = vmul.f32 %v1517, 0.5
    %v1526 = vmul.f32 %v1492, 0.70710677
    %v1527 = vmul.f32 %v1497, 0.70710677
    %v1528 = vmul.f32 %v1502, 0.70710677
    %v1529 = vmul.f32 %v1507, 0.70710677
    %v1530 = vmul.f32 %v1512, 0.70710677
    %v1531 = vmul.f32 %v1517, 0.70710677
    %vm1532 = vcmp.ge.f32.partialorder %v1526, 0.0
    %vm1533 = vcmp.ge.f32.partialorder %v1527, 0.0
    %vm1534 = vcmp.ge.f32.partialorder %v1528, 0.0
    %vm1535 = vcmp.ge.f32.partialorder %v1529, 0.0
    %vm1536 = vcmp.ge.f32.partialorder %v1530, 0.0
    %vm1537 = vcmp.ge.f32.partialorder %v1531, 0.0
    %v1538 = vsel %vm1532, 1.0, -1.0
    %v1539 = vsel %vm1533, 1.0, -1.0
    %v1540 = vsel %vm1534, 1.0, -1.0
    %v1541 = vsel %vm1535, 1.0, -1.0
    %v1542 = vsel %vm1536, 1.0, -1.0
    %v1543 = vsel %vm1537, 1.0, -1.0
    %v1544 = vand.u32 2147483647, %v1526
    %v1545 = vand.u32 2147483647, %v1527
    %v1546 = vand.u32 2147483647, %v1528
    %v1547 = vand.u32 2147483647, %v1529
    %v1548 = vand.u32 2147483647, %v1530
    %v1549 = vand.u32 2147483647, %v1531
    %v1550 = vmul.f32 %v1544, 0.3275911
    %v1551 = vmul.f32 %v1545, 0.3275911
    %v1552 = vmul.f32 %v1546, 0.3275911
    %v1553 = vmul.f32 %v1547, 0.3275911
    %v1554 = vmul.f32 %v1548, 0.3275911
    %v1555 = vmul.f32 %v1549, 0.3275911
    %v1556 = vadd.f32 %v1550, 1.0
    %v1557 = vadd.f32 %v1551, 1.0
    %v1558 = vadd.f32 %v1552, 1.0
    %v1559 = vadd.f32 %v1553, 1.0
    %v1560 = vadd.f32 %v1554, 1.0
    %v1561 = vadd.f32 %v1555, 1.0
    %v1562 = vrcp.pop %v1556
    %v1563 = vrcp.pop %v1557
    %v1564 = vrcp.pop %v1558
    %v1565 = vrcp.pop %v1559
    %v1566 = vrcp.pop %v1560
    %v1567 = vrcp.pop %v1561
    %v1568 = vmul.f32 %v1562, 1.0614054
    %v1569 = vmul.f32 %v1563, 1.0614054
    %v1570 = vmul.f32 %v1564, 1.0614054
    %v1571 = vmul.f32 %v1565, 1.0614054
    %v1572 = vmul.f32 %v1566, 1.0614054
    %v1573 = vmul.f32 %v1567, 1.0614054
    %v1574 = vadd.f32 %v1568, -1.4531521
    %v1575 = vadd.f32 %v1569, -1.4531521
    %v1576 = vadd.f32 %v1570, -1.4531521
    %v1577 = vadd.f32 %v1571, -1.4531521
    %v1578 = vadd.f32 %v1572, -1.4531521
    %v1579 = vadd.f32 %v1573, -1.4531521
    %v1580 = vmul.f32 %v1574, %v1562
    %v1581 = vmul.f32 %v1575, %v1563
    %v1582 = vmul.f32 %v1576, %v1564
    %v1583 = vmul.f32 %v1577, %v1565
    %v1584 = vmul.f32 %v1578, %v1566
    %v1585 = vmul.f32 %v1579, %v1567
    %v1586 = vadd.f32 %v1580, 1.4214138
    %v1587 = vadd.f32 %v1581, 1.4214138
    %v1588 = vadd.f32 %v1582, 1.4214138
    %v1589 = vadd.f32 %v1583, 1.4214138
    %v1590 = vadd.f32 %v1584, 1.4214138
    %v1591 = vadd.f32 %v1585, 1.4214138
    %v1592 = vmul.f32 %v1586, %v1562
    %v1593 = vmul.f32 %v1587, %v1563
    %v1594 = vmul.f32 %v1588, %v1564
    %v1595 = vmul.f32 %v1589, %v1565
    %v1596 = vmul.f32 %v1590, %v1566
    %v1597 = vmul.f32 %v1591, %v1567
    %v1598 = vadd.f32 %v1592, -0.28449672
    %v1599 = vadd.f32 %v1593, -0.28449672
    %v1600 = vadd.f32 %v1594, -0.28449672
    %v1601 = vadd.f32 %v1595, -0.28449672
    %v1602 = vadd.f32 %v1596, -0.28449672
    %v1603 = vadd.f32 %v1597, -0.28449672
    %v1604 = vmul.f32 %v1598, %v1562
    %v1605 = vmul.f32 %v1599, %v1563
    %v1606 = vmul.f32 %v1600, %v1564
    %v1607 = vmul.f32 %v1601, %v1565
    %v1608 = vmul.f32 %v1602, %v1566
    %v1609 = vmul.f32 %v1603, %v1567
    %v1610 = vadd.f32 %v1604, 0.2548296
    %v1611 = vadd.f32 %v1605, 0.2548296
    %v1612 = vadd.f32 %v1606, 0.2548296
    %v1613 = vadd.f32 %v1607, 0.2548296
    %v1614 = vadd.f32 %v1608, 0.2548296
    %v1615 = vadd.f32 %v1609, 0.2548296
    %v1616 = vmul.f32 %v1610, %v1562
    %v1617 = vmul.f32 %v1611, %v1563
    %v1618 = vmul.f32 %v1612, %v1564
    %v1619 = vmul.f32 %v1613, %v1565
    %v1620 = vmul.f32 %v1614, %v1566
    %v1621 = vmul.f32 %v1615, %v1567
    %v1622 = vsub.f32 0.0, %v1544
    %v1623 = vsub.f32 0.0, %v1545
    %v1624 = vsub.f32 0.0, %v1546
    %v1625 = vsub.f32 0.0, %v1547
    %v1626 = vsub.f32 0.0, %v1548
    %v1627 = vsub.f32 0.0, %v1549
    %v1628 = vmul.f32 %v1622, %v1544
    %v1629 = vmul.f32 %v1623, %v1545
    %v1630 = vmul.f32 %v1624, %v1546
    %v1631 = vmul.f32 %v1625, %v1547
    %v1632 = vmul.f32 %v1626, %v1548
    %v1633 = vmul.f32 %v1627, %v1549
    %v1634 = vmul.f32 %v1628, 1.442695
    %v1635 = vpow.pop %v1634
    %v1636 = vmul.f32 %v1629, 1.442695
    %v1637 = vpow.pop %v1636
    %v1638 = vmul.f32 %v1630, 1.442695
    %v1639 = vpow.pop %v1638
    %v1640 = vmul.f32 %v1631, 1.442695
    %v1641 = vpow.pop %v1640
    %v1642 = vmul.f32 %v1632, 1.442695
    %v1643 = vpow.pop %v1642
    %v1644 = vmul.f32 %v1633, 1.442695
    %v1645 = vpow.pop %v1644
    %v1646 = vmul.f32 %v1616, %v1635
    %v1647 = vmul.f32 %v1617, %v1637
    %v1648 = vmul.f32 %v1618, %v1639
    %v1649 = vmul.f32 %v1619, %v1641
    %v1650 = vmul.f32 %v1620, %v1643
    %v1651 = vmul.f32 %v1621, %v1645
    %v1652 = vsub.f32 1.0, %v1646
    %v1653 = vsub.f32 1.0, %v1647
    %v1654 = vsub.f32 1.0, %v1648
    %v1655 = vsub.f32 1.0, %v1649
    %v1656 = vsub.f32 1.0, %v1650
    %v1657 = vsub.f32 1.0, %v1651
    %v1658 = vmul.f32 %v1538, %v1652
    %v1659 = vmul.f32 %v1539, %v1653
    %v1660 = vmul.f32 %v1540, %v1654
    %v1661 = vmul.f32 %v1541, %v1655
    %v1662 = vmul.f32 %v1542, %v1656
    %v1663 = vmul.f32 %v1543, %v1657
    %v1664 = vadd.f32 %v1658, 1.0
    %v1665 = vadd.f32 %v1659, 1.0
    %v1666 = vadd.f32 %v1660, 1.0
    %v1667 = vadd.f32 %v1661, 1.0
    %v1668 = vadd.f32 %v1662, 1.0
    %v1669 = vadd.f32 %v1663, 1.0
    %v1670 = vmul.f32 %v1520, %v1664
    %v1671 = vmul.f32 %v1521, %v1665
    %v1672 = vmul.f32 %v1522, %v1666
    %v1673 = vmul.f32 %v1523, %v1667
    %v1674 = vmul.f32 %v1524, %v1668
    %v1675 = vmul.f32 %v1525, %v1669
    %v1676 = vld [vmem:[%s15] sm:$0xff]
    %v1677 = vld [vmem:[%s15 + $0x8] sm:$0xff]
    %v1678 = vld [vmem:[%s15 + $0x10] sm:$0xff]
    %v1679 = vld [vmem:[%s15 + $0x18] sm:$0xff]
    %v1680 = vld [vmem:[%s15 + $0x20] sm:$0xff]
    %v1681 = vld [vmem:[%s15 + $0x28] sm:$0xff]
    %v1682 = vld [vmem:[%s15 + $0x30] sm:$0xff]
    %v1683 = vld [vmem:[%s15 + $0x38] sm:$0xff]
    %v1684 = vld [vmem:[%s15 + $0x40] sm:$0xff]
    %v1685 = vld [vmem:[%s15 + $0x48] sm:$0xff]
    %v1686 = vld [vmem:[%s15 + $0x50] sm:$0xff]
    %v1687 = vld [vmem:[%s15 + $0x58] sm:$0xff]
    %v1688 = vld [vmem:[%s15 + $0x60] sm:$0xff]
    %v1689 = vld [vmem:[%s15 + $0x68] sm:$0xff]
    %v1690 = vld [vmem:[%s15 + $0x70] sm:$0xff]
    %v1691 = vld [vmem:[%s15 + $0x78] sm:$0xff]
    %1692 = vmatprep.subr.mxu0 0.0
    %1693 = vmatpush1.msra.mxu0 %v1676
    %1694 = vmatprep.subr.mxu0 0.0
    %1695 = vmatpush1.msra.mxu0 %v1677
    %1696 = vmatprep.subr.mxu0 0.0
    %1697 = vmatpush1.msra.mxu0 %v1678
    %1698 = vmatprep.subr.mxu0 0.0
    %1699 = vmatpush1.msra.mxu0 %v1679
    %1700 = vmatprep.subr.mxu0 0.0
    %1701 = vmatpush1.msra.mxu0 %v1680
    %1702 = vmatprep.subr.mxu0 0.0
    %1703 = vmatpush1.msra.mxu0 %v1681
    %1704 = vmatprep.subr.mxu0 0.0
    %1705 = vmatpush1.msra.mxu0 %v1682
    %1706 = vmatprep.subr.mxu0 0.0
    %1707 = vmatpush1.msra.mxu0 %v1683
    %1708 = vmatprep.subr.mxu0 0.0
    %1709 = vmatpush1.msra.mxu0 %v1684
    %1710 = vmatprep.subr.mxu0 0.0
    %1711 = vmatpush1.msra.mxu0 %v1685
    %1712 = vmatprep.subr.mxu0 0.0
    %1713 = vmatpush1.msra.mxu0 %v1686
    %1714 = vmatprep.subr.mxu0 0.0
    %1715 = vmatpush1.msra.mxu0 %v1687
    %1716 = vmatprep.subr.mxu0 0.0
    %1717 = vmatpush1.msra.mxu0 %v1688
    %1718 = vmatprep.subr.mxu0 0.0
    %1719 = vmatpush1.msra.mxu0 %v1689
    %1720 = vmatprep.subr.mxu0 0.0
    %1721 = vmatpush1.msra.mxu0 %v1690
    %1722 = vmatprep.subr.mxu0 0.0
    %1723 = vmatpush1.msra.mxu0 %v1691
    %1724 = vmatprep.subr.mxu0 0.0
    %1725 = vmatpush1.msra.mxu0 0.0
    %1726 = vmatprep.subr.mxu0 0.0
    %1727 = vmatpush1.msra.mxu0 0.0
    %1728 = vmatprep.subr.mxu0 0.0
    %1729 = vmatpush1.msra.mxu0 0.0
    %1730 = vmatprep.subr.mxu0 0.0
    %1731 = vmatpush1.msra.mxu0 0.0
    %1732 = vmatprep.subr.mxu0 0.0
    %1733 = vmatpush1.msra.mxu0 0.0
    %1734 = vmatprep.subr.mxu0 0.0
    %1735 = vmatpush1.msra.mxu0 0.0
    %1736 = vmatprep.subr.mxu0 0.0
    %1737 = vmatpush1.msra.mxu0 0.0
    %1738 = vmatprep.subr.mxu0 0.0
    %1739 = vmatpush1.msra.mxu0 0.0
    %1740 = vmatprep.subr.mxu0 0.0
    %1741 = vmatpush1.msra.mxu0 0.0
    %1742 = vmatprep.subr.mxu0 0.0
    %1743 = vmatpush1.msra.mxu0 0.0
    %1744 = vmatprep.subr.mxu0 0.0
    %1745 = vmatpush1.msra.mxu0 0.0
    %1746 = vmatprep.subr.mxu0 0.0
    %1747 = vmatpush1.msra.mxu0 0.0
    %1748 = vmatprep.subr.mxu0 0.0
    %1749 = vmatpush1.msra.mxu0 0.0
    %1750 = vmatprep.subr.mxu0 0.0
    %1751 = vmatpush1.msra.mxu0 0.0
    %1752 = vmatprep.subr.mxu0 0.0
    %1753 = vmatpush1.msra.mxu0 0.0
    %1754 = vmatprep.subr.mxu0 0.0
    %1755 = vmatpush1.msra.mxu0 0.0
    %1756 = vmatprep.mubr.f32.mxu0 0.0
    %1757 = vmatmul.mubr.f32.gmra.mrb[0].mxu0 %v1670
    %v1758 = vpop.f32.mrb[0].mxu0
    %v1759 = vadd.f32 0.0, %v1758
    %v1760 = vpop.f32.mrb[0].mxu0
    %1761 = vmatprep.mubr.f32.mxu0 0.0
    %1762 = vmatmul.mubr.f32.gmra.mrb[0].mxu0 %v1671
    %v1763 = vpop.f32.mrb[0].mxu0
    %v1764 = vadd.f32 0.0, %v1763
    %v1765 = vpop.f32.mrb[0].mxu0
    %1766 = vmatprep.mubr.f32.mxu0 0.0
    %1767 = vmatmul.mubr.f32.gmra.mrb[0].mxu0 %v1672
    %v1768 = vpop.f32.mrb[0].mxu0
    %v1769 = vadd.f32 0.0, %v1768
    %v1770 = vpop.f32.mrb[0].mxu0
    %1771 = vmatprep.mubr.f32.mxu0 0.0
    %1772 = vmatmul.mubr.f32.gmra.mrb[0].mxu0 %v1673
    %v1773 = vpop.f32.mrb[0].mxu0
    %v1774 = vadd.f32 0.0, %v1773
    %v1775 = vpop.f32.mrb[0].mxu0
    %1776 = vmatprep.mubr.f32.mxu0 0.0
    %1777 = vmatmul.mubr.f32.gmra.mrb[0].mxu0 %v1674
    %v1778 = vpop.f32.mrb[0].mxu0
    %v1779 = vadd.f32 0.0, %v1778
    %v1780 = vpop.f32.mrb[0].mxu0
    %1781 = vmatprep.mubr.f32.mxu0 0.0
    %1782 = vmatmul.mubr.f32.gmra.mrb[0].mxu0 %v1675
    %v1783 = vpop.f32.mrb[0].mxu0
    %v1784 = vadd.f32 0.0, %v1783
    %v1785 = vpop.f32.mrb[0].mxu0
    %1786 = vdwg.mxu0
    %v1787 = vadd.f32 %v1286, %v1759
    %v1788 = vadd.f32 %v1287, %v1764
    %v1789 = vadd.f32 %v1288, %v1769
    %v1790 = vadd.f32 %v1289, %v1774
    %v1791 = vadd.f32 %v1290, %v1779
    %v1792 = vadd.f32 %v1291, %v1784
    %v1793 = vld [vmem:[%s16] sm:$0x1]
    %v1795 = vlaneseq
    %v1796 = vshrl.u32 %v1795, 7
    %v1797 = vsub.s32 0, %v1796
    %v1798 = vrot.slane %v1793, %v1797
    %v1800 = vadd.f32 %v1787, %v1798
    %v1801 = vadd.f32 %v1788, %v1798
    %v1802 = vadd.f32 %v1789, %v1798
    %v1803 = vadd.f32 %v1790, %v1798
    %v1804 = vadd.f32 %v1791, %v1798
    %v1805 = vadd.f32 %v1792, %v1798
    %s1806 = scalar_lea.vmem %s5, 1
    %v1807 = vld [vmem:[%s1806] sm:$0x1]
    %s1808 = scalar_lea.vmem %s6, 1
    %v1809 = vld [vmem:[%s1808] sm:$0x1]
    %v1810 = vsel %vm199, %v1800, 0.0
    %1811 = vadd.xlane.f32.xlu0 %v1810
    %v1812 = vpop.xlane.xlu0 %1811
    %v1813 = vsel %vm199, %v1801, 0.0
    %1814 = vadd.xlane.f32.xlu0 %v1813
    %v1815 = vpop.xlane.xlu0 %1814
    %v1816 = vsel %vm199, %v1802, 0.0
    %1817 = vadd.xlane.f32.xlu0 %v1816
    %v1818 = vpop.xlane.xlu0 %1817
    %v1819 = vsel %vm199, %v1803, 0.0
    %1820 = vadd.xlane.f32.xlu0 %v1819
    %v1821 = vpop.xlane.xlu0 %1820
    %v1822 = vsel %vm199, %v1804, 0.0
    %1823 = vadd.xlane.f32.xlu0 %v1822
    %v1824 = vpop.xlane.xlu0 %1823
    %v1825 = vsel %vm199, %v1805, 0.0
    %1826 = vadd.xlane.f32.xlu0 %v1825
    %v1827 = vpop.xlane.xlu0 %1826
    %v1828 = vmul.f32 %v1812, %v218
    %v1829 = vmul.f32 %v1815, %v218
    %v1830 = vmul.f32 %v1818, %v218
    %v1831 = vmul.f32 %v1821, %v218
    %v1832 = vmul.f32 %v1824, %v218
    %v1833 = vmul.f32 %v1827, %v218
    %v1834 = vsub.f32 %v1800, %v1828
    %v1835 = vsub.f32 %v1801, %v1829
    %v1836 = vsub.f32 %v1802, %v1830
    %v1837 = vsub.f32 %v1803, %v1831
    %v1838 = vsub.f32 %v1804, %v1832
    %v1839 = vsub.f32 %v1805, %v1833
    %v1840 = vmul.f32 %v1834, %v1834
    %v1841 = vmul.f32 %v1835, %v1835
    %v1842 = vmul.f32 %v1836, %v1836
    %v1843 = vmul.f32 %v1837, %v1837
    %v1844 = vmul.f32 %v1838, %v1838
    %v1845 = vmul.f32 %v1839, %v1839
    %v1846 = vsel %vm199, %v1840, 0.0
    %1847 = vadd.xlane.f32.xlu0 %v1846
    %v1848 = vpop.xlane.xlu0 %1847
    %v1849 = vsel %vm199, %v1841, 0.0
    %1850 = vadd.xlane.f32.xlu0 %v1849
    %v1851 = vpop.xlane.xlu0 %1850
    %v1852 = vsel %vm199, %v1842, 0.0
    %1853 = vadd.xlane.f32.xlu0 %v1852
    %v1854 = vpop.xlane.xlu0 %1853
    %v1855 = vsel %vm199, %v1843, 0.0
    %1856 = vadd.xlane.f32.xlu0 %v1855
    %v1857 = vpop.xlane.xlu0 %1856
    %v1858 = vsel %vm199, %v1844, 0.0
    %1859 = vadd.xlane.f32.xlu0 %v1858
    %v1860 = vpop.xlane.xlu0 %1859
    %v1861 = vsel %vm199, %v1845, 0.0
    %1862 = vadd.xlane.f32.xlu0 %v1861
    %v1863 = vpop.xlane.xlu0 %1862
    %v1864 = vmul.f32 %v1848, %v218
    %v1865 = vmul.f32 %v1851, %v218
    %v1866 = vmul.f32 %v1854, %v218
    %v1867 = vmul.f32 %v1857, %v218
    %v1868 = vmul.f32 %v1860, %v218
    %v1869 = vmul.f32 %v1863, %v218
    %v1870 = vadd.f32 %v1864, 1e-12
    %v1871 = vadd.f32 %v1865, 1e-12
    %v1872 = vadd.f32 %v1866, 1e-12
    %v1873 = vadd.f32 %v1867, 1e-12
    %v1874 = vadd.f32 %v1868, 1e-12
    %v1875 = vadd.f32 %v1869, 1e-12
    %v1876 = vrsqrt.pop %v1870
    %v1877 = vrsqrt.pop %v1871
    %v1878 = vrsqrt.pop %v1872
    %v1879 = vrsqrt.pop %v1873
    %v1880 = vrsqrt.pop %v1874
    %v1881 = vrsqrt.pop %v1875
    %v1882 = vmul.f32 %v1834, %v1876
    %v1883 = vmul.f32 %v1835, %v1877
    %v1884 = vmul.f32 %v1836, %v1878
    %v1885 = vmul.f32 %v1837, %v1879
    %v1886 = vmul.f32 %v1838, %v1880
    %v1887 = vmul.f32 %v1839, %v1881
    %v1889 = vlaneseq
    %v1890 = vshrl.u32 %v1889, 7
    %v1891 = vsub.s32 0, %v1890
    %v1892 = vrot.slane %v1807, %v1891
    %v1894 = vmul.f32 %v1882, %v1892
    %v1895 = vmul.f32 %v1883, %v1892
    %v1896 = vmul.f32 %v1884, %v1892
    %v1897 = vmul.f32 %v1885, %v1892
    %v1898 = vmul.f32 %v1886, %v1892
    %v1899 = vmul.f32 %v1887, %v1892
    %v1901 = vlaneseq
    %v1902 = vshrl.u32 %v1901, 7
    %v1903 = vsub.s32 0, %v1902
    %v1904 = vrot.slane %v1809, %v1903
    %v1906 = vadd.f32 %v1894, %v1904
    %v1907 = vadd.f32 %v1895, %v1904
    %v1908 = vadd.f32 %v1896, %v1904
    %v1909 = vadd.f32 %v1897, %v1904
    %v1910 = vadd.f32 %v1898, %v1904
    %v1911 = vadd.f32 %v1899, %v1904
    %s1912 = scalar_lea.vmem %s7, 32
    %v1913 = vld [vmem:[%s1912] sm:$0xff]
    %v1914 = vld [vmem:[%s1912 + $0x8] sm:$0xff]
    %v1915 = vld [vmem:[%s1912 + $0x10] sm:$0xff]
    %v1916 = vld [vmem:[%s1912 + $0x18] sm:$0xff]
    %s1917 = scalar_lea.vmem %s8, 1
    %v1918 = vld [vmem:[%s1917] sm:$0x1]
    %v1920 = vlaneseq
    %v1921 = vshrl.u32 %v1920, 7
    %v1922 = vsub.s32 0, %v1921
    %v1923 = vrot.slane %v1918, %v1922
    %v1926 = vsel %vm199, %v1906, 0
    %v1929 = vsel %vm199, %v1907, 0
    %v1932 = vsel %vm199, %v1908, 0
    %v1935 = vsel %vm199, %v1909, 0
    %v1938 = vsel %vm199, %v1910, 0
    %v1941 = vsel %vm199, %v1911, 0
    %1943 = vmatprep.subr.mxu0 0.0
    %1944 = vmatpush1.msra.mxu0 %v1913
    %1945 = vmatprep.subr.mxu0 0.0
    %1946 = vmatpush1.msra.mxu0 %v1914
    %1947 = vmatprep.subr.mxu0 0.0
    %1948 = vmatpush1.msra.mxu0 %v1915
    %1949 = vmatprep.subr.mxu0 0.0
    %1950 = vmatpush1.msra.mxu0 %v1916
    %1951 = vmatprep.subr.mxu0 0.0
    %1952 = vmatpush1.msra.mxu0 0.0
    %1953 = vmatprep.subr.mxu0 0.0
    %1954 = vmatpush1.msra.mxu0 0.0
    %1955 = vmatprep.subr.mxu0 0.0
    %1956 = vmatpush1.msra.mxu0 0.0
    %1957 = vmatprep.subr.mxu0 0.0
    %1958 = vmatpush1.msra.mxu0 0.0
    %1959 = vmatprep.subr.mxu0 0.0
    %1960 = vmatpush1.msra.mxu0 0.0
    %1961 = vmatprep.subr.mxu0 0.0
    %1962 = vmatpush1.msra.mxu0 0.0
    %1963 = vmatprep.subr.mxu0 0.0
    %1964 = vmatpush1.msra.mxu0 0.0
    %1965 = vmatprep.subr.mxu0 0.0
    %1966 = vmatpush1.msra.mxu0 0.0
    %1967 = vmatprep.subr.mxu0 0.0
    %1968 = vmatpush1.msra.mxu0 0.0
    %1969 = vmatprep.subr.mxu0 0.0
    %1970 = vmatpush1.msra.mxu0 0.0
    %1971 = vmatprep.subr.mxu0 0.0
    %1972 = vmatpush1.msra.mxu0 0.0
    %1973 = vmatprep.subr.mxu0 0.0
    %1974 = vmatpush1.msra.mxu0 0.0
    %1975 = vmatprep.subr.mxu0 0.0
    %1976 = vmatpush1.msra.mxu0 0.0
    %1977 = vmatprep.subr.mxu0 0.0
    %1978 = vmatpush1.msra.mxu0 0.0
    %1979 = vmatprep.subr.mxu0 0.0
    %1980 = vmatpush1.msra.mxu0 0.0
    %1981 = vmatprep.subr.mxu0 0.0
    %1982 = vmatpush1.msra.mxu0 0.0
    %1983 = vmatprep.subr.mxu0 0.0
    %1984 = vmatpush1.msra.mxu0 0.0
    %1985 = vmatprep.subr.mxu0 0.0
    %1986 = vmatpush1.msra.mxu0 0.0
    %1987 = vmatprep.subr.mxu0 0.0
    %1988 = vmatpush1.msra.mxu0 0.0
    %1989 = vmatprep.subr.mxu0 0.0
    %1990 = vmatpush1.msra.mxu0 0.0
    %1991 = vmatprep.subr.mxu0 0.0
    %1992 = vmatpush1.msra.mxu0 0.0
    %1993 = vmatprep.subr.mxu0 0.0
    %1994 = vmatpush1.msra.mxu0 0.0
    %1995 = vmatprep.subr.mxu0 0.0
    %1996 = vmatpush1.msra.mxu0 0.0
    %1997 = vmatprep.subr.mxu0 0.0
    %1998 = vmatpush1.msra.mxu0 0.0
    %1999 = vmatprep.subr.mxu0 0.0
    %2000 = vmatpush1.msra.mxu0 0.0
    %2001 = vmatprep.subr.mxu0 0.0
    %2002 = vmatpush1.msra.mxu0 0.0
    %2003 = vmatprep.subr.mxu0 0.0
    %2004 = vmatpush1.msra.mxu0 0.0
    %2005 = vmatprep.subr.mxu0 0.0
    %2006 = vmatpush1.msra.mxu0 0.0
    %2007 = vmatprep.mubr.f32.mxu0 0.0
    %2008 = vmatmul.mubr.f32.gmra.mrb[0].mxu0 %v1926
    %v2009 = vpop.f32.mrb[0].mxu0
    %v2010 = vadd.f32 %v1923, %v2009
    %v2011 = vpop.f32.mrb[0].mxu0
    %2012 = vmatprep.mubr.f32.mxu0 0.0
    %2013 = vmatmul.mubr.f32.gmra.mrb[0].mxu0 %v1929
    %v2014 = vpop.f32.mrb[0].mxu0
    %v2015 = vadd.f32 %v1923, %v2014
    %v2016 = vpop.f32.mrb[0].mxu0
    %2017 = vmatprep.mubr.f32.mxu0 0.0
    %2018 = vmatmul.mubr.f32.gmra.mrb[0].mxu0 %v1932
    %v2019 = vpop.f32.mrb[0].mxu0
    %v2020 = vadd.f32 %v1923, %v2019
    %v2021 = vpop.f32.mrb[0].mxu0
    %2022 = vmatprep.mubr.f32.mxu0 0.0
    %2023 = vmatmul.mubr.f32.gmra.mrb[0].mxu0 %v1935
    %v2024 = vpop.f32.mrb[0].mxu0
    %v2025 = vadd.f32 %v1923, %v2024
    %v2026 = vpop.f32.mrb[0].mxu0
    %2027 = vmatprep.mubr.f32.mxu0 0.0
    %2028 = vmatmul.mubr.f32.gmra.mrb[0].mxu0 %v1938
    %v2029 = vpop.f32.mrb[0].mxu0
    %v2030 = vadd.f32 %v1923, %v2029
    %v2031 = vpop.f32.mrb[0].mxu0
    %2032 = vmatprep.mubr.f32.mxu0 0.0
    %2033 = vmatmul.mubr.f32.gmra.mrb[0].mxu0 %v1941
    %v2034 = vpop.f32.mrb[0].mxu0
    %v2035 = vadd.f32 %v1923, %v2034
    %v2036 = vpop.f32.mrb[0].mxu0
    %2037 = vdwg.mxu0
    %2044 = vrot.lane.b32.xlu0 %v2010, 96
    %v2045 = vpop.permute.xlu0 %2044
    %2046 = vrot.lane.b32.xlu0 %v2015, 96
    %v2047 = vpop.permute.xlu0 %2046
    %2048 = vrot.lane.b32.xlu0 %v2020, 96
    %v2049 = vpop.permute.xlu0 %2048
    %2050 = vrot.lane.b32.xlu0 %v2025, 96
    %v2051 = vpop.permute.xlu0 %2050
    %2052 = vrot.lane.b32.xlu0 %v2030, 96
    %v2053 = vpop.permute.xlu0 %2052
    %2054 = vrot.lane.b32.xlu0 %v2035, 96
    %v2055 = vpop.permute.xlu0 %2054
    %v2056 = vsel %vm77, %v2010, 0
    %v2058 = vsel %vm77, %v2015, 0
    %v2060 = vsel %vm77, %v2020, 0
    %v2062 = vsel %vm77, %v2025, 0
    %v2064 = vsel %vm77, %v2030, 0
    %v2066 = vsel %vm77, %v2035, 0
    %v2068 = vsel %vm77, %v2045, 0
    %v2070 = vsel %vm77, %v2047, 0
    %v2072 = vsel %vm77, %v2049, 0
    %v2074 = vsel %vm77, %v2051, 0
    %v2076 = vsel %vm77, %v2053, 0
    %v2078 = vsel %vm77, %v2055, 0
    %2080 = vmatprep.subr.mxu0 0.0
    %2081 = vmatpush1.xpose.msra.mxu0 %v2068
    %2082 = vmatprep.subr.mxu0 0.0
    %2083 = vmatpush1.xpose.msra.mxu0 %v2070
    %2084 = vmatprep.subr.mxu0 0.0
    %2085 = vmatpush1.xpose.msra.mxu0 %v2072
    %2086 = vmatprep.subr.mxu0 0.0
    %2087 = vmatpush1.xpose.msra.mxu0 %v2074
    %2088 = vmatprep.subr.mxu0 0.0
    %2089 = vmatpush1.xpose.msra.mxu0 %v2076
    %2090 = vmatprep.subr.mxu0 0.0
    %2091 = vmatpush1.xpose.msra.mxu0 %v2078
    %2092 = vmatprep.subr.mxu0 0.0
    %2093 = vmatpush1.xpose.msra.mxu0 0.0
    %2094 = vmatprep.subr.mxu0 0.0
    %2095 = vmatpush1.xpose.msra.mxu0 0.0
    %2096 = vmatprep.subr.mxu0 0.0
    %2097 = vmatpush1.xpose.msra.mxu0 0.0
    %2098 = vmatprep.subr.mxu0 0.0
    %2099 = vmatpush1.xpose.msra.mxu0 0.0
    %2100 = vmatprep.subr.mxu0 0.0
    %2101 = vmatpush1.xpose.msra.mxu0 0.0
    %2102 = vmatprep.subr.mxu0 0.0
    %2103 = vmatpush1.xpose.msra.mxu0 0.0
    %2104 = vmatprep.subr.mxu0 0.0
    %2105 = vmatpush1.xpose.msra.mxu0 0.0
    %2106 = vmatprep.subr.mxu0 0.0
    %2107 = vmatpush1.xpose.msra.mxu0 0.0
    %2108 = vmatprep.subr.mxu0 0.0
    %2109 = vmatpush1.xpose.msra.mxu0 0.0
    %2110 = vmatprep.subr.mxu0 0.0
    %2111 = vmatpush1.xpose.msra.mxu0 0.0
    %2112 = vmatprep.subr.mxu0 0.0
    %2113 = vmatpush1.xpose.msra.mxu0 0.0
    %2114 = vmatprep.subr.mxu0 0.0
    %2115 = vmatpush1.xpose.msra.mxu0 0.0
    %2116 = vmatprep.subr.mxu0 0.0
    %2117 = vmatpush1.xpose.msra.mxu0 0.0
    %2118 = vmatprep.subr.mxu0 0.0
    %2119 = vmatpush1.xpose.msra.mxu0 0.0
    %2120 = vmatprep.subr.mxu0 0.0
    %2121 = vmatpush1.xpose.msra.mxu0 0.0
    %2122 = vmatprep.subr.mxu0 0.0
    %2123 = vmatpush1.xpose.msra.mxu0 0.0
    %2124 = vmatprep.subr.mxu0 0.0
    %2125 = vmatpush1.xpose.msra.mxu0 0.0
    %2126 = vmatprep.subr.mxu0 0.0
    %2127 = vmatpush1.xpose.msra.mxu0 0.0
    %2128 = vmatprep.subr.mxu0 0.0
    %2129 = vmatpush1.xpose.msra.mxu0 0.0
    %2130 = vmatprep.subr.mxu0 0.0
    %2131 = vmatpush1.xpose.msra.mxu0 0.0
    %2132 = vmatprep.subr.mxu0 0.0
    %2133 = vmatpush1.xpose.msra.mxu0 0.0
    %2134 = vmatprep.subr.mxu0 0.0
    %2135 = vmatpush1.xpose.msra.mxu0 0.0
    %2136 = vmatprep.subr.mxu0 0.0
    %2137 = vmatpush1.xpose.msra.mxu0 0.0
    %2138 = vmatprep.subr.mxu0 0.0
    %2139 = vmatpush1.xpose.msra.mxu0 0.0
    %2140 = vmatprep.subr.mxu0 0.0
    %2141 = vmatpush1.xpose.msra.mxu0 0.0
    %2142 = vmatprep.subr.mxu0 0.0
    %2143 = vmatpush1.xpose.msra.mxu0 0.0
    %2144 = vmatprep.mubr.f32.mxu0 0.0
    %2145 = vmatmul.mubr.f32.gmra.mrb[0].mxu0 %v2056
    %v2146 = vpop.f32.mrb[0].mxu0
    %v2147 = vadd.f32 0.0, %v2146
    %v2148 = vpop.f32.mrb[0].mxu0
    %2149 = vmatprep.mubr.f32.mxu0 0.0
    %2150 = vmatmul.mubr.f32.gmra.mrb[0].mxu0 %v2058
    %v2151 = vpop.f32.mrb[0].mxu0
    %v2152 = vadd.f32 0.0, %v2151
    %v2153 = vpop.f32.mrb[0].mxu0
    %2154 = vmatprep.mubr.f32.mxu0 0.0
    %2155 = vmatmul.mubr.f32.gmra.mrb[0].mxu0 %v2060
    %v2156 = vpop.f32.mrb[0].mxu0
    %v2157 = vadd.f32 0.0, %v2156
    %v2158 = vpop.f32.mrb[0].mxu0
    %2159 = vmatprep.mubr.f32.mxu0 0.0
    %2160 = vmatmul.mubr.f32.gmra.mrb[0].mxu0 %v2062
    %v2161 = vpop.f32.mrb[0].mxu0
    %v2162 = vadd.f32 0.0, %v2161
    %v2163 = vpop.f32.mrb[0].mxu0
    %2164 = vmatprep.mubr.f32.mxu0 0.0
    %2165 = vmatmul.mubr.f32.gmra.mrb[0].mxu0 %v2064
    %v2166 = vpop.f32.mrb[0].mxu0
    %v2167 = vadd.f32 0.0, %v2166
    %v2168 = vpop.f32.mrb[0].mxu0
    %2169 = vmatprep.mubr.f32.mxu0 0.0
    %2170 = vmatmul.mubr.f32.gmra.mrb[0].mxu0 %v2066
    %v2171 = vpop.f32.mrb[0].mxu0
    %v2172 = vadd.f32 0.0, %v2171
    %v2173 = vpop.f32.mrb[0].mxu0
    %2174 = vdwg.mxu0
    %v2175 = vmul.f32 %v2147, 0.25
    %v2176 = vmul.f32 %v2152, 0.25
    %v2177 = vmul.f32 %v2157, 0.25
    %v2178 = vmul.f32 %v2162, 0.25
    %v2179 = vmul.f32 %v2167, 0.25
    %v2180 = vmul.f32 %v2172, 0.25
    %v2181 = vadd.f32 %v2175, %v191
    %v2182 = vadd.f32 %v2176, %v192
    %v2183 = vadd.f32 %v2177, %v193
    %v2184 = vadd.f32 %v2178, %v194
    %v2185 = vadd.f32 %v2179, %v195
    %v2186 = vadd.f32 %v2180, %v196
    %v2187 = vsel %vm576, %v2181, -inf
    %2188 = vmax.xlane.f32.xlu0 %v2187
    %v2189 = vpop.xlane.xlu0 %2188
    %v2190 = vsel %vm576, %v2182, -inf
    %2191 = vmax.xlane.f32.xlu0 %v2190
    %v2192 = vpop.xlane.xlu0 %2191
    %v2193 = vsel %vm576, %v2183, -inf
    %2194 = vmax.xlane.f32.xlu0 %v2193
    %v2195 = vpop.xlane.xlu0 %2194
    %v2196 = vsel %vm576, %v2184, -inf
    %2197 = vmax.xlane.f32.xlu0 %v2196
    %v2198 = vpop.xlane.xlu0 %2197
    %v2199 = vsel %vm576, %v2185, -inf
    %2200 = vmax.xlane.f32.xlu0 %v2199
    %v2201 = vpop.xlane.xlu0 %2200
    %v2202 = vsel %vm576, %v2186, -inf
    %2203 = vmax.xlane.f32.xlu0 %v2202
    %v2204 = vpop.xlane.xlu0 %2203
    %v2205 = vsub.f32 %v2181, %v2189
    %v2206 = vsub.f32 %v2182, %v2192
    %v2207 = vsub.f32 %v2183, %v2195
    %v2208 = vsub.f32 %v2184, %v2198
    %v2209 = vsub.f32 %v2185, %v2201
    %v2210 = vsub.f32 %v2186, %v2204
    %v2211 = vmul.f32 %v2205, 1.442695
    %v2212 = vpow.pop %v2211
    %v2213 = vmul.f32 %v2206, 1.442695
    %v2214 = vpow.pop %v2213
    %v2215 = vmul.f32 %v2207, 1.442695
    %v2216 = vpow.pop %v2215
    %v2217 = vmul.f32 %v2208, 1.442695
    %v2218 = vpow.pop %v2217
    %v2219 = vmul.f32 %v2209, 1.442695
    %v2220 = vpow.pop %v2219
    %v2221 = vmul.f32 %v2210, 1.442695
    %v2222 = vpow.pop %v2221
    %v2223 = vsel %vm576, %v2212, 0.0
    %2224 = vadd.xlane.f32.xlu0 %v2223
    %v2225 = vpop.xlane.xlu0 %2224
    %v2226 = vsel %vm576, %v2214, 0.0
    %2227 = vadd.xlane.f32.xlu0 %v2226
    %v2228 = vpop.xlane.xlu0 %2227
    %v2229 = vsel %vm576, %v2216, 0.0
    %2230 = vadd.xlane.f32.xlu0 %v2229
    %v2231 = vpop.xlane.xlu0 %2230
    %v2232 = vsel %vm576, %v2218, 0.0
    %2233 = vadd.xlane.f32.xlu0 %v2232
    %v2234 = vpop.xlane.xlu0 %2233
    %v2235 = vsel %vm576, %v2220, 0.0
    %2236 = vadd.xlane.f32.xlu0 %v2235
    %v2237 = vpop.xlane.xlu0 %2236
    %v2238 = vsel %vm576, %v2222, 0.0
    %2239 = vadd.xlane.f32.xlu0 %v2238
    %v2240 = vpop.xlane.xlu0 %2239
    %v2241 = vrcp.pop %v2225
    %v2242 = vrcp.pop %v2228
    %v2243 = vrcp.pop %v2231
    %v2244 = vrcp.pop %v2234
    %v2245 = vrcp.pop %v2237
    %v2246 = vrcp.pop %v2240
    %v2247 = vmul.f32 %v2212, %v2241
    %v2248 = vmul.f32 %v2214, %v2242
    %v2249 = vmul.f32 %v2216, %v2243
    %v2250 = vmul.f32 %v2218, %v2244
    %v2251 = vmul.f32 %v2220, %v2245
    %v2252 = vmul.f32 %v2222, %v2246
    %2253 = vrot.lane.b32.xlu0 %v2010, 64
    %v2254 = vpop.permute.xlu0 %2253
    %2255 = vrot.lane.b32.xlu0 %v2015, 64
    %v2256 = vpop.permute.xlu0 %2255
    %2257 = vrot.lane.b32.xlu0 %v2020, 64
    %v2258 = vpop.permute.xlu0 %2257
    %2259 = vrot.lane.b32.xlu0 %v2025, 64
    %v2260 = vpop.permute.xlu0 %2259
    %2261 = vrot.lane.b32.xlu0 %v2030, 64
    %v2262 = vpop.permute.xlu0 %2261
    %2263 = vrot.lane.b32.xlu0 %v2035, 64
    %v2264 = vpop.permute.xlu0 %2263
    %v2272 = vsel %vm576, %v2247, 0
    %v2275 = vsel %vm576, %v2248, 0
    %v2278 = vsel %vm576, %v2249, 0
    %v2281 = vsel %vm576, %v2250, 0
    %v2284 = vsel %vm576, %v2251, 0
    %v2287 = vsel %vm576, %v2252, 0
    %2289 = vmatprep.subr.mxu0 0.0
    %2290 = vmatpush1.msra.mxu0 %v2254
    %2291 = vmatprep.subr.mxu0 0.0
    %2292 = vmatpush1.msra.mxu0 %v2256
    %2293 = vmatprep.subr.mxu0 0.0
    %2294 = vmatpush1.msra.mxu0 %v2258
    %2295 = vmatprep.subr.mxu0 0.0
    %2296 = vmatpush1.msra.mxu0 %v2260
    %2297 = vmatprep.subr.mxu0 0.0
    %2298 = vmatpush1.msra.mxu0 %v2262
    %2299 = vmatprep.subr.mxu0 0.0
    %2300 = vmatpush1.msra.mxu0 %v2264
    %2301 = vmatprep.subr.mxu0 0.0
    %2302 = vmatpush1.msra.mxu0 0.0
    %2303 = vmatprep.subr.mxu0 0.0
    %2304 = vmatpush1.msra.mxu0 0.0
    %2305 = vmatprep.subr.mxu0 0.0
    %2306 = vmatpush1.msra.mxu0 0.0
    %2307 = vmatprep.subr.mxu0 0.0
    %2308 = vmatpush1.msra.mxu0 0.0
    %2309 = vmatprep.subr.mxu0 0.0
    %2310 = vmatpush1.msra.mxu0 0.0
    %2311 = vmatprep.subr.mxu0 0.0
    %2312 = vmatpush1.msra.mxu0 0.0
    %2313 = vmatprep.subr.mxu0 0.0
    %2314 = vmatpush1.msra.mxu0 0.0
    %2315 = vmatprep.subr.mxu0 0.0
    %2316 = vmatpush1.msra.mxu0 0.0
    %2317 = vmatprep.subr.mxu0 0.0
    %2318 = vmatpush1.msra.mxu0 0.0
    %2319 = vmatprep.subr.mxu0 0.0
    %2320 = vmatpush1.msra.mxu0 0.0
    %2321 = vmatprep.subr.mxu0 0.0
    %2322 = vmatpush1.msra.mxu0 0.0
    %2323 = vmatprep.subr.mxu0 0.0
    %2324 = vmatpush1.msra.mxu0 0.0
    %2325 = vmatprep.subr.mxu0 0.0
    %2326 = vmatpush1.msra.mxu0 0.0
    %2327 = vmatprep.subr.mxu0 0.0
    %2328 = vmatpush1.msra.mxu0 0.0
    %2329 = vmatprep.subr.mxu0 0.0
    %2330 = vmatpush1.msra.mxu0 0.0
    %2331 = vmatprep.subr.mxu0 0.0
    %2332 = vmatpush1.msra.mxu0 0.0
    %2333 = vmatprep.subr.mxu0 0.0
    %2334 = vmatpush1.msra.mxu0 0.0
    %2335 = vmatprep.subr.mxu0 0.0
    %2336 = vmatpush1.msra.mxu0 0.0
    %2337 = vmatprep.subr.mxu0 0.0
    %2338 = vmatpush1.msra.mxu0 0.0
    %2339 = vmatprep.subr.mxu0 0.0
    %2340 = vmatpush1.msra.mxu0 0.0
    %2341 = vmatprep.subr.mxu0 0.0
    %2342 = vmatpush1.msra.mxu0 0.0
    %2343 = vmatprep.subr.mxu0 0.0
    %2344 = vmatpush1.msra.mxu0 0.0
    %2345 = vmatprep.subr.mxu0 0.0
    %2346 = vmatpush1.msra.mxu0 0.0
    %2347 = vmatprep.subr.mxu0 0.0
    %2348 = vmatpush1.msra.mxu0 0.0
    %2349 = vmatprep.subr.mxu0 0.0
    %2350 = vmatpush1.msra.mxu0 0.0
    %2351 = vmatprep.subr.mxu0 0.0
    %2352 = vmatpush1.msra.mxu0 0.0
    %2353 = vmatprep.mubr.f32.mxu0 0.0
    %2354 = vmatmul.mubr.f32.gmra.mrb[0].mxu0 %v2272
    %v2355 = vpop.f32.mrb[0].mxu0
    %v2356 = vadd.f32 0.0, %v2355
    %v2357 = vpop.f32.mrb[0].mxu0
    %2358 = vmatprep.mubr.f32.mxu0 0.0
    %2359 = vmatmul.mubr.f32.gmra.mrb[0].mxu0 %v2275
    %v2360 = vpop.f32.mrb[0].mxu0
    %v2361 = vadd.f32 0.0, %v2360
    %v2362 = vpop.f32.mrb[0].mxu0
    %2363 = vmatprep.mubr.f32.mxu0 0.0
    %2364 = vmatmul.mubr.f32.gmra.mrb[0].mxu0 %v2278
    %v2365 = vpop.f32.mrb[0].mxu0
    %v2366 = vadd.f32 0.0, %v2365
    %v2367 = vpop.f32.mrb[0].mxu0
    %2368 = vmatprep.mubr.f32.mxu0 0.0
    %2369 = vmatmul.mubr.f32.gmra.mrb[0].mxu0 %v2281
    %v2370 = vpop.f32.mrb[0].mxu0
    %v2371 = vadd.f32 0.0, %v2370
    %v2372 = vpop.f32.mrb[0].mxu0
    %2373 = vmatprep.mubr.f32.mxu0 0.0
    %2374 = vmatmul.mubr.f32.gmra.mrb[0].mxu0 %v2284
    %v2375 = vpop.f32.mrb[0].mxu0
    %v2376 = vadd.f32 0.0, %v2375
    %v2377 = vpop.f32.mrb[0].mxu0
    %2378 = vmatprep.mubr.f32.mxu0 0.0
    %2379 = vmatmul.mubr.f32.gmra.mrb[0].mxu0 %v2287
    %v2380 = vpop.f32.mrb[0].mxu0
    %v2381 = vadd.f32 0.0, %v2380
    %v2382 = vpop.f32.mrb[0].mxu0
    %2383 = vdwg.mxu0
    %2384 = vrot.lane.b32.xlu0 %v2010, 112
    %v2385 = vpop.permute.xlu0 %2384
    %2386 = vrot.lane.b32.xlu0 %v2015, 112
    %v2387 = vpop.permute.xlu0 %2386
    %2388 = vrot.lane.b32.xlu0 %v2020, 112
    %v2389 = vpop.permute.xlu0 %2388
    %2390 = vrot.lane.b32.xlu0 %v2025, 112
    %v2391 = vpop.permute.xlu0 %2390
    %2392 = vrot.lane.b32.xlu0 %v2030, 112
    %v2393 = vpop.permute.xlu0 %2392
    %2394 = vrot.lane.b32.xlu0 %v2035, 112
    %v2395 = vpop.permute.xlu0 %2394
    %2396 = vrot.lane.b32.xlu0 %v2010, 80
    %v2397 = vpop.permute.xlu0 %2396
    %2398 = vrot.lane.b32.xlu0 %v2015, 80
    %v2399 = vpop.permute.xlu0 %2398
    %2400 = vrot.lane.b32.xlu0 %v2020, 80
    %v2401 = vpop.permute.xlu0 %2400
    %2402 = vrot.lane.b32.xlu0 %v2025, 80
    %v2403 = vpop.permute.xlu0 %2402
    %2404 = vrot.lane.b32.xlu0 %v2030, 80
    %v2405 = vpop.permute.xlu0 %2404
    %2406 = vrot.lane.b32.xlu0 %v2035, 80
    %v2407 = vpop.permute.xlu0 %2406
    %v2408 = vsel %vm77, %v2385, 0
    %v2410 = vsel %vm77, %v2387, 0
    %v2412 = vsel %vm77, %v2389, 0
    %v2414 = vsel %vm77, %v2391, 0
    %v2416 = vsel %vm77, %v2393, 0
    %v2418 = vsel %vm77, %v2395, 0
    %v2420 = vsel %vm77, %v2397, 0
    %v2422 = vsel %vm77, %v2399, 0
    %v2424 = vsel %vm77, %v2401, 0
    %v2426 = vsel %vm77, %v2403, 0
    %v2428 = vsel %vm77, %v2405, 0
    %v2430 = vsel %vm77, %v2407, 0
    %2432 = vmatprep.subr.mxu0 0.0
    %2433 = vmatpush1.xpose.msra.mxu0 %v2420
    %2434 = vmatprep.subr.mxu0 0.0
    %2435 = vmatpush1.xpose.msra.mxu0 %v2422
    %2436 = vmatprep.subr.mxu0 0.0
    %2437 = vmatpush1.xpose.msra.mxu0 %v2424
    %2438 = vmatprep.subr.mxu0 0.0
    %2439 = vmatpush1.xpose.msra.mxu0 %v2426
    %2440 = vmatprep.subr.mxu0 0.0
    %2441 = vmatpush1.xpose.msra.mxu0 %v2428
    %2442 = vmatprep.subr.mxu0 0.0
    %2443 = vmatpush1.xpose.msra.mxu0 %v2430
    %2444 = vmatprep.subr.mxu0 0.0
    %2445 = vmatpush1.xpose.msra.mxu0 0.0
    %2446 = vmatprep.subr.mxu0 0.0
    %2447 = vmatpush1.xpose.msra.mxu0 0.0
    %2448 = vmatprep.subr.mxu0 0.0
    %2449 = vmatpush1.xpose.msra.mxu0 0.0
    %2450 = vmatprep.subr.mxu0 0.0
    %2451 = vmatpush1.xpose.msra.mxu0 0.0
    %2452 = vmatprep.subr.mxu0 0.0
    %2453 = vmatpush1.xpose.msra.mxu0 0.0
    %2454 = vmatprep.subr.mxu0 0.0
    %2455 = vmatpush1.xpose.msra.mxu0 0.0
    %2456 = vmatprep.subr.mxu0 0.0
    %2457 = vmatpush1.xpose.msra.mxu0 0.0
    %2458 = vmatprep.subr.mxu0 0.0
    %2459 = vmatpush1.xpose.msra.mxu0 0.0
    %2460 = vmatprep.subr.mxu0 0.0
    %2461 = vmatpush1.xpose.msra.mxu0 0.0
    %2462 = vmatprep.subr.mxu0 0.0
    %2463 = vmatpush1.xpose.msra.mxu0 0.0
    %2464 = vmatprep.subr.mxu0 0.0
    %2465 = vmatpush1.xpose.msra.mxu0 0.0
    %2466 = vmatprep.subr.mxu0 0.0
    %2467 = vmatpush1.xpose.msra.mxu0 0.0
    %2468 = vmatprep.subr.mxu0 0.0
    %2469 = vmatpush1.xpose.msra.mxu0 0.0
    %2470 = vmatprep.subr.mxu0 0.0
    %2471 = vmatpush1.xpose.msra.mxu0 0.0
    %2472 = vmatprep.subr.mxu0 0.0
    %2473 = vmatpush1.xpose.msra.mxu0 0.0
    %2474 = vmatprep.subr.mxu0 0.0
    %2475 = vmatpush1.xpose.msra.mxu0 0.0
    %2476 = vmatprep.subr.mxu0 0.0
    %2477 = vmatpush1.xpose.msra.mxu0 0.0
    %2478 = vmatprep.subr.mxu0 0.0
    %2479 = vmatpush1.xpose.msra.mxu0 0.0
    %2480 = vmatprep.subr.mxu0 0.0
    %2481 = vmatpush1.xpose.msra.mxu0 0.0
    %2482 = vmatprep.subr.mxu0 0.0
    %2483 = vmatpush1.xpose.msra.mxu0 0.0
    %2484 = vmatprep.subr.mxu0 0.0
    %2485 = vmatpush1.xpose.msra.mxu0 0.0
    %2486 = vmatprep.subr.mxu0 0.0
    %2487 = vmatpush1.xpose.msra.mxu0 0.0
    %2488 = vmatprep.subr.mxu0 0.0
    %2489 = vmatpush1.xpose.msra.mxu0 0.0
    %2490 = vmatprep.subr.mxu0 0.0
    %2491 = vmatpush1.xpose.msra.mxu0 0.0
    %2492 = vmatprep.subr.mxu0 0.0
    %2493 = vmatpush1.xpose.msra.mxu0 0.0
    %2494 = vmatprep.subr.mxu0 0.0
    %2495 = vmatpush1.xpose.msra.mxu0 0.0
    %2496 = vmatprep.mubr.f32.mxu0 0.0
    %2497 = vmatmul.mubr.f32.gmra.mrb[0].mxu0 %v2408
    %v2498 = vpop.f32.mrb[0].mxu0
    %v2499 = vadd.f32 0.0, %v2498
    %v2500 = vpop.f32.mrb[0].mxu0
    %2501 = vmatprep.mubr.f32.mxu0 0.0
    %2502 = vmatmul.mubr.f32.gmra.mrb[0].mxu0 %v2410
    %v2503 = vpop.f32.mrb[0].mxu0
    %v2504 = vadd.f32 0.0, %v2503
    %v2505 = vpop.f32.mrb[0].mxu0
    %2506 = vmatprep.mubr.f32.mxu0 0.0
    %2507 = vmatmul.mubr.f32.gmra.mrb[0].mxu0 %v2412
    %v2508 = vpop.f32.mrb[0].mxu0
    %v2509 = vadd.f32 0.0, %v2508
    %v2510 = vpop.f32.mrb[0].mxu0
    %2511 = vmatprep.mubr.f32.mxu0 0.0
    %2512 = vmatmul.mubr.f32.gmra.mrb[0].mxu0 %v2414
    %v2513 = vpop.f32.mrb[0].mxu0
    %v2514 = vadd.f32 0.0, %v2513
    %v2515 = vpop.f32.mrb[0].mxu0
    %2516 = vmatprep.mubr.f32.mxu0 0.0
    %2517 = vmatmul.mubr.f32.gmra.mrb[0].mxu0 %v2416
    %v2518 = vpop.f32.mrb[0].mxu0
    %v2519 = vadd.f32 0.0, %v2518
    %v2520 = vpop.f32.mrb[0].mxu0
    %2521 = vmatprep.mubr.f32.mxu0 0.0
    %2522 = vmatmul.mubr.f32.gmra.mrb[0].mxu0 %v2418
    %v2523 = vpop.f32.mrb[0].mxu0
    %v2524 = vadd.f32 0.0, %v2523
    %v2525 = vpop.f32.mrb[0].mxu0
    %2526 = vdwg.mxu0
    %v2527 = vmul.f32 %v2499, 0.25
    %v2528 = vmul.f32 %v2504, 0.25
    %v2529 = vmul.f32 %v2509, 0.25
    %v2530 = vmul.f32 %v2514, 0.25
    %v2531 = vmul.f32 %v2519, 0.25
    %v2532 = vmul.f32 %v2524, 0.25
    %v2533 = vadd.f32 %v2527, %v191
    %v2534 = vadd.f32 %v2528, %v192
    %v2535 = vadd.f32 %v2529, %v193
    %v2536 = vadd.f32 %v2530, %v194
    %v2537 = vadd.f32 %v2531, %v195
    %v2538 = vadd.f32 %v2532, %v196
    %v2539 = vsel %vm576, %v2533, -inf
    %2540 = vmax.xlane.f32.xlu0 %v2539
    %v2541 = vpop.xlane.xlu0 %2540
    %v2542 = vsel %vm576, %v2534, -inf
    %2543 = vmax.xlane.f32.xlu0 %v2542
    %v2544 = vpop.xlane.xlu0 %2543
    %v2545 = vsel %vm576, %v2535, -inf
    %2546 = vmax.xlane.f32.xlu0 %v2545
    %v2547 = vpop.xlane.xlu0 %2546
    %v2548 = vsel %vm576, %v2536, -inf
    %2549 = vmax.xlane.f32.xlu0 %v2548
    %v2550 = vpop.xlane.xlu0 %2549
    %v2551 = vsel %vm576, %v2537, -inf
    %2552 = vmax.xlane.f32.xlu0 %v2551
    %v2553 = vpop.xlane.xlu0 %2552
    %v2554 = vsel %vm576, %v2538, -inf
    %2555 = vmax.xlane.f32.xlu0 %v2554
    %v2556 = vpop.xlane.xlu0 %2555
    %v2557 = vsub.f32 %v2533, %v2541
    %v2558 = vsub.f32 %v2534, %v2544
    %v2559 = vsub.f32 %v2535, %v2547
    %v2560 = vsub.f32 %v2536, %v2550
    %v2561 = vsub.f32 %v2537, %v2553
    %v2562 = vsub.f32 %v2538, %v2556
    %v2563 = vmul.f32 %v2557, 1.442695
    %v2564 = vpow.pop %v2563
    %v2565 = vmul.f32 %v2558, 1.442695
    %v2566 = vpow.pop %v2565
    %v2567 = vmul.f32 %v2559, 1.442695
    %v2568 = vpow.pop %v2567
    %v2569 = vmul.f32 %v2560, 1.442695
    %v2570 = vpow.pop %v2569
    %v2571 = vmul.f32 %v2561, 1.442695
    %v2572 = vpow.pop %v2571
    %v2573 = vmul.f32 %v2562, 1.442695
    %v2574 = vpow.pop %v2573
    %v2575 = vsel %vm576, %v2564, 0.0
    %2576 = vadd.xlane.f32.xlu0 %v2575
    %v2577 = vpop.xlane.xlu0 %2576
    %v2578 = vsel %vm576, %v2566, 0.0
    %2579 = vadd.xlane.f32.xlu0 %v2578
    %v2580 = vpop.xlane.xlu0 %2579
    %v2581 = vsel %vm576, %v2568, 0.0
    %2582 = vadd.xlane.f32.xlu0 %v2581
    %v2583 = vpop.xlane.xlu0 %2582
    %v2584 = vsel %vm576, %v2570, 0.0
    %2585 = vadd.xlane.f32.xlu0 %v2584
    %v2586 = vpop.xlane.xlu0 %2585
    %v2587 = vsel %vm576, %v2572, 0.0
    %2588 = vadd.xlane.f32.xlu0 %v2587
    %v2589 = vpop.xlane.xlu0 %2588
    %v2590 = vsel %vm576, %v2574, 0.0
    %2591 = vadd.xlane.f32.xlu0 %v2590
    %v2592 = vpop.xlane.xlu0 %2591
    %v2593 = vrcp.pop %v2577
    %v2594 = vrcp.pop %v2580
    %v2595 = vrcp.pop %v2583
    %v2596 = vrcp.pop %v2586
    %v2597 = vrcp.pop %v2589
    %v2598 = vrcp.pop %v2592
    %v2599 = vmul.f32 %v2564, %v2593
    %v2600 = vmul.f32 %v2566, %v2594
    %v2601 = vmul.f32 %v2568, %v2595
    %v2602 = vmul.f32 %v2570, %v2596
    %v2603 = vmul.f32 %v2572, %v2597
    %v2604 = vmul.f32 %v2574, %v2598
    %2605 = vrot.lane.b32.xlu0 %v2010, 48
    %v2606 = vpop.permute.xlu0 %2605
    %2607 = vrot.lane.b32.xlu0 %v2015, 48
    %v2608 = vpop.permute.xlu0 %2607
    %2609 = vrot.lane.b32.xlu0 %v2020, 48
    %v2610 = vpop.permute.xlu0 %2609
    %2611 = vrot.lane.b32.xlu0 %v2025, 48
    %v2612 = vpop.permute.xlu0 %2611
    %2613 = vrot.lane.b32.xlu0 %v2030, 48
    %v2614 = vpop.permute.xlu0 %2613
    %2615 = vrot.lane.b32.xlu0 %v2035, 48
    %v2616 = vpop.permute.xlu0 %2615
    %v2624 = vsel %vm576, %v2599, 0
    %v2627 = vsel %vm576, %v2600, 0
    %v2630 = vsel %vm576, %v2601, 0
    %v2633 = vsel %vm576, %v2602, 0
    %v2636 = vsel %vm576, %v2603, 0
    %v2639 = vsel %vm576, %v2604, 0
    %2641 = vmatprep.subr.mxu0 0.0
    %2642 = vmatpush1.msra.mxu0 %v2606
    %2643 = vmatprep.subr.mxu0 0.0
    %2644 = vmatpush1.msra.mxu0 %v2608
    %2645 = vmatprep.subr.mxu0 0.0
    %2646 = vmatpush1.msra.mxu0 %v2610
    %2647 = vmatprep.subr.mxu0 0.0
    %2648 = vmatpush1.msra.mxu0 %v2612
    %2649 = vmatprep.subr.mxu0 0.0
    %2650 = vmatpush1.msra.mxu0 %v2614
    %2651 = vmatprep.subr.mxu0 0.0
    %2652 = vmatpush1.msra.mxu0 %v2616
    %2653 = vmatprep.subr.mxu0 0.0
    %2654 = vmatpush1.msra.mxu0 0.0
    %2655 = vmatprep.subr.mxu0 0.0
    %2656 = vmatpush1.msra.mxu0 0.0
    %2657 = vmatprep.subr.mxu0 0.0
    %2658 = vmatpush1.msra.mxu0 0.0
    %2659 = vmatprep.subr.mxu0 0.0
    %2660 = vmatpush1.msra.mxu0 0.0
    %2661 = vmatprep.subr.mxu0 0.0
    %2662 = vmatpush1.msra.mxu0 0.0
    %2663 = vmatprep.subr.mxu0 0.0
    %2664 = vmatpush1.msra.mxu0 0.0
    %2665 = vmatprep.subr.mxu0 0.0
    %2666 = vmatpush1.msra.mxu0 0.0
    %2667 = vmatprep.subr.mxu0 0.0
    %2668 = vmatpush1.msra.mxu0 0.0
    %2669 = vmatprep.subr.mxu0 0.0
    %2670 = vmatpush1.msra.mxu0 0.0
    %2671 = vmatprep.subr.mxu0 0.0
    %2672 = vmatpush1.msra.mxu0 0.0
    %2673 = vmatprep.subr.mxu0 0.0
    %2674 = vmatpush1.msra.mxu0 0.0
    %2675 = vmatprep.subr.mxu0 0.0
    %2676 = vmatpush1.msra.mxu0 0.0
    %2677 = vmatprep.subr.mxu0 0.0
    %2678 = vmatpush1.msra.mxu0 0.0
    %2679 = vmatprep.subr.mxu0 0.0
    %2680 = vmatpush1.msra.mxu0 0.0
    %2681 = vmatprep.subr.mxu0 0.0
    %2682 = vmatpush1.msra.mxu0 0.0
    %2683 = vmatprep.subr.mxu0 0.0
    %2684 = vmatpush1.msra.mxu0 0.0
    %2685 = vmatprep.subr.mxu0 0.0
    %2686 = vmatpush1.msra.mxu0 0.0
    %2687 = vmatprep.subr.mxu0 0.0
    %2688 = vmatpush1.msra.mxu0 0.0
    %2689 = vmatprep.subr.mxu0 0.0
    %2690 = vmatpush1.msra.mxu0 0.0
    %2691 = vmatprep.subr.mxu0 0.0
    %2692 = vmatpush1.msra.mxu0 0.0
    %2693 = vmatprep.subr.mxu0 0.0
    %2694 = vmatpush1.msra.mxu0 0.0
    %2695 = vmatprep.subr.mxu0 0.0
    %2696 = vmatpush1.msra.mxu0 0.0
    %2697 = vmatprep.subr.mxu0 0.0
    %2698 = vmatpush1.msra.mxu0 0.0
    %2699 = vmatprep.subr.mxu0 0.0
    %2700 = vmatpush1.msra.mxu0 0.0
    %2701 = vmatprep.subr.mxu0 0.0
    %2702 = vmatpush1.msra.mxu0 0.0
    %2703 = vmatprep.subr.mxu0 0.0
    %2704 = vmatpush1.msra.mxu0 0.0
    %2705 = vmatprep.mubr.f32.mxu0 0.0
    %2706 = vmatmul.mubr.f32.gmra.mrb[0].mxu0 %v2624
    %v2707 = vpop.f32.mrb[0].mxu0
    %v2708 = vadd.f32 0.0, %v2707
    %v2709 = vpop.f32.mrb[0].mxu0
    %2710 = vmatprep.mubr.f32.mxu0 0.0
    %2711 = vmatmul.mubr.f32.gmra.mrb[0].mxu0 %v2627
    %v2712 = vpop.f32.mrb[0].mxu0
    %v2713 = vadd.f32 0.0, %v2712
    %v2714 = vpop.f32.mrb[0].mxu0
    %2715 = vmatprep.mubr.f32.mxu0 0.0
    %2716 = vmatmul.mubr.f32.gmra.mrb[0].mxu0 %v2630
    %v2717 = vpop.f32.mrb[0].mxu0
    %v2718 = vadd.f32 0.0, %v2717
    %v2719 = vpop.f32.mrb[0].mxu0
    %2720 = vmatprep.mubr.f32.mxu0 0.0
    %2721 = vmatmul.mubr.f32.gmra.mrb[0].mxu0 %v2633
    %v2722 = vpop.f32.mrb[0].mxu0
    %v2723 = vadd.f32 0.0, %v2722
    %v2724 = vpop.f32.mrb[0].mxu0
    %2725 = vmatprep.mubr.f32.mxu0 0.0
    %2726 = vmatmul.mubr.f32.gmra.mrb[0].mxu0 %v2636
    %v2727 = vpop.f32.mrb[0].mxu0
    %v2728 = vadd.f32 0.0, %v2727
    %v2729 = vpop.f32.mrb[0].mxu0
    %2730 = vmatprep.mubr.f32.mxu0 0.0
    %2731 = vmatmul.mubr.f32.gmra.mrb[0].mxu0 %v2639
    %v2732 = vpop.f32.mrb[0].mxu0
    %v2733 = vadd.f32 0.0, %v2732
    %v2734 = vpop.f32.mrb[0].mxu0
    %2735 = vdwg.mxu0
    %2742 = vrot.lane.b32.xlu0 %v2708, 16
    %v2743 = vpop.permute.xlu0 %2742
    %2744 = vrot.lane.b32.xlu0 %v2713, 16
    %v2745 = vpop.permute.xlu0 %2744
    %2746 = vrot.lane.b32.xlu0 %v2718, 16
    %v2747 = vpop.permute.xlu0 %2746
    %2748 = vrot.lane.b32.xlu0 %v2723, 16
    %v2749 = vpop.permute.xlu0 %2748
    %2750 = vrot.lane.b32.xlu0 %v2728, 16
    %v2751 = vpop.permute.xlu0 %2750
    %2752 = vrot.lane.b32.xlu0 %v2733, 16
    %v2753 = vpop.permute.xlu0 %2752
    %v2760 = vsel %vm77, %v2356, %v2743
    %v2761 = vsel %vm77, %v2361, %v2745
    %v2762 = vsel %vm77, %v2366, %v2747
    %v2763 = vsel %vm77, %v2371, %v2749
    %v2764 = vsel %vm77, %v2376, %v2751
    %v2765 = vsel %vm77, %v2381, %v2753
    %s2766 = scalar_lea.vmem %s9, 32
    %v2767 = vld [vmem:[%s2766] sm:$0xff]
    %v2768 = vld [vmem:[%s2766 + $0x8] sm:$0xff]
    %v2769 = vld [vmem:[%s2766 + $0x10] sm:$0xff]
    %v2770 = vld [vmem:[%s2766 + $0x18] sm:$0xff]
    %v2772 = vsel %vm199, %v2760, 0
    %v2775 = vsel %vm199, %v2761, 0
    %v2778 = vsel %vm199, %v2762, 0
    %v2781 = vsel %vm199, %v2763, 0
    %v2784 = vsel %vm199, %v2764, 0
    %v2787 = vsel %vm199, %v2765, 0
    %2789 = vmatprep.subr.mxu0 0.0
    %2790 = vmatpush1.msra.mxu0 %v2767
    %2791 = vmatprep.subr.mxu0 0.0
    %2792 = vmatpush1.msra.mxu0 %v2768
    %2793 = vmatprep.subr.mxu0 0.0
    %2794 = vmatpush1.msra.mxu0 %v2769
    %2795 = vmatprep.subr.mxu0 0.0
    %2796 = vmatpush1.msra.mxu0 %v2770
    %2797 = vmatprep.subr.mxu0 0.0
    %2798 = vmatpush1.msra.mxu0 0.0
    %2799 = vmatprep.subr.mxu0 0.0
    %2800 = vmatpush1.msra.mxu0 0.0
    %2801 = vmatprep.subr.mxu0 0.0
    %2802 = vmatpush1.msra.mxu0 0.0
    %2803 = vmatprep.subr.mxu0 0.0
    %2804 = vmatpush1.msra.mxu0 0.0
    %2805 = vmatprep.subr.mxu0 0.0
    %2806 = vmatpush1.msra.mxu0 0.0
    %2807 = vmatprep.subr.mxu0 0.0
    %2808 = vmatpush1.msra.mxu0 0.0
    %2809 = vmatprep.subr.mxu0 0.0
    %2810 = vmatpush1.msra.mxu0 0.0
    %2811 = vmatprep.subr.mxu0 0.0
    %2812 = vmatpush1.msra.mxu0 0.0
    %2813 = vmatprep.subr.mxu0 0.0
    %2814 = vmatpush1.msra.mxu0 0.0
    %2815 = vmatprep.subr.mxu0 0.0
    %2816 = vmatpush1.msra.mxu0 0.0
    %2817 = vmatprep.subr.mxu0 0.0
    %2818 = vmatpush1.msra.mxu0 0.0
    %2819 = vmatprep.subr.mxu0 0.0
    %2820 = vmatpush1.msra.mxu0 0.0
    %2821 = vmatprep.subr.mxu0 0.0
    %2822 = vmatpush1.msra.mxu0 0.0
    %2823 = vmatprep.subr.mxu0 0.0
    %2824 = vmatpush1.msra.mxu0 0.0
    %2825 = vmatprep.subr.mxu0 0.0
    %2826 = vmatpush1.msra.mxu0 0.0
    %2827 = vmatprep.subr.mxu0 0.0
    %2828 = vmatpush1.msra.mxu0 0.0
    %2829 = vmatprep.subr.mxu0 0.0
    %2830 = vmatpush1.msra.mxu0 0.0
    %2831 = vmatprep.subr.mxu0 0.0
    %2832 = vmatpush1.msra.mxu0 0.0
    %2833 = vmatprep.subr.mxu0 0.0
    %2834 = vmatpush1.msra.mxu0 0.0
    %2835 = vmatprep.subr.mxu0 0.0
    %2836 = vmatpush1.msra.mxu0 0.0
    %2837 = vmatprep.subr.mxu0 0.0
    %2838 = vmatpush1.msra.mxu0 0.0
    %2839 = vmatprep.subr.mxu0 0.0
    %2840 = vmatpush1.msra.mxu0 0.0
    %2841 = vmatprep.subr.mxu0 0.0
    %2842 = vmatpush1.msra.mxu0 0.0
    %2843 = vmatprep.subr.mxu0 0.0
    %2844 = vmatpush1.msra.mxu0 0.0
    %2845 = vmatprep.subr.mxu0 0.0
    %2846 = vmatpush1.msra.mxu0 0.0
    %2847 = vmatprep.subr.mxu0 0.0
    %2848 = vmatpush1.msra.mxu0 0.0
    %2849 = vmatprep.subr.mxu0 0.0
    %2850 = vmatpush1.msra.mxu0 0.0
    %2851 = vmatprep.subr.mxu0 0.0
    %2852 = vmatpush1.msra.mxu0 0.0
    %2853 = vmatprep.mubr.f32.mxu0 0.0
    %2854 = vmatmul.mubr.f32.gmra.mrb[0].mxu0 %v2772
    %v2855 = vpop.f32.mrb[0].mxu0
    %v2856 = vadd.f32 0.0, %v2855
    %v2857 = vpop.f32.mrb[0].mxu0
    %2858 = vmatprep.mubr.f32.mxu0 0.0
    %2859 = vmatmul.mubr.f32.gmra.mrb[0].mxu0 %v2775
    %v2860 = vpop.f32.mrb[0].mxu0
    %v2861 = vadd.f32 0.0, %v2860
    %v2862 = vpop.f32.mrb[0].mxu0
    %2863 = vmatprep.mubr.f32.mxu0 0.0
    %2864 = vmatmul.mubr.f32.gmra.mrb[0].mxu0 %v2778
    %v2865 = vpop.f32.mrb[0].mxu0
    %v2866 = vadd.f32 0.0, %v2865
    %v2867 = vpop.f32.mrb[0].mxu0
    %2868 = vmatprep.mubr.f32.mxu0 0.0
    %2869 = vmatmul.mubr.f32.gmra.mrb[0].mxu0 %v2781
    %v2870 = vpop.f32.mrb[0].mxu0
    %v2871 = vadd.f32 0.0, %v2870
    %v2872 = vpop.f32.mrb[0].mxu0
    %2873 = vmatprep.mubr.f32.mxu0 0.0
    %2874 = vmatmul.mubr.f32.gmra.mrb[0].mxu0 %v2784
    %v2875 = vpop.f32.mrb[0].mxu0
    %v2876 = vadd.f32 0.0, %v2875
    %v2877 = vpop.f32.mrb[0].mxu0
    %2878 = vmatprep.mubr.f32.mxu0 0.0
    %2879 = vmatmul.mubr.f32.gmra.mrb[0].mxu0 %v2787
    %v2880 = vpop.f32.mrb[0].mxu0
    %v2881 = vadd.f32 0.0, %v2880
    %v2882 = vpop.f32.mrb[0].mxu0
    %2883 = vdwg.mxu0
    %v2884 = vadd.f32 %v1800, %v2856
    %v2885 = vadd.f32 %v1801, %v2861
    %v2886 = vadd.f32 %v1802, %v2866
    %v2887 = vadd.f32 %v1803, %v2871
    %v2888 = vadd.f32 %v1804, %v2876
    %v2889 = vadd.f32 %v1805, %v2881
    %s2890 = scalar_lea.vmem %s10, 1
    %v2891 = vld [vmem:[%s2890] sm:$0x1]
    %v2893 = vlaneseq
    %v2894 = vshrl.u32 %v2893, 7
    %v2895 = vsub.s32 0, %v2894
    %v2896 = vrot.slane %v2891, %v2895
    %v2898 = vadd.f32 %v2884, %v2896
    %v2899 = vadd.f32 %v2885, %v2896
    %v2900 = vadd.f32 %v2886, %v2896
    %v2901 = vadd.f32 %v2887, %v2896
    %v2902 = vadd.f32 %v2888, %v2896
    %v2903 = vadd.f32 %v2889, %v2896
    %s2904 = scalar_lea.vmem %s11, 1
    %v2905 = vld [vmem:[%s2904] sm:$0x1]
    %s2906 = scalar_lea.vmem %s12, 1
    %v2907 = vld [vmem:[%s2906] sm:$0x1]
    %v2908 = vsel %vm199, %v2898, 0.0
    %2909 = vadd.xlane.f32.xlu0 %v2908
    %v2910 = vpop.xlane.xlu0 %2909
    %v2911 = vsel %vm199, %v2899, 0.0
    %2912 = vadd.xlane.f32.xlu0 %v2911
    %v2913 = vpop.xlane.xlu0 %2912
    %v2914 = vsel %vm199, %v2900, 0.0
    %2915 = vadd.xlane.f32.xlu0 %v2914
    %v2916 = vpop.xlane.xlu0 %2915
    %v2917 = vsel %vm199, %v2901, 0.0
    %2918 = vadd.xlane.f32.xlu0 %v2917
    %v2919 = vpop.xlane.xlu0 %2918
    %v2920 = vsel %vm199, %v2902, 0.0
    %2921 = vadd.xlane.f32.xlu0 %v2920
    %v2922 = vpop.xlane.xlu0 %2921
    %v2923 = vsel %vm199, %v2903, 0.0
    %2924 = vadd.xlane.f32.xlu0 %v2923
    %v2925 = vpop.xlane.xlu0 %2924
    %v2926 = vmul.f32 %v2910, %v218
    %v2927 = vmul.f32 %v2913, %v218
    %v2928 = vmul.f32 %v2916, %v218
    %v2929 = vmul.f32 %v2919, %v218
    %v2930 = vmul.f32 %v2922, %v218
    %v2931 = vmul.f32 %v2925, %v218
    %v2932 = vsub.f32 %v2898, %v2926
    %v2933 = vsub.f32 %v2899, %v2927
    %v2934 = vsub.f32 %v2900, %v2928
    %v2935 = vsub.f32 %v2901, %v2929
    %v2936 = vsub.f32 %v2902, %v2930
    %v2937 = vsub.f32 %v2903, %v2931
    %v2938 = vmul.f32 %v2932, %v2932
    %v2939 = vmul.f32 %v2933, %v2933
    %v2940 = vmul.f32 %v2934, %v2934
    %v2941 = vmul.f32 %v2935, %v2935
    %v2942 = vmul.f32 %v2936, %v2936
    %v2943 = vmul.f32 %v2937, %v2937
    %v2944 = vsel %vm199, %v2938, 0.0
    %2945 = vadd.xlane.f32.xlu0 %v2944
    %v2946 = vpop.xlane.xlu0 %2945
    %v2947 = vsel %vm199, %v2939, 0.0
    %2948 = vadd.xlane.f32.xlu0 %v2947
    %v2949 = vpop.xlane.xlu0 %2948
    %v2950 = vsel %vm199, %v2940, 0.0
    %2951 = vadd.xlane.f32.xlu0 %v2950
    %v2952 = vpop.xlane.xlu0 %2951
    %v2953 = vsel %vm199, %v2941, 0.0
    %2954 = vadd.xlane.f32.xlu0 %v2953
    %v2955 = vpop.xlane.xlu0 %2954
    %v2956 = vsel %vm199, %v2942, 0.0
    %2957 = vadd.xlane.f32.xlu0 %v2956
    %v2958 = vpop.xlane.xlu0 %2957
    %v2959 = vsel %vm199, %v2943, 0.0
    %2960 = vadd.xlane.f32.xlu0 %v2959
    %v2961 = vpop.xlane.xlu0 %2960
    %v2962 = vmul.f32 %v2946, %v218
    %v2963 = vmul.f32 %v2949, %v218
    %v2964 = vmul.f32 %v2952, %v218
    %v2965 = vmul.f32 %v2955, %v218
    %v2966 = vmul.f32 %v2958, %v218
    %v2967 = vmul.f32 %v2961, %v218
    %v2968 = vadd.f32 %v2962, 1e-12
    %v2969 = vadd.f32 %v2963, 1e-12
    %v2970 = vadd.f32 %v2964, 1e-12
    %v2971 = vadd.f32 %v2965, 1e-12
    %v2972 = vadd.f32 %v2966, 1e-12
    %v2973 = vadd.f32 %v2967, 1e-12
    %v2974 = vrsqrt.pop %v2968
    %v2975 = vrsqrt.pop %v2969
    %v2976 = vrsqrt.pop %v2970
    %v2977 = vrsqrt.pop %v2971
    %v2978 = vrsqrt.pop %v2972
    %v2979 = vrsqrt.pop %v2973
    %v2980 = vmul.f32 %v2932, %v2974
    %v2981 = vmul.f32 %v2933, %v2975
    %v2982 = vmul.f32 %v2934, %v2976
    %v2983 = vmul.f32 %v2935, %v2977
    %v2984 = vmul.f32 %v2936, %v2978
    %v2985 = vmul.f32 %v2937, %v2979
    %v2987 = vlaneseq
    %v2988 = vshrl.u32 %v2987, 7
    %v2989 = vsub.s32 0, %v2988
    %v2990 = vrot.slane %v2905, %v2989
    %v2992 = vmul.f32 %v2980, %v2990
    %v2993 = vmul.f32 %v2981, %v2990
    %v2994 = vmul.f32 %v2982, %v2990
    %v2995 = vmul.f32 %v2983, %v2990
    %v2996 = vmul.f32 %v2984, %v2990
    %v2997 = vmul.f32 %v2985, %v2990
    %v2999 = vlaneseq
    %v3000 = vshrl.u32 %v2999, 7
    %v3001 = vsub.s32 0, %v3000
    %v3002 = vrot.slane %v2907, %v3001
    %v3004 = vadd.f32 %v2992, %v3002
    %v3005 = vadd.f32 %v2993, %v3002
    %v3006 = vadd.f32 %v2994, %v3002
    %v3007 = vadd.f32 %v2995, %v3002
    %v3008 = vadd.f32 %v2996, %v3002
    %v3009 = vadd.f32 %v2997, %v3002
    %s3010 = scalar_lea.vmem %s13, 32
    %v3011 = vld [vmem:[%s3010] sm:$0xff]
    %v3012 = vld [vmem:[%s3010 + $0x8] sm:$0xff]
    %v3013 = vld [vmem:[%s3010 + $0x10] sm:$0xff]
    %v3014 = vld [vmem:[%s3010 + $0x18] sm:$0xff]
    %s3015 = scalar_lea.vmem %s14, 1
    %v3016 = vld [vmem:[%s3015] sm:$0x1]
    %v3018 = vlaneseq
    %v3019 = vshrl.u32 %v3018, 7
    %v3020 = vsub.s32 0, %v3019
    %v3021 = vrot.slane %v3016, %v3020
    %v3024 = vsel %vm199, %v3004, 0
    %v3027 = vsel %vm199, %v3005, 0
    %v3030 = vsel %vm199, %v3006, 0
    %v3033 = vsel %vm199, %v3007, 0
    %v3036 = vsel %vm199, %v3008, 0
    %v3039 = vsel %vm199, %v3009, 0
    %3041 = vmatprep.subr.mxu0 0.0
    %3042 = vmatpush1.msra.mxu0 %v3011
    %3043 = vmatprep.subr.mxu0 0.0
    %3044 = vmatpush1.msra.mxu0 %v3012
    %3045 = vmatprep.subr.mxu0 0.0
    %3046 = vmatpush1.msra.mxu0 %v3013
    %3047 = vmatprep.subr.mxu0 0.0
    %3048 = vmatpush1.msra.mxu0 %v3014
    %3049 = vmatprep.subr.mxu0 0.0
    %3050 = vmatpush1.msra.mxu0 0.0
    %3051 = vmatprep.subr.mxu0 0.0
    %3052 = vmatpush1.msra.mxu0 0.0
    %3053 = vmatprep.subr.mxu0 0.0
    %3054 = vmatpush1.msra.mxu0 0.0
    %3055 = vmatprep.subr.mxu0 0.0
    %3056 = vmatpush1.msra.mxu0 0.0
    %3057 = vmatprep.subr.mxu0 0.0
    %3058 = vmatpush1.msra.mxu0 0.0
    %3059 = vmatprep.subr.mxu0 0.0
    %3060 = vmatpush1.msra.mxu0 0.0
    %3061 = vmatprep.subr.mxu0 0.0
    %3062 = vmatpush1.msra.mxu0 0.0
    %3063 = vmatprep.subr.mxu0 0.0
    %3064 = vmatpush1.msra.mxu0 0.0
    %3065 = vmatprep.subr.mxu0 0.0
    %3066 = vmatpush1.msra.mxu0 0.0
    %3067 = vmatprep.subr.mxu0 0.0
    %3068 = vmatpush1.msra.mxu0 0.0
    %3069 = vmatprep.subr.mxu0 0.0
    %3070 = vmatpush1.msra.mxu0 0.0
    %3071 = vmatprep.subr.mxu0 0.0
    %3072 = vmatpush1.msra.mxu0 0.0
    %3073 = vmatprep.subr.mxu0 0.0
    %3074 = vmatpush1.msra.mxu0 0.0
    %3075 = vmatprep.subr.mxu0 0.0
    %3076 = vmatpush1.msra.mxu0 0.0
    %3077 = vmatprep.subr.mxu0 0.0
    %3078 = vmatpush1.msra.mxu0 0.0
    %3079 = vmatprep.subr.mxu0 0.0
    %3080 = vmatpush1.msra.mxu0 0.0
    %3081 = vmatprep.subr.mxu0 0.0
    %3082 = vmatpush1.msra.mxu0 0.0
    %3083 = vmatprep.subr.mxu0 0.0
    %3084 = vmatpush1.msra.mxu0 0.0
    %3085 = vmatprep.subr.mxu0 0.0
    %3086 = vmatpush1.msra.mxu0 0.0
    %3087 = vmatprep.subr.mxu0 0.0
    %3088 = vmatpush1.msra.mxu0 0.0
    %3089 = vmatprep.subr.mxu0 0.0
    %3090 = vmatpush1.msra.mxu0 0.0
    %3091 = vmatprep.subr.mxu0 0.0
    %3092 = vmatpush1.msra.mxu0 0.0
    %3093 = vmatprep.subr.mxu0 0.0
    %3094 = vmatpush1.msra.mxu0 0.0
    %3095 = vmatprep.subr.mxu0 0.0
    %3096 = vmatpush1.msra.mxu0 0.0
    %3097 = vmatprep.subr.mxu0 0.0
    %3098 = vmatpush1.msra.mxu0 0.0
    %3099 = vmatprep.subr.mxu0 0.0
    %3100 = vmatpush1.msra.mxu0 0.0
    %3101 = vmatprep.subr.mxu0 0.0
    %3102 = vmatpush1.msra.mxu0 0.0
    %3103 = vmatprep.subr.mxu0 0.0
    %3104 = vmatpush1.msra.mxu0 0.0
    %3105 = vmatprep.mubr.f32.mxu0 0.0
    %3106 = vmatmul.mubr.f32.gmra.mrb[0].mxu0 %v3024
    %v3107 = vpop.f32.mrb[0].mxu0
    %v3108 = vadd.f32 %v3021, %v3107
    %v3109 = vpop.f32.mrb[0].mxu0
    %3110 = vmatprep.mubr.f32.mxu0 0.0
    %3111 = vmatmul.mubr.f32.gmra.mrb[0].mxu0 %v3027
    %v3112 = vpop.f32.mrb[0].mxu0
    %v3113 = vadd.f32 %v3021, %v3112
    %v3114 = vpop.f32.mrb[0].mxu0
    %3115 = vmatprep.mubr.f32.mxu0 0.0
    %3116 = vmatmul.mubr.f32.gmra.mrb[0].mxu0 %v3030
    %v3117 = vpop.f32.mrb[0].mxu0
    %v3118 = vadd.f32 %v3021, %v3117
    %v3119 = vpop.f32.mrb[0].mxu0
    %3120 = vmatprep.mubr.f32.mxu0 0.0
    %3121 = vmatmul.mubr.f32.gmra.mrb[0].mxu0 %v3033
    %v3122 = vpop.f32.mrb[0].mxu0
    %v3123 = vadd.f32 %v3021, %v3122
    %v3124 = vpop.f32.mrb[0].mxu0
    %3125 = vmatprep.mubr.f32.mxu0 0.0
    %3126 = vmatmul.mubr.f32.gmra.mrb[0].mxu0 %v3036
    %v3127 = vpop.f32.mrb[0].mxu0
    %v3128 = vadd.f32 %v3021, %v3127
    %v3129 = vpop.f32.mrb[0].mxu0
    %3130 = vmatprep.mubr.f32.mxu0 0.0
    %3131 = vmatmul.mubr.f32.gmra.mrb[0].mxu0 %v3039
    %v3132 = vpop.f32.mrb[0].mxu0
    %v3133 = vadd.f32 %v3021, %v3132
    %v3134 = vpop.f32.mrb[0].mxu0
    %3135 = vdwg.mxu0
    %v3136 = vmul.f32 %v3108, 0.5
    %v3137 = vmul.f32 %v3113, 0.5
    %v3138 = vmul.f32 %v3118, 0.5
    %v3139 = vmul.f32 %v3123, 0.5
    %v3140 = vmul.f32 %v3128, 0.5
    %v3141 = vmul.f32 %v3133, 0.5
    %v3142 = vmul.f32 %v3108, 0.70710677
    %v3143 = vmul.f32 %v3113, 0.70710677
    %v3144 = vmul.f32 %v3118, 0.70710677
    %v3145 = vmul.f32 %v3123, 0.70710677
    %v3146 = vmul.f32 %v3128, 0.70710677
    %v3147 = vmul.f32 %v3133, 0.70710677
    %vm3148 = vcmp.ge.f32.partialorder %v3142, 0.0
    %vm3149 = vcmp.ge.f32.partialorder %v3143, 0.0
    %vm3150 = vcmp.ge.f32.partialorder %v3144, 0.0
    %vm3151 = vcmp.ge.f32.partialorder %v3145, 0.0
    %vm3152 = vcmp.ge.f32.partialorder %v3146, 0.0
    %vm3153 = vcmp.ge.f32.partialorder %v3147, 0.0
    %v3154 = vsel %vm3148, 1.0, -1.0
    %v3155 = vsel %vm3149, 1.0, -1.0
    %v3156 = vsel %vm3150, 1.0, -1.0
    %v3157 = vsel %vm3151, 1.0, -1.0
    %v3158 = vsel %vm3152, 1.0, -1.0
    %v3159 = vsel %vm3153, 1.0, -1.0
    %v3160 = vand.u32 2147483647, %v3142
    %v3161 = vand.u32 2147483647, %v3143
    %v3162 = vand.u32 2147483647, %v3144
    %v3163 = vand.u32 2147483647, %v3145
    %v3164 = vand.u32 2147483647, %v3146
    %v3165 = vand.u32 2147483647, %v3147
    %v3166 = vmul.f32 %v3160, 0.3275911
    %v3167 = vmul.f32 %v3161, 0.3275911
    %v3168 = vmul.f32 %v3162, 0.3275911
    %v3169 = vmul.f32 %v3163, 0.3275911
    %v3170 = vmul.f32 %v3164, 0.3275911
    %v3171 = vmul.f32 %v3165, 0.3275911
    %v3172 = vadd.f32 %v3166, 1.0
    %v3173 = vadd.f32 %v3167, 1.0
    %v3174 = vadd.f32 %v3168, 1.0
    %v3175 = vadd.f32 %v3169, 1.0
    %v3176 = vadd.f32 %v3170, 1.0
    %v3177 = vadd.f32 %v3171, 1.0
    %v3178 = vrcp.pop %v3172
    %v3179 = vrcp.pop %v3173
    %v3180 = vrcp.pop %v3174
    %v3181 = vrcp.pop %v3175
    %v3182 = vrcp.pop %v3176
    %v3183 = vrcp.pop %v3177
    %v3184 = vmul.f32 %v3178, 1.0614054
    %v3185 = vmul.f32 %v3179, 1.0614054
    %v3186 = vmul.f32 %v3180, 1.0614054
    %v3187 = vmul.f32 %v3181, 1.0614054
    %v3188 = vmul.f32 %v3182, 1.0614054
    %v3189 = vmul.f32 %v3183, 1.0614054
    %v3190 = vadd.f32 %v3184, -1.4531521
    %v3191 = vadd.f32 %v3185, -1.4531521
    %v3192 = vadd.f32 %v3186, -1.4531521
    %v3193 = vadd.f32 %v3187, -1.4531521
    %v3194 = vadd.f32 %v3188, -1.4531521
    %v3195 = vadd.f32 %v3189, -1.4531521
    %v3196 = vmul.f32 %v3190, %v3178
    %v3197 = vmul.f32 %v3191, %v3179
    %v3198 = vmul.f32 %v3192, %v3180
    %v3199 = vmul.f32 %v3193, %v3181
    %v3200 = vmul.f32 %v3194, %v3182
    %v3201 = vmul.f32 %v3195, %v3183
    %v3202 = vadd.f32 %v3196, 1.4214138
    %v3203 = vadd.f32 %v3197, 1.4214138
    %v3204 = vadd.f32 %v3198, 1.4214138
    %v3205 = vadd.f32 %v3199, 1.4214138
    %v3206 = vadd.f32 %v3200, 1.4214138
    %v3207 = vadd.f32 %v3201, 1.4214138
    %v3208 = vmul.f32 %v3202, %v3178
    %v3209 = vmul.f32 %v3203, %v3179
    %v3210 = vmul.f32 %v3204, %v3180
    %v3211 = vmul.f32 %v3205, %v3181
    %v3212 = vmul.f32 %v3206, %v3182
    %v3213 = vmul.f32 %v3207, %v3183
    %v3214 = vadd.f32 %v3208, -0.28449672
    %v3215 = vadd.f32 %v3209, -0.28449672
    %v3216 = vadd.f32 %v3210, -0.28449672
    %v3217 = vadd.f32 %v3211, -0.28449672
    %v3218 = vadd.f32 %v3212, -0.28449672
    %v3219 = vadd.f32 %v3213, -0.28449672
    %v3220 = vmul.f32 %v3214, %v3178
    %v3221 = vmul.f32 %v3215, %v3179
    %v3222 = vmul.f32 %v3216, %v3180
    %v3223 = vmul.f32 %v3217, %v3181
    %v3224 = vmul.f32 %v3218, %v3182
    %v3225 = vmul.f32 %v3219, %v3183
    %v3226 = vadd.f32 %v3220, 0.2548296
    %v3227 = vadd.f32 %v3221, 0.2548296
    %v3228 = vadd.f32 %v3222, 0.2548296
    %v3229 = vadd.f32 %v3223, 0.2548296
    %v3230 = vadd.f32 %v3224, 0.2548296
    %v3231 = vadd.f32 %v3225, 0.2548296
    %v3232 = vmul.f32 %v3226, %v3178
    %v3233 = vmul.f32 %v3227, %v3179
    %v3234 = vmul.f32 %v3228, %v3180
    %v3235 = vmul.f32 %v3229, %v3181
    %v3236 = vmul.f32 %v3230, %v3182
    %v3237 = vmul.f32 %v3231, %v3183
    %v3238 = vsub.f32 0.0, %v3160
    %v3239 = vsub.f32 0.0, %v3161
    %v3240 = vsub.f32 0.0, %v3162
    %v3241 = vsub.f32 0.0, %v3163
    %v3242 = vsub.f32 0.0, %v3164
    %v3243 = vsub.f32 0.0, %v3165
    %v3244 = vmul.f32 %v3238, %v3160
    %v3245 = vmul.f32 %v3239, %v3161
    %v3246 = vmul.f32 %v3240, %v3162
    %v3247 = vmul.f32 %v3241, %v3163
    %v3248 = vmul.f32 %v3242, %v3164
    %v3249 = vmul.f32 %v3243, %v3165
    %v3250 = vmul.f32 %v3244, 1.442695
    %v3251 = vpow.pop %v3250
    %v3252 = vmul.f32 %v3245, 1.442695
    %v3253 = vpow.pop %v3252
    %v3254 = vmul.f32 %v3246, 1.442695
    %v3255 = vpow.pop %v3254
    %v3256 = vmul.f32 %v3247, 1.442695
    %v3257 = vpow.pop %v3256
    %v3258 = vmul.f32 %v3248, 1.442695
    %v3259 = vpow.pop %v3258
    %v3260 = vmul.f32 %v3249, 1.442695
    %v3261 = vpow.pop %v3260
    %v3262 = vmul.f32 %v3232, %v3251
    %v3263 = vmul.f32 %v3233, %v3253
    %v3264 = vmul.f32 %v3234, %v3255
    %v3265 = vmul.f32 %v3235, %v3257
    %v3266 = vmul.f32 %v3236, %v3259
    %v3267 = vmul.f32 %v3237, %v3261
    %v3268 = vsub.f32 1.0, %v3262
    %v3269 = vsub.f32 1.0, %v3263
    %v3270 = vsub.f32 1.0, %v3264
    %v3271 = vsub.f32 1.0, %v3265
    %v3272 = vsub.f32 1.0, %v3266
    %v3273 = vsub.f32 1.0, %v3267
    %v3274 = vmul.f32 %v3154, %v3268
    %v3275 = vmul.f32 %v3155, %v3269
    %v3276 = vmul.f32 %v3156, %v3270
    %v3277 = vmul.f32 %v3157, %v3271
    %v3278 = vmul.f32 %v3158, %v3272
    %v3279 = vmul.f32 %v3159, %v3273
    %v3280 = vadd.f32 %v3274, 1.0
    %v3281 = vadd.f32 %v3275, 1.0
    %v3282 = vadd.f32 %v3276, 1.0
    %v3283 = vadd.f32 %v3277, 1.0
    %v3284 = vadd.f32 %v3278, 1.0
    %v3285 = vadd.f32 %v3279, 1.0
    %v3286 = vmul.f32 %v3136, %v3280
    %v3287 = vmul.f32 %v3137, %v3281
    %v3288 = vmul.f32 %v3138, %v3282
    %v3289 = vmul.f32 %v3139, %v3283
    %v3290 = vmul.f32 %v3140, %v3284
    %v3291 = vmul.f32 %v3141, %v3285
    %s3292 = scalar_lea.vmem %s15, 128
    %v3293 = vld [vmem:[%s3292] sm:$0xff]
    %v3294 = vld [vmem:[%s3292 + $0x8] sm:$0xff]
    %v3295 = vld [vmem:[%s3292 + $0x10] sm:$0xff]
    %v3296 = vld [vmem:[%s3292 + $0x18] sm:$0xff]
    %v3297 = vld [vmem:[%s3292 + $0x20] sm:$0xff]
    %v3298 = vld [vmem:[%s3292 + $0x28] sm:$0xff]
    %v3299 = vld [vmem:[%s3292 + $0x30] sm:$0xff]
    %v3300 = vld [vmem:[%s3292 + $0x38] sm:$0xff]
    %v3301 = vld [vmem:[%s3292 + $0x40] sm:$0xff]
    %v3302 = vld [vmem:[%s3292 + $0x48] sm:$0xff]
    %v3303 = vld [vmem:[%s3292 + $0x50] sm:$0xff]
    %v3304 = vld [vmem:[%s3292 + $0x58] sm:$0xff]
    %v3305 = vld [vmem:[%s3292 + $0x60] sm:$0xff]
    %v3306 = vld [vmem:[%s3292 + $0x68] sm:$0xff]
    %v3307 = vld [vmem:[%s3292 + $0x70] sm:$0xff]
    %v3308 = vld [vmem:[%s3292 + $0x78] sm:$0xff]
    %3309 = vmatprep.subr.mxu0 0.0
    %3310 = vmatpush1.msra.mxu0 %v3293
    %3311 = vmatprep.subr.mxu0 0.0
    %3312 = vmatpush1.msra.mxu0 %v3294
    %3313 = vmatprep.subr.mxu0 0.0
    %3314 = vmatpush1.msra.mxu0 %v3295
    %3315 = vmatprep.subr.mxu0 0.0
    %3316 = vmatpush1.msra.mxu0 %v3296
    %3317 = vmatprep.subr.mxu0 0.0
    %3318 = vmatpush1.msra.mxu0 %v3297
    %3319 = vmatprep.subr.mxu0 0.0
    %3320 = vmatpush1.msra.mxu0 %v3298
    %3321 = vmatprep.subr.mxu0 0.0
    %3322 = vmatpush1.msra.mxu0 %v3299
    %3323 = vmatprep.subr.mxu0 0.0
    %3324 = vmatpush1.msra.mxu0 %v3300
    %3325 = vmatprep.subr.mxu0 0.0
    %3326 = vmatpush1.msra.mxu0 %v3301
    %3327 = vmatprep.subr.mxu0 0.0
    %3328 = vmatpush1.msra.mxu0 %v3302
    %3329 = vmatprep.subr.mxu0 0.0
    %3330 = vmatpush1.msra.mxu0 %v3303
    %3331 = vmatprep.subr.mxu0 0.0
    %3332 = vmatpush1.msra.mxu0 %v3304
    %3333 = vmatprep.subr.mxu0 0.0
    %3334 = vmatpush1.msra.mxu0 %v3305
    %3335 = vmatprep.subr.mxu0 0.0
    %3336 = vmatpush1.msra.mxu0 %v3306
    %3337 = vmatprep.subr.mxu0 0.0
    %3338 = vmatpush1.msra.mxu0 %v3307
    %3339 = vmatprep.subr.mxu0 0.0
    %3340 = vmatpush1.msra.mxu0 %v3308
    %3341 = vmatprep.subr.mxu0 0.0
    %3342 = vmatpush1.msra.mxu0 0.0
    %3343 = vmatprep.subr.mxu0 0.0
    %3344 = vmatpush1.msra.mxu0 0.0
    %3345 = vmatprep.subr.mxu0 0.0
    %3346 = vmatpush1.msra.mxu0 0.0
    %3347 = vmatprep.subr.mxu0 0.0
    %3348 = vmatpush1.msra.mxu0 0.0
    %3349 = vmatprep.subr.mxu0 0.0
    %3350 = vmatpush1.msra.mxu0 0.0
    %3351 = vmatprep.subr.mxu0 0.0
    %3352 = vmatpush1.msra.mxu0 0.0
    %3353 = vmatprep.subr.mxu0 0.0
    %3354 = vmatpush1.msra.mxu0 0.0
    %3355 = vmatprep.subr.mxu0 0.0
    %3356 = vmatpush1.msra.mxu0 0.0
    %3357 = vmatprep.subr.mxu0 0.0
    %3358 = vmatpush1.msra.mxu0 0.0
    %3359 = vmatprep.subr.mxu0 0.0
    %3360 = vmatpush1.msra.mxu0 0.0
    %3361 = vmatprep.subr.mxu0 0.0
    %3362 = vmatpush1.msra.mxu0 0.0
    %3363 = vmatprep.subr.mxu0 0.0
    %3364 = vmatpush1.msra.mxu0 0.0
    %3365 = vmatprep.subr.mxu0 0.0
    %3366 = vmatpush1.msra.mxu0 0.0
    %3367 = vmatprep.subr.mxu0 0.0
    %3368 = vmatpush1.msra.mxu0 0.0
    %3369 = vmatprep.subr.mxu0 0.0
    %3370 = vmatpush1.msra.mxu0 0.0
    %3371 = vmatprep.subr.mxu0 0.0
    %3372 = vmatpush1.msra.mxu0 0.0
    %3373 = vmatprep.mubr.f32.mxu0 0.0
    %3374 = vmatmul.mubr.f32.gmra.mrb[0].mxu0 %v3286
    %v3375 = vpop.f32.mrb[0].mxu0
    %v3376 = vadd.f32 0.0, %v3375
    %v3377 = vpop.f32.mrb[0].mxu0
    %3378 = vmatprep.mubr.f32.mxu0 0.0
    %3379 = vmatmul.mubr.f32.gmra.mrb[0].mxu0 %v3287
    %v3380 = vpop.f32.mrb[0].mxu0
    %v3381 = vadd.f32 0.0, %v3380
    %v3382 = vpop.f32.mrb[0].mxu0
    %3383 = vmatprep.mubr.f32.mxu0 0.0
    %3384 = vmatmul.mubr.f32.gmra.mrb[0].mxu0 %v3288
    %v3385 = vpop.f32.mrb[0].mxu0
    %v3386 = vadd.f32 0.0, %v3385
    %v3387 = vpop.f32.mrb[0].mxu0
    %3388 = vmatprep.mubr.f32.mxu0 0.0
    %3389 = vmatmul.mubr.f32.gmra.mrb[0].mxu0 %v3289
    %v3390 = vpop.f32.mrb[0].mxu0
    %v3391 = vadd.f32 0.0, %v3390
    %v3392 = vpop.f32.mrb[0].mxu0
    %3393 = vmatprep.mubr.f32.mxu0 0.0
    %3394 = vmatmul.mubr.f32.gmra.mrb[0].mxu0 %v3290
    %v3395 = vpop.f32.mrb[0].mxu0
    %v3396 = vadd.f32 0.0, %v3395
    %v3397 = vpop.f32.mrb[0].mxu0
    %3398 = vmatprep.mubr.f32.mxu0 0.0
    %3399 = vmatmul.mubr.f32.gmra.mrb[0].mxu0 %v3291
    %v3400 = vpop.f32.mrb[0].mxu0
    %v3401 = vadd.f32 0.0, %v3400
    %v3402 = vpop.f32.mrb[0].mxu0
    %3403 = vdwg.mxu0
    %v3404 = vadd.f32 %v2898, %v3376
    %v3405 = vadd.f32 %v2899, %v3381
    %v3406 = vadd.f32 %v2900, %v3386
    %v3407 = vadd.f32 %v2901, %v3391
    %v3408 = vadd.f32 %v2902, %v3396
    %v3409 = vadd.f32 %v2903, %v3401
    %s3410 = scalar_lea.vmem %s16, 1
    %v3411 = vld [vmem:[%s3410] sm:$0x1]
    %v3413 = vlaneseq
    %v3414 = vshrl.u32 %v3413, 7
    %v3415 = vsub.s32 0, %v3414
    %v3416 = vrot.slane %v3411, %v3415
    %v3418 = vadd.f32 %v3404, %v3416
    %v3419 = vadd.f32 %v3405, %v3416
    %v3420 = vadd.f32 %v3406, %v3416
    %v3421 = vadd.f32 %v3407, %v3416
    %v3422 = vadd.f32 %v3408, %v3416
    %v3423 = vadd.f32 %v3409, %v3416
    %v3424 = vld [vmem:[%s17] sm:$0x1]
    %v3425 = vld [vmem:[%s18] sm:$0x1]
    %v3426 = vsel %vm199, %v3418, 0.0
    %3427 = vadd.xlane.f32.xlu0 %v3426
    %v3428 = vpop.xlane.xlu0 %3427
    %v3429 = vsel %vm199, %v3419, 0.0
    %3430 = vadd.xlane.f32.xlu0 %v3429
    %v3431 = vpop.xlane.xlu0 %3430
    %v3432 = vsel %vm199, %v3420, 0.0
    %3433 = vadd.xlane.f32.xlu0 %v3432
    %v3434 = vpop.xlane.xlu0 %3433
    %v3435 = vsel %vm199, %v3421, 0.0
    %3436 = vadd.xlane.f32.xlu0 %v3435
    %v3437 = vpop.xlane.xlu0 %3436
    %v3438 = vsel %vm199, %v3422, 0.0
    %3439 = vadd.xlane.f32.xlu0 %v3438
    %v3440 = vpop.xlane.xlu0 %3439
    %v3441 = vsel %vm199, %v3423, 0.0
    %3442 = vadd.xlane.f32.xlu0 %v3441
    %v3443 = vpop.xlane.xlu0 %3442
    %v3444 = vmul.f32 %v3428, %v218
    %v3445 = vmul.f32 %v3431, %v218
    %v3446 = vmul.f32 %v3434, %v218
    %v3447 = vmul.f32 %v3437, %v218
    %v3448 = vmul.f32 %v3440, %v218
    %v3449 = vmul.f32 %v3443, %v218
    %v3450 = vsub.f32 %v3418, %v3444
    %v3451 = vsub.f32 %v3419, %v3445
    %v3452 = vsub.f32 %v3420, %v3446
    %v3453 = vsub.f32 %v3421, %v3447
    %v3454 = vsub.f32 %v3422, %v3448
    %v3455 = vsub.f32 %v3423, %v3449
    %v3456 = vmul.f32 %v3450, %v3450
    %v3457 = vmul.f32 %v3451, %v3451
    %v3458 = vmul.f32 %v3452, %v3452
    %v3459 = vmul.f32 %v3453, %v3453
    %v3460 = vmul.f32 %v3454, %v3454
    %v3461 = vmul.f32 %v3455, %v3455
    %v3462 = vsel %vm199, %v3456, 0.0
    %3463 = vadd.xlane.f32.xlu0 %v3462
    %v3464 = vpop.xlane.xlu0 %3463
    %v3465 = vsel %vm199, %v3457, 0.0
    %3466 = vadd.xlane.f32.xlu0 %v3465
    %v3467 = vpop.xlane.xlu0 %3466
    %v3468 = vsel %vm199, %v3458, 0.0
    %3469 = vadd.xlane.f32.xlu0 %v3468
    %v3470 = vpop.xlane.xlu0 %3469
    %v3471 = vsel %vm199, %v3459, 0.0
    %3472 = vadd.xlane.f32.xlu0 %v3471
    %v3473 = vpop.xlane.xlu0 %3472
    %v3474 = vsel %vm199, %v3460, 0.0
    %3475 = vadd.xlane.f32.xlu0 %v3474
    %v3476 = vpop.xlane.xlu0 %3475
    %v3477 = vsel %vm199, %v3461, 0.0
    %3478 = vadd.xlane.f32.xlu0 %v3477
    %v3479 = vpop.xlane.xlu0 %3478
    %v3480 = vmul.f32 %v3464, %v218
    %v3481 = vmul.f32 %v3467, %v218
    %v3482 = vmul.f32 %v3470, %v218
    %v3483 = vmul.f32 %v3473, %v218
    %v3484 = vmul.f32 %v3476, %v218
    %v3485 = vmul.f32 %v3479, %v218
    %v3486 = vadd.f32 %v3480, 1e-12
    %v3487 = vadd.f32 %v3481, 1e-12
    %v3488 = vadd.f32 %v3482, 1e-12
    %v3489 = vadd.f32 %v3483, 1e-12
    %v3490 = vadd.f32 %v3484, 1e-12
    %v3491 = vadd.f32 %v3485, 1e-12
    %v3492 = vrsqrt.pop %v3486
    %v3493 = vrsqrt.pop %v3487
    %v3494 = vrsqrt.pop %v3488
    %v3495 = vrsqrt.pop %v3489
    %v3496 = vrsqrt.pop %v3490
    %v3497 = vrsqrt.pop %v3491
    %v3498 = vmul.f32 %v3450, %v3492
    %v3499 = vmul.f32 %v3451, %v3493
    %v3500 = vmul.f32 %v3452, %v3494
    %v3501 = vmul.f32 %v3453, %v3495
    %v3502 = vmul.f32 %v3454, %v3496
    %v3503 = vmul.f32 %v3455, %v3497
    %v3505 = vlaneseq
    %v3506 = vshrl.u32 %v3505, 7
    %v3507 = vsub.s32 0, %v3506
    %v3508 = vrot.slane %v3424, %v3507
    %v3510 = vmul.f32 %v3498, %v3508
    %v3511 = vmul.f32 %v3499, %v3508
    %v3512 = vmul.f32 %v3500, %v3508
    %v3513 = vmul.f32 %v3501, %v3508
    %v3514 = vmul.f32 %v3502, %v3508
    %v3515 = vmul.f32 %v3503, %v3508
    %v3517 = vlaneseq
    %v3518 = vshrl.u32 %v3517, 7
    %v3519 = vsub.s32 0, %v3518
    %v3520 = vrot.slane %v3425, %v3519
    %v3522 = vadd.f32 %v3510, %v3520
    %v3523 = vadd.f32 %v3511, %v3520
    %v3524 = vadd.f32 %v3512, %v3520
    %v3525 = vadd.f32 %v3513, %v3520
    %v3526 = vadd.f32 %v3514, %v3520
    %v3527 = vadd.f32 %v3515, %v3520
    %v3528 = vld [vmem:[%s4] sm:$0x3]
    %v3530 = vsel %vm576, %v3528, 0
    %3532 = vmatprep.subr.mxu0 0.0
    %3533 = vmatpush1.msra.mxu0 %v3522
    %3534 = vmatprep.subr.mxu0 0.0
    %3535 = vmatpush1.msra.mxu0 %v3523
    %3536 = vmatprep.subr.mxu0 0.0
    %3537 = vmatpush1.msra.mxu0 %v3524
    %3538 = vmatprep.subr.mxu0 0.0
    %3539 = vmatpush1.msra.mxu0 %v3525
    %3540 = vmatprep.subr.mxu0 0.0
    %3541 = vmatpush1.msra.mxu0 %v3526
    %3542 = vmatprep.subr.mxu0 0.0
    %3543 = vmatpush1.msra.mxu0 %v3527
    %3544 = vmatprep.subr.mxu0 0.0
    %3545 = vmatpush1.msra.mxu0 0.0
    %3546 = vmatprep.subr.mxu0 0.0
    %3547 = vmatpush1.msra.mxu0 0.0
    %3548 = vmatprep.subr.mxu0 0.0
    %3549 = vmatpush1.msra.mxu0 0.0
    %3550 = vmatprep.subr.mxu0 0.0
    %3551 = vmatpush1.msra.mxu0 0.0
    %3552 = vmatprep.subr.mxu0 0.0
    %3553 = vmatpush1.msra.mxu0 0.0
    %3554 = vmatprep.subr.mxu0 0.0
    %3555 = vmatpush1.msra.mxu0 0.0
    %3556 = vmatprep.subr.mxu0 0.0
    %3557 = vmatpush1.msra.mxu0 0.0
    %3558 = vmatprep.subr.mxu0 0.0
    %3559 = vmatpush1.msra.mxu0 0.0
    %3560 = vmatprep.subr.mxu0 0.0
    %3561 = vmatpush1.msra.mxu0 0.0
    %3562 = vmatprep.subr.mxu0 0.0
    %3563 = vmatpush1.msra.mxu0 0.0
    %3564 = vmatprep.subr.mxu0 0.0
    %3565 = vmatpush1.msra.mxu0 0.0
    %3566 = vmatprep.subr.mxu0 0.0
    %3567 = vmatpush1.msra.mxu0 0.0
    %3568 = vmatprep.subr.mxu0 0.0
    %3569 = vmatpush1.msra.mxu0 0.0
    %3570 = vmatprep.subr.mxu0 0.0
    %3571 = vmatpush1.msra.mxu0 0.0
    %3572 = vmatprep.subr.mxu0 0.0
    %3573 = vmatpush1.msra.mxu0 0.0
    %3574 = vmatprep.subr.mxu0 0.0
    %3575 = vmatpush1.msra.mxu0 0.0
    %3576 = vmatprep.subr.mxu0 0.0
    %3577 = vmatpush1.msra.mxu0 0.0
    %3578 = vmatprep.subr.mxu0 0.0
    %3579 = vmatpush1.msra.mxu0 0.0
    %3580 = vmatprep.subr.mxu0 0.0
    %3581 = vmatpush1.msra.mxu0 0.0
    %3582 = vmatprep.subr.mxu0 0.0
    %3583 = vmatpush1.msra.mxu0 0.0
    %3584 = vmatprep.subr.mxu0 0.0
    %3585 = vmatpush1.msra.mxu0 0.0
    %3586 = vmatprep.subr.mxu0 0.0
    %3587 = vmatpush1.msra.mxu0 0.0
    %3588 = vmatprep.subr.mxu0 0.0
    %3589 = vmatpush1.msra.mxu0 0.0
    %3590 = vmatprep.subr.mxu0 0.0
    %3591 = vmatpush1.msra.mxu0 0.0
    %3592 = vmatprep.subr.mxu0 0.0
    %3593 = vmatpush1.msra.mxu0 0.0
    %3594 = vmatprep.subr.mxu0 0.0
    %3595 = vmatpush1.msra.mxu0 0.0
    %3596 = vmatprep.mubr.f32.mxu0 0.0
    %3597 = vmatmul.mubr.f32.gmra.mrb[0].mxu0 %v3530
    %v3598 = vpop.f32.mrb[0].mxu0
    %v3599 = vadd.f32 0.0, %v3598
    %v3600 = vpop.f32.mrb[0].mxu0
    %3601 = vdwg.mxu0
    %vm3602 = vcmask 254976
    %3603 = vst.msk [vmem:[#allocation2] sm:$0x3] %vm3602, %v3599
    // Predicated region
    $region78: #{get_audio_features.1} parent=1 // pred_check
      _
    $region79: #{get_audio_features.1} parent=1 // pred_check_branch
      %3605 = sbr.rel (0) target = $region81
    $region80: #{get_audio_features.1} parent=1 // pred_region
      %s3607 = ssub.s32 32, 32
      %3608 = vsyncadd [#allocation3], %s3607
      %s3610 = sshll.u32 [#allocation2], 4
      %s3611 = int_to_ptr.vmem [resolvable:$true] %s3610
      %3613 = dma.vmem_to_hbm [thread:$0]  %s3611, 32, %s19, [#allocation3]
    $region81: #{get_audio_features.1} parent=1 // pred_fallthru
      _
    // Predicated region
    $region82: #{get_audio_features.1} parent=1 // pred_check
      _
    $region83: #{get_audio_features.1} parent=1 // pred_check_branch
      %3615 = sbr.rel (0) target = $region85
    $region84: #{get_audio_features.1} parent=1 // pred_region
      %3616 = dma.done [#allocation3], 32
    $region85: #{get_audio_features.1} parent=1 // pred_fallthru
      _
    %3617 = vsyncpa [#allocation3], 1

</llo_original>
